<compile_context>
chip_gen: v5e
topology: v5e:2x2
jax: 0.10.0
libtpu: 0.0.40
codegen_flags: <defaults>
</compile_context>

<pallas_src>
import functools
import math

import jax
import jax.numpy as jnp
from jax import lax
from jax.experimental import pallas as pl
from jax.experimental.pallas import tpu as pltpu


# ----------------------------- Pallas kernel ------------------------------ #
def _inverted_residual_kernel(
    x_ref,      # (1, Cin, HW)        f32       NCHW input, spatial flattened
    w1t_ref,    # (1, block_c, Cin)   bf16      expand 1x1 weights (BN1 folded)
    side_ref,   # (1, block_c, 11)    f32       [dw 3x3 weights (9) | b1 | b2]
    masks_ref,  # (8, HW)             dw_dtype  border masks, 8 off-center taps
    w3_ref,     # (1, Cout, block_c)  bf16      project 1x1 weights (BN3 folded)
    b3_ref,     # (Cout, 1)           f32       BN3 bias
    o_ref,      # (1, Cout, HW)       f32       output (resident across c axis)
    xbf_ref,    # VMEM scratch (Cin, HW) bf16 -- hoisted input cast
    *, H, W, use_res, dw_dtype):
  HW = H * W
  c = pl.program_id(1)
  num_c = pl.num_programs(1)

  # Input block is resident across the hidden-channel reduction: cast once.
  @pl.when(c == 0)
  def _():
    xbf_ref[...] = x_ref[0].astype(jnp.bfloat16)

  side = side_ref[0]                                   # (block_c, 11) f32
  wdw = side[:, 0:9].astype(dw_dtype)                  # per-channel 3x3 taps
  b1 = side[:, 9:10]                                   # (block_c, 1) f32
  b2 = side[:, 10:11]                                  # (block_c, 1) f32

  # ---- 1x1 expand conv (MXU, bf16 operands / f32 accum) + BN1 + ReLU6 ------
  h = jnp.dot(w1t_ref[0], xbf_ref[...], preferred_element_type=jnp.float32)
  h = jnp.clip(h + b1, 0.0, 6.0).astype(dw_dtype)      # (block_c, HW)

  # ---- 3x3 depthwise conv (padding=1) via lane rolls + precomputed masks ---
  # Flat spatial index p = ph*W + pw; tap (dy,dx) reads p + (dy-1)*W + (dx-1),
  # zeroed outside the image by the precomputed masks.  Rolls run on the XLU.
  masks = masks_ref[...]                               # (8, HW) dw_dtype
  acc = jnp.zeros(h.shape, dw_dtype)
  for dy in range(3):
    for dx in range(3):
      k = dy * 3 + dx
      off = (dy - 1) * W + (dx - 1)
      tap = h if off == 0 else pltpu.roll(h, shift=(-off) % HW, axis=1)
      contrib = tap * wdw[:, k:k + 1]
      if k != 4:                                       # off-center taps can wrap
        j = k if k < 4 else k - 1
        contrib = contrib * masks[j:j + 1]
      acc = acc + contrib
  dw = jnp.clip(acc + b2.astype(dw_dtype), 0.0, 6.0).astype(jnp.bfloat16)

  # ---- 1x1 project conv: accumulate directly into the resident output block
  proj = jnp.dot(w3_ref[0], dw, preferred_element_type=jnp.float32)  # (Cout, HW)

  @pl.when(c == 0)
  def _():
    o_ref[0] = proj

  @pl.when(c > 0)
  def _():
    o_ref[0] = o_ref[0] + proj

  @pl.when(c == num_c - 1)
  def _():
    y = o_ref[0] + b3_ref[...]
    if use_res:                       # stride == 1 and inp == oup
      y = y + x_ref[0]
    o_ref[0] = y.astype(o_ref.dtype)


# ------------------------------- wrapper ----------------------------------- #
def _is_v7(kind):
  return ("v7" in kind) or ("7x" in kind)


def _pick_block_c(Chid, want, HW, kind):
  """Largest divisor of Chid <= want, capped so live f32 intermediates fit VMEM."""
  want = max(8, min(want, Chid))
  inter_cap = (20 << 20) if _is_v7(kind) else (44 << 20)   # h/taps/acc/dw budget
  while want > 8 and 6 * want * HW * 4 > inter_cap:
    want = max(8, want // 2)
  for d in range(want, 0, -1):
    if Chid % d == 0:
      return d
  return Chid


def inverted_residual(x_nchw, params, *, stride, block_c=128, dw_dtype=None):
  """x_nchw: (N, Cin, H, W) float32.  Returns (N, Cout, Hout, Wout) NCHW."""
  w1, s1, b1, wdw, s2, b2, w3, s3, b3 = params
  N, Cin, H, W = x_nchw.shape
  Chid = w1.shape[1]
  Cout = w3.shape[1]
  HW = H * W
  use_res = (stride == 1) and (Cin == Cout)

  try:
    kind = jax.devices()[0].device_kind.lower()
  except Exception:  # pragma: no cover
    kind = ""
  if dw_dtype is None:
    # bf16 VPU/XLU on v6e/v7x (halves roll traffic, 2x VALU packing); keep the
    # elementwise depthwise math in f32 on v5e and older parts.
    dw_dtype = jnp.bfloat16 if (("v6" in kind) or _is_v7(kind)) else jnp.float32

  block_c = _pick_block_c(Chid, block_c, HW, kind)
  n_cb = Chid // block_c

  # Fold eval-mode BN scales into the (tiny) conv weights; biases stay separate.
  w1t = ((w1 * s1[None, :]).T                                   # (Chid, Cin)
         .reshape(n_cb, block_c, Cin).astype(jnp.bfloat16))
  wdw_cols = (wdw * s2[None, None, :]).reshape(9, Chid).T       # (Chid, 9)
  side = jnp.concatenate(
      [wdw_cols, b1.reshape(Chid, 1), b2.reshape(Chid, 1)], axis=1)
  side = side.reshape(n_cb, block_c, 11).astype(jnp.float32)    # (n_cb, bc, 11)
  w3b = ((w3 * s3[None, :]).T                                   # (Cout, Chid)
         .reshape(Cout, n_cb, block_c).transpose(1, 0, 2)       # (n_cb, Cout, bc)
         .astype(jnp.bfloat16))
  b3c = b3.reshape(Cout, 1).astype(jnp.float32)

  # Border masks for the 8 off-center depthwise taps, precomputed once (avoids
  # per-grid-step iota + div/mod-by-W + compares on the VPU).
  pos = jnp.arange(HW, dtype=jnp.int32)
  ph, pw = pos // W, pos % W
  row_ok = [ph >= 1, None, ph <= H - 2]
  col_ok = [pw >= 1, None, pw <= W - 2]
  mask_rows = []
  for dy in range(3):
    for dx in range(3):
      if dy == 1 and dx == 1:
        continue
      m = jnp.ones((HW,), jnp.bool_)
      if row_ok[dy] is not None:
        m = m & row_ok[dy]
      if col_ok[dx] is not None:
        m = m & col_ok[dx]
      mask_rows.append(m)
  masks = jnp.stack(mask_rows, axis=0).astype(dw_dtype)          # (8, HW)

  x_flat = x_nchw.reshape(N, Cin, HW).astype(jnp.float32)        # free reshape

  # Explicit per-generation VMEM budget (v7x: 64 MiB physical / 32 MiB default
  # scoped limit; v5e default scoped limit is only 16 MiB).
  dw_bytes = jnp.dtype(dw_dtype).itemsize
  est = (2 * Cin * HW * 4                 # input double-buffer (f32)
         + Cin * HW * 2                   # bf16 input scratch
         + 2 * Cout * HW * 4              # output double-buffer
         + 2 * 8 * HW * dw_bytes          # masks
         + 2 * block_c * (2 * Cin + 4 * 11) + 2 * Cout * block_c * 2 + 4 * Cout
         + 6 * block_c * HW * 4)          # live depthwise intermediates
  cap = (48 << 20) if _is_v7(kind) else (96 << 20)
  vmem_limit = int(min(cap, max(int(est * 1.5), 32 << 20)))

  kernel = functools.partial(_inverted_residual_kernel,
                             H=H, W=W, use_res=use_res, dw_dtype=dw_dtype)

  # TODO(synk): for N == 1 inference on v7x, add a leading "parallel" grid axis
  # (split Cout or H row-bands with a 1-row halo) so both TensorCores are used.
  out_flat = pl.pallas_call(
      kernel,
      out_shape=jax.ShapeDtypeStruct((N, Cout, HW), jnp.float32),
      grid_spec=pltpu.PrefetchScalarGridSpec(
          num_scalar_prefetch=0,
          grid=(N, n_cb),                          # hidden-channel reduction last
          in_specs=[
              pl.BlockSpec((1, Cin, HW), lambda n, c: (n, 0, 0)),
              pl.BlockSpec((1, block_c, Cin), lambda n, c: (c, 0, 0)),
              pl.BlockSpec((1, block_c, 11), lambda n, c: (c, 0, 0)),
              pl.BlockSpec((8, HW), lambda n, c: (0, 0)),
              pl.BlockSpec((1, Cout, block_c), lambda n, c: (c, 0, 0)),
              pl.BlockSpec((Cout, 1), lambda n, c: (0, 0)),
          ],
          out_specs=pl.BlockSpec((1, Cout, HW), lambda n, c: (n, 0, 0)),
          scratch_shapes=[pltpu.VMEM((Cin, HW), jnp.bfloat16)],
      ),
      compiler_params=pltpu.CompilerParams(
          dimension_semantics=("parallel", "arbitrary"),
          vmem_limit_bytes=vmem_limit),
  )(x_flat, w1t, side, masks, w3b, b3c)

  out = out_flat.reshape(N, Cout, H, W)
  if stride == 2:
    # A stride-2 conv (pad=1, k=3) equals the stride-1 conv subsampled; all ops
    # after the depthwise conv are pointwise/1x1, so subsampling commutes to
    # the end.  Residual never applies at stride 2.
    # TODO(synk): subsample right after the depthwise stage inside the kernel
    # (quarter-size project matmul + output) to remove the 4x redundant work.
    out = out[:, :, ::2, ::2]
  return out


# --------------------- deterministic parameter setup ----------------------- #
def _fold_bn(gamma, beta, mean, var, eps=1e-5):
  scale = gamma * lax.rsqrt(var + eps)
  bias = beta - mean * scale
  return scale, bias


def init_params(key, inp, oup, expand_ratio):
  hidden = round(inp * expand_ratio)
  ks = jax.random.split(key, 6)
  w1 = jax.random.normal(ks[0], (inp, hidden), jnp.float32) / math.sqrt(inp)
  wdw = jax.random.normal(ks[1], (3, 3, hidden), jnp.float32) / 3.0
  w3 = jax.random.normal(ks[2], (hidden, oup), jnp.float32) / math.sqrt(hidden)

  def bn(k, c):
    k1, k2, k3, k4 = jax.random.split(k, 4)
    gamma = 1.0 + 0.1 * jax.random.normal(k1, (c,), jnp.float32)
    beta = 0.1 * jax.random.normal(k2, (c,), jnp.float32)
    mean = 0.1 * jax.random.normal(k3, (c,), jnp.float32)
    var = 0.9 + 0.1 * jnp.abs(jax.random.normal(k4, (c,), jnp.float32))
    return _fold_bn(gamma, beta, mean, var)

  s1, b1 = bn(ks[3], hidden)
  s2, b2 = bn(ks[4], hidden)
  s3, b3 = bn(ks[5], oup)
  return (w1, s1, b1, wdw, s2, b2, w3, s3, b3)


# ----------------------- pure-JAX reference (NCHW) ------------------------- #
def ref_forward(x_nchw, params, *, stride):
  w1, s1, b1, wdw, s2, b2, w3, s3, b3 = params
  dn = ("NCHW", "HWIO", "NCHW")
  Chid = w1.shape[1]
  cvec = lambda v: v[None, :, None, None]
  h = lax.conv_general_dilated(x_nchw, w1.reshape(1, 1, *w1.shape), (1, 1),
                               "VALID", dimension_numbers=dn)
  h = jnp.clip(h * cvec(s1) + cvec(b1), 0.0, 6.0)
  h = lax.conv_general_dilated(h, wdw.reshape(3, 3, 1, Chid), (stride, stride),
                               ((1, 1), (1, 1)), dimension_numbers=dn,
                               feature_group_count=Chid)
  h = jnp.clip(h * cvec(s2) + cvec(b2), 0.0, 6.0)
  y = lax.conv_general_dilated(h, w3.reshape(1, 1, *w3.shape), (1, 1),
                               "VALID", dimension_numbers=dn)
  y = y * cvec(s3) + cvec(b3)
  if stride == 1 and x_nchw.shape[1] == y.shape[1]:
    y = y + x_nchw
  return y


# ---------------------------------- main ----------------------------------- #
if __name__ == "__main__":
  key = jax.random.PRNGKey(0)
  kx1, kp1, kx2, kp2 = jax.random.split(key, 4)

  # Case 1: InvertedResidual(32, 32, stride=1, expand_ratio=4) -> hidden=128,
  # residual connection active.
  N, Cin, H, W = 2, 32, 16, 16
  oup, stride, expand_ratio = 32, 1, 4
  x = jax.random.normal(kx1, (N, Cin, H, W), jnp.float32)
  params = init_params(kp1, Cin, oup, expand_ratio)

  fwd = jax.jit(functools.partial(inverted_residual, stride=stride))
  out = fwd(x, params)
  jax.block_until_ready(out)
  ref = ref_forward(x, params, stride=stride)
  assert out.shape == ref.shape, (out.shape, ref.shape)
  err1 = float(jnp.max(jnp.abs(out - ref)))
  assert jnp.allclose(out, ref, atol=5e-2, rtol=5e-2), err1

  # Case 2: InvertedResidual(16, 24, stride=2, expand_ratio=6) -> hidden=96,
  # no residual, spatial downsampling.
  Cin2, oup2, stride2, er2 = 16, 24, 2, 6
  x2 = jax.random.normal(kx2, (N, Cin2, H, W), jnp.float32)
  params2 = init_params(kp2, Cin2, oup2, er2)
  fwd2 = jax.jit(functools.partial(inverted_residual, stride=stride2))
  out2 = fwd2(x2, params2)
  jax.block_until_ready(out2)
  ref2 = ref_forward(x2, params2, stride=stride2)
  assert out2.shape == ref2.shape, (out2.shape, ref2.shape)
  err2 = float(jnp.max(jnp.abs(out2 - ref2)))
  assert jnp.allclose(out2, ref2, atol=5e-2, rtol=5e-2), err2

  # TODO(synk): training-mode BatchNorm (batch statistics) not modeled; BN is
  # folded in eval mode as scale/bias, matching inference semantics.
  print("KERNEL_OK")
</pallas_src>

<mosaic_0001>
module attributes {stable_mosaic.version = 11 : i64} {
  func.func @_inverted_residual_kernel(%arg0: i32, %arg1: i32, %arg2: memref<1x32x256xf32, #tpu.memory_space<vmem>>, %arg3: memref<1x128x32xbf16, #tpu.memory_space<vmem>>, %arg4: memref<1x128x11xf32, #tpu.memory_space<vmem>>, %arg5: memref<8x256xf32, #tpu.memory_space<vmem>>, %arg6: memref<1x32x128xbf16, #tpu.memory_space<vmem>>, %arg7: memref<32x1xf32, #tpu.memory_space<vmem>>, %arg8: memref<1x32x256xf32, #tpu.memory_space<vmem>>, %arg9: memref<32x256xbf16, #tpu.memory_space<vmem>>) attributes {dimension_semantics = [#tpu.dimension_semantics<parallel>, #tpu.dimension_semantics<arbitrary>], iteration_bounds = array<i64: 2, 1>, scalar_prefetch = 0 : i64, scratch_operands = 1 : i64, tpu.core_type = #tpu.core_type<tc>, window_params = [{transform_indices = @transform_0, window_bounds = array<i64: 1, 32, 256>}, {transform_indices = @transform_1, window_bounds = array<i64: 1, 128, 32>}, {transform_indices = @transform_2, window_bounds = array<i64: 1, 128, 11>}, {pipeline_mode = #tpu.pipeline_mode<synchronous>, transform_indices = @transform_3, window_bounds = array<i64: 8, 256>}, {transform_indices = @transform_4, window_bounds = array<i64: 1, 32, 128>}, {pipeline_mode = #tpu.pipeline_mode<synchronous>, transform_indices = @transform_5, window_bounds = array<i64: 32, 1>}, {transform_indices = @transform_6, window_bounds = array<i64: 1, 32, 256>}]} {
    %c0_i32 = arith.constant 0 : i32
    %0 = arith.cmpi eq, %arg1, %c0_i32 : i32
    %1 = arith.extui %0 : i1 to i32
    %c0_i32_0 = arith.constant 0 : i32
    %2 = arith.cmpi ne, %1, %c0_i32_0 : i32
    scf.if %2 {
      %c0_25 = arith.constant 0 : index
      %c0_26 = arith.constant 0 : index
      %c0_27 = arith.constant 0 : index
      %107 = vector.load %arg2[%c0_25, %c0_26, %c0_27] : memref<1x32x256xf32, #tpu.memory_space<vmem>>, vector<1x32x256xf32>
      %108 = vector.shape_cast %107 : vector<1x32x256xf32> to vector<32x256xf32>
      %109 = arith.truncf %108 : vector<32x256xf32> to vector<32x256xbf16>
      %c0_28 = arith.constant 0 : index
      %c0_29 = arith.constant 0 : index
      %110 = vector.load %arg9[%c0_28, %c0_29] : memref<32x256xbf16, #tpu.memory_space<vmem>>, vector<32x256xbf16>
      tpu.vector_store %arg9[%c0_28, %c0_29], %109 {strides = array<i32>} : memref<32x256xbf16, #tpu.memory_space<vmem>>, vector<32x256xbf16>,
    } else {
    }
    %c0 = arith.constant 0 : index
    %c0_1 = arith.constant 0 : index
    %c0_2 = arith.constant 0 : index
    %3 = vector.load %arg4[%c0, %c0_1, %c0_2] : memref<1x128x11xf32, #tpu.memory_space<vmem>>, vector<1x128x11xf32>
    %4 = vector.shape_cast %3 : vector<1x128x11xf32> to vector<128x11xf32>
    %5 = vector.extract_strided_slice %4 {offsets = [0, 0], sizes = [128, 9], strides = [1, 1]} : vector<128x11xf32> to vector<128x9xf32>
    %6 = vector.extract_strided_slice %4 {offsets = [0, 9], sizes = [128, 1], strides = [1, 1]} : vector<128x11xf32> to vector<128x1xf32>
    %7 = vector.extract_strided_slice %4 {offsets = [0, 10], sizes = [128, 1], strides = [1, 1]} : vector<128x11xf32> to vector<128x1xf32>
    %c0_3 = arith.constant 0 : index
    %c0_4 = arith.constant 0 : index
    %c0_5 = arith.constant 0 : index
    %8 = vector.load %arg3[%c0_3, %c0_4, %c0_5] : memref<1x128x32xbf16, #tpu.memory_space<vmem>>, vector<1x128x32xbf16>
    %9 = vector.shape_cast %8 : vector<1x128x32xbf16> to vector<128x32xbf16>
    %c0_6 = arith.constant 0 : index
    %c0_7 = arith.constant 0 : index
    %10 = vector.load %arg9[%c0_6, %c0_7] : memref<32x256xbf16, #tpu.memory_space<vmem>>, vector<32x256xbf16>
    %cst = arith.constant dense<0.000000e+00> : vector<128x256xf32>
    %11 = tpu.matmul %9, %10, %cst {dimension_numbers = #tpu.dot_dimension_numbers<[1], [0], [0], [1], [0, 0, 1, 1], [], []>} : vector<128x32xbf16>, vector<32x256xbf16>, vector<128x256xf32> -> vector<128x256xf32>
    %12 = vector.broadcast %6 : vector<128x1xf32> to vector<128x256xf32>
    %13 = arith.addf %11, %12 : vector<128x256xf32>
    %cst_8 = arith.constant 0.000000e+00 : f32
    %cst_9 = arith.constant 6.000000e+00 : f32
    %14 = vector.broadcast %cst_8 : f32 to vector<128x256xf32>
    %15 = arith.maximumf %14, %13 : vector<128x256xf32>
    %16 = vector.broadcast %cst_9 : f32 to vector<128x256xf32>
    %17 = arith.minimumf %16, %15 : vector<128x256xf32>
    %c0_10 = arith.constant 0 : index
    %c0_11 = arith.constant 0 : index
    %18 = vector.load %arg5[%c0_10, %c0_11] : memref<8x256xf32, #tpu.memory_space<vmem>>, vector<8x256xf32>
    %cst_12 = arith.constant 0.000000e+00 : f32
    %19 = vector.broadcast %cst_12 : f32 to vector<128x256xf32>
    %c17_i32 = arith.constant 17 : i32
    %20 = tpu.dynamic_rotate %17 by %c17_i32 dim 1 : vector<128x256xf32>, i32 -> vector<128x256xf32>
    %21 = vector.extract_strided_slice %5 {offsets = [0, 0], sizes = [128, 1], strides = [1, 1]} : vector<128x9xf32> to vector<128x1xf32>
    %22 = vector.broadcast %21 : vector<128x1xf32> to vector<128x256xf32>
    %23 = arith.mulf %20, %22 : vector<128x256xf32>
    %24 = vector.extract_strided_slice %18 {offsets = [0, 0], sizes = [1, 256], strides = [1, 1]} : vector<8x256xf32> to vector<1x256xf32>
    %25 = vector.broadcast %24 : vector<1x256xf32> to vector<128x256xf32>
    %26 = arith.mulf %23, %25 : vector<128x256xf32>
    %27 = arith.addf %19, %26 : vector<128x256xf32>
    %c16_i32 = arith.constant 16 : i32
    %28 = tpu.dynamic_rotate %17 by %c16_i32 dim 1 : vector<128x256xf32>, i32 -> vector<128x256xf32>
    %29 = vector.extract_strided_slice %5 {offsets = [0, 1], sizes = [128, 1], strides = [1, 1]} : vector<128x9xf32> to vector<128x1xf32>
    %30 = vector.broadcast %29 : vector<128x1xf32> to vector<128x256xf32>
    %31 = arith.mulf %28, %30 : vector<128x256xf32>
    %32 = vector.extract_strided_slice %18 {offsets = [1, 0], sizes = [1, 256], strides = [1, 1]} : vector<8x256xf32> to vector<1x256xf32>
    %33 = vector.broadcast %32 : vector<1x256xf32> to vector<128x256xf32>
    %34 = arith.mulf %31, %33 : vector<128x256xf32>
    %35 = arith.addf %27, %34 : vector<128x256xf32>
    %c15_i32 = arith.constant 15 : i32
    %36 = tpu.dynamic_rotate %17 by %c15_i32 dim 1 : vector<128x256xf32>, i32 -> vector<128x256xf32>
    %37 = vector.extract_strided_slice %5 {offsets = [0, 2], sizes = [128, 1], strides = [1, 1]} : vector<128x9xf32> to vector<128x1xf32>
    %38 = vector.broadcast %37 : vector<128x1xf32> to vector<128x256xf32>
    %39 = arith.mulf %36, %38 : vector<128x256xf32>
    %40 = vector.extract_strided_slice %18 {offsets = [2, 0], sizes = [1, 256], strides = [1, 1]} : vector<8x256xf32> to vector<1x256xf32>
    %41 = vector.broadcast %40 : vector<1x256xf32> to vector<128x256xf32>
    %42 = arith.mulf %39, %41 : vector<128x256xf32>
    %43 = arith.addf %35, %42 : vector<128x256xf32>
    %c1_i32 = arith.constant 1 : i32
    %44 = tpu.dynamic_rotate %17 by %c1_i32 dim 1 : vector<128x256xf32>, i32 -> vector<128x256xf32>
    %45 = vector.extract_strided_slice %5 {offsets = [0, 3], sizes = [128, 1], strides = [1, 1]} : vector<128x9xf32> to vector<128x1xf32>
    %46 = vector.broadcast %45 : vector<128x1xf32> to vector<128x256xf32>
    %47 = arith.mulf %44, %46 : vector<128x256xf32>
    %48 = vector.extract_strided_slice %18 {offsets = [3, 0], sizes = [1, 256], strides = [1, 1]} : vector<8x256xf32> to vector<1x256xf32>
    %49 = vector.broadcast %48 : vector<1x256xf32> to vector<128x256xf32>
    %50 = arith.mulf %47, %49 : vector<128x256xf32>
    %51 = arith.addf %43, %50 : vector<128x256xf32>
    %52 = vector.extract_strided_slice %5 {offsets = [0, 4], sizes = [128, 1], strides = [1, 1]} : vector<128x9xf32> to vector<128x1xf32>
    %53 = vector.broadcast %52 : vector<128x1xf32> to vector<128x256xf32>
    %54 = arith.mulf %17, %53 : vector<128x256xf32>
    %55 = arith.addf %51, %54 : vector<128x256xf32>
    %c255_i32 = arith.constant 255 : i32
    %56 = tpu.dynamic_rotate %17 by %c255_i32 dim 1 : vector<128x256xf32>, i32 -> vector<128x256xf32>
    %57 = vector.extract_strided_slice %5 {offsets = [0, 5], sizes = [128, 1], strides = [1, 1]} : vector<128x9xf32> to vector<128x1xf32>
    %58 = vector.broadcast %57 : vector<128x1xf32> to vector<128x256xf32>
    %59 = arith.mulf %56, %58 : vector<128x256xf32>
    %60 = vector.extract_strided_slice %18 {offsets = [4, 0], sizes = [1, 256], strides = [1, 1]} : vector<8x256xf32> to vector<1x256xf32>
    %61 = vector.broadcast %60 : vector<1x256xf32> to vector<128x256xf32>
    %62 = arith.mulf %59, %61 : vector<128x256xf32>
    %63 = arith.addf %55, %62 : vector<128x256xf32>
    %c241_i32 = arith.constant 241 : i32
    %64 = tpu.dynamic_rotate %17 by %c241_i32 dim 1 : vector<128x256xf32>, i32 -> vector<128x256xf32>
    %65 = vector.extract_strided_slice %5 {offsets = [0, 6], sizes = [128, 1], strides = [1, 1]} : vector<128x9xf32> to vector<128x1xf32>
    %66 = vector.broadcast %65 : vector<128x1xf32> to vector<128x256xf32>
    %67 = arith.mulf %64, %66 : vector<128x256xf32>
    %68 = vector.extract_strided_slice %18 {offsets = [5, 0], sizes = [1, 256], strides = [1, 1]} : vector<8x256xf32> to vector<1x256xf32>
    %69 = vector.broadcast %68 : vector<1x256xf32> to vector<128x256xf32>
    %70 = arith.mulf %67, %69 : vector<128x256xf32>
    %71 = arith.addf %63, %70 : vector<128x256xf32>
    %c240_i32 = arith.constant 240 : i32
    %72 = tpu.dynamic_rotate %17 by %c240_i32 dim 1 : vector<128x256xf32>, i32 -> vector<128x256xf32>
    %73 = vector.extract_strided_slice %5 {offsets = [0, 7], sizes = [128, 1], strides = [1, 1]} : vector<128x9xf32> to vector<128x1xf32>
    %74 = vector.broadcast %73 : vector<128x1xf32> to vector<128x256xf32>
    %75 = arith.mulf %72, %74 : vector<128x256xf32>
    %76 = vector.extract_strided_slice %18 {offsets = [6, 0], sizes = [1, 256], strides = [1, 1]} : vector<8x256xf32> to vector<1x256xf32>
    %77 = vector.broadcast %76 : vector<1x256xf32> to vector<128x256xf32>
    %78 = arith.mulf %75, %77 : vector<128x256xf32>
    %79 = arith.addf %71, %78 : vector<128x256xf32>
    %c239_i32 = arith.constant 239 : i32
    %80 = tpu.dynamic_rotate %17 by %c239_i32 dim 1 : vector<128x256xf32>, i32 -> vector<128x256xf32>
    %81 = vector.extract_strided_slice %5 {offsets = [0, 8], sizes = [128, 1], strides = [1, 1]} : vector<128x9xf32> to vector<128x1xf32>
    %82 = vector.broadcast %81 : vector<128x1xf32> to vector<128x256xf32>
    %83 = arith.mulf %80, %82 : vector<128x256xf32>
    %84 = vector.extract_strided_slice %18 {offsets = [7, 0], sizes = [1, 256], strides = [1, 1]} : vector<8x256xf32> to vector<1x256xf32>
    %85 = vector.broadcast %84 : vector<1x256xf32> to vector<128x256xf32>
    %86 = arith.mulf %83, %85 : vector<128x256xf32>
    %87 = arith.addf %79, %86 : vector<128x256xf32>
    %88 = vector.broadcast %7 : vector<128x1xf32> to vector<128x256xf32>
    %89 = arith.addf %87, %88 : vector<128x256xf32>
    %cst_13 = arith.constant 0.000000e+00 : f32
    %cst_14 = arith.constant 6.000000e+00 : f32
    %90 = vector.broadcast %cst_13 : f32 to vector<128x256xf32>
    %91 = arith.maximumf %90, %89 : vector<128x256xf32>
    %92 = vector.broadcast %cst_14 : f32 to vector<128x256xf32>
    %93 = arith.minimumf %92, %91 : vector<128x256xf32>
    %94 = arith.truncf %93 : vector<128x256xf32> to vector<128x256xbf16>
    %c0_15 = arith.constant 0 : index
    %c0_16 = arith.constant 0 : index
    %c0_17 = arith.constant 0 : index
    %95 = vector.load %arg6[%c0_15, %c0_16, %c0_17] : memref<1x32x128xbf16, #tpu.memory_space<vmem>>, vector<1x32x128xbf16>
    %96 = vector.shape_cast %95 : vector<1x32x128xbf16> to vector<32x128xbf16>
    %cst_18 = arith.constant dense<0.000000e+00> : vector<32x256xf32>
    %97 = tpu.matmul %96, %94, %cst_18 {dimension_numbers = #tpu.dot_dimension_numbers<[1], [0], [0], [1], [0, 0, 1, 1], [], []>} : vector<32x128xbf16>, vector<128x256xbf16>, vector<32x256xf32> -> vector<32x256xf32>
    %c0_i32_19 = arith.constant 0 : i32
    %98 = arith.cmpi eq, %arg1, %c0_i32_19 : i32
    %99 = arith.extui %98 : i1 to i32
    %c0_i32_20 = arith.constant 0 : i32
    %100 = arith.cmpi ne, %99, %c0_i32_20 : i32
    scf.if %100 {
      %c0_25 = arith.constant 0 : index
      %c0_26 = arith.constant 0 : index
      %c0_27 = arith.constant 0 : index
      %107 = vector.load %arg8[%c0_25, %c0_26, %c0_27] : memref<1x32x256xf32, #tpu.memory_space<vmem>>, vector<1x32x256xf32>
      %108 = vector.shape_cast %107 : vector<1x32x256xf32> to vector<32x256xf32>
      %109 = vector.shape_cast %97 : vector<32x256xf32> to vector<1x32x256xf32>
      tpu.vector_store %arg8[%c0_25, %c0_26, %c0_27], %109 {strides = array<i32>} : memref<1x32x256xf32, #tpu.memory_space<vmem>>, vector<1x32x256xf32>,
    } else {
    }
    %c0_i32_21 = arith.constant 0 : i32
    %101 = arith.cmpi sgt, %arg1, %c0_i32_21 : i32
    %102 = arith.extui %101 : i1 to i32
    %c0_i32_22 = arith.constant 0 : i32
    %103 = arith.cmpi ne, %102, %c0_i32_22 : i32
    scf.if %103 {
      %c0_25 = arith.constant 0 : index
      %c0_26 = arith.constant 0 : index
      %c0_27 = arith.constant 0 : index
      %107 = vector.load %arg8[%c0_25, %c0_26, %c0_27] : memref<1x32x256xf32, #tpu.memory_space<vmem>>, vector<1x32x256xf32>
      %108 = vector.shape_cast %107 : vector<1x32x256xf32> to vector<32x256xf32>
      %109 = arith.addf %108, %97 : vector<32x256xf32>
      %c0_28 = arith.constant 0 : index
      %c0_29 = arith.constant 0 : index
      %c0_30 = arith.constant 0 : index
      %110 = vector.load %arg8[%c0_28, %c0_29, %c0_30] : memref<1x32x256xf32, #tpu.memory_space<vmem>>, vector<1x32x256xf32>
      %111 = vector.shape_cast %110 : vector<1x32x256xf32> to vector<32x256xf32>
      %112 = vector.shape_cast %109 : vector<32x256xf32> to vector<1x32x256xf32>
      tpu.vector_store %arg8[%c0_28, %c0_29, %c0_30], %112 {strides = array<i32>} : memref<1x32x256xf32, #tpu.memory_space<vmem>>, vector<1x32x256xf32>,
    } else {
    }
    %c0_i32_23 = arith.constant 0 : i32
    %104 = arith.cmpi eq, %arg1, %c0_i32_23 : i32
    %105 = arith.extui %104 : i1 to i32
    %c0_i32_24 = arith.constant 0 : i32
    %106 = arith.cmpi ne, %105, %c0_i32_24 : i32
    scf.if %106 {
      %c0_25 = arith.constant 0 : index
      %c0_26 = arith.constant 0 : index
      %c0_27 = arith.constant 0 : index
      %107 = vector.load %arg8[%c0_25, %c0_26, %c0_27] : memref<1x32x256xf32, #tpu.memory_space<vmem>>, vector<1x32x256xf32>
      %108 = vector.shape_cast %107 : vector<1x32x256xf32> to vector<32x256xf32>
      %c0_28 = arith.constant 0 : index
      %c0_29 = arith.constant 0 : index
      %109 = vector.load %arg7[%c0_28, %c0_29] : memref<32x1xf32, #tpu.memory_space<vmem>>, vector<32x1xf32>
      %110 = vector.broadcast %109 : vector<32x1xf32> to vector<32x256xf32>
      %111 = arith.addf %108, %110 : vector<32x256xf32>
      %c0_30 = arith.constant 0 : index
      %c0_31 = arith.constant 0 : index
      %c0_32 = arith.constant 0 : index
      %112 = vector.load %arg2[%c0_30, %c0_31, %c0_32] : memref<1x32x256xf32, #tpu.memory_space<vmem>>, vector<1x32x256xf32>
      %113 = vector.shape_cast %112 : vector<1x32x256xf32> to vector<32x256xf32>
      %114 = arith.addf %111, %113 : vector<32x256xf32>
      %c0_33 = arith.constant 0 : index
      %c0_34 = arith.constant 0 : index
      %c0_35 = arith.constant 0 : index
      %115 = vector.load %arg8[%c0_33, %c0_34, %c0_35] : memref<1x32x256xf32, #tpu.memory_space<vmem>>, vector<1x32x256xf32>
      %116 = vector.shape_cast %115 : vector<1x32x256xf32> to vector<32x256xf32>
      %117 = vector.shape_cast %114 : vector<32x256xf32> to vector<1x32x256xf32>
      tpu.vector_store %arg8[%c0_33, %c0_34, %c0_35], %117 {strides = array<i32>} : memref<1x32x256xf32, #tpu.memory_space<vmem>>, vector<1x32x256xf32>,
    } else {
    }
    return
  }
  func.func @transform_0(%arg0: i32, %arg1: i32) -> (i32, i32, i32) {
    %c0_i32 = arith.constant 0 : i32
    %c0_i32_0 = arith.constant 0 : i32
    %c0_i32_1 = arith.constant 0 : i32
    return %arg0, %c0_i32, %c0_i32_0 : i32, i32, i32
  }
  func.func @transform_1(%arg0: i32, %arg1: i32) -> (i32, i32, i32) {
    %c0_i32 = arith.constant 0 : i32
    %c0_i32_0 = arith.constant 0 : i32
    %c0_i32_1 = arith.constant 0 : i32
    return %arg1, %c0_i32, %c0_i32_0 : i32, i32, i32
  }
  func.func @transform_2(%arg0: i32, %arg1: i32) -> (i32, i32, i32) {
    %c0_i32 = arith.constant 0 : i32
    %c0_i32_0 = arith.constant 0 : i32
    %c0_i32_1 = arith.constant 0 : i32
    return %arg1, %c0_i32, %c0_i32_0 : i32, i32, i32
  }
  func.func @transform_3(%arg0: i32, %arg1: i32) -> (i32, i32) {
    %c0_i32 = arith.constant 0 : i32
    %c0_i32_0 = arith.constant 0 : i32
    %c0_i32_1 = arith.constant 0 : i32
    return %c0_i32, %c0_i32_0 : i32, i32
  }
  func.func @transform_4(%arg0: i32, %arg1: i32) -> (i32, i32, i32) {
    %c0_i32 = arith.constant 0 : i32
    %c0_i32_0 = arith.constant 0 : i32
    %c0_i32_1 = arith.constant 0 : i32
    return %arg1, %c0_i32, %c0_i32_0 : i32, i32, i32
  }
  func.func @transform_5(%arg0: i32, %arg1: i32) -> (i32, i32) {
    %c0_i32 = arith.constant 0 : i32
    %c0_i32_0 = arith.constant 0 : i32
    %c0_i32_1 = arith.constant 0 : i32
    return %c0_i32, %c0_i32_0 : i32, i32
  }
  func.func @transform_6(%arg0: i32, %arg1: i32) -> (i32, i32, i32) {
    %c0_i32 = arith.constant 0 : i32
    %c0_i32_0 = arith.constant 0 : i32
    %c0_i32_1 = arith.constant 0 : i32
    return %arg0, %c0_i32, %c0_i32_0 : i32, i32, i32
  }
}

</mosaic_0001>

<llo_original>
// kernel: inverted_residual.1
$region0: #{inverted_residual.1}
  #allocation0 [shape = 'u32[]', space=smem, size = 0x4, offset = 0x4, fixed_abs, tag = 'smem constant byte address 0x4 - core index']
  #allocation1 [shape = 'u32[72,128]{1,0:T(1,128)}', space=vmem, size = 0x9000, scoped, tag = 'internal scratch']
  #allocation2 [shape = 'bf16[32,256]{1,0:T(8,128)(2,1)}', space=vmem, size = 0x4000, scoped, tag = 'scratch operand']
  %s0 = inlined_call_operand.vmem [shape: f32[2,32,256], index: 0, kind: input, shape index: {}]
  %s1 = inlined_call_operand.vmem [shape: bf16[1,128,32], index: 1, kind: input, shape index: {}]
  %s2 = inlined_call_operand.vmem [shape: f32[1,128,11], index: 2, kind: input, shape index: {}]
  %s3 = inlined_call_operand.vmem [shape: f32[8,256], index: 3, kind: input, shape index: {}]
  %s4 = inlined_call_operand.vmem [shape: bf16[1,32,128], index: 4, kind: input, shape index: {}]
  %s5 = inlined_call_operand.vmem [shape: f32[32,1], index: 5, kind: input, shape index: {}]
  %s6 = inlined_call_operand.vmem [shape: f32[2,32,256], index: 6, kind: output, shape index: {}]
  %s7 = sld [smem:[#allocation0]]
  $region73: #{inverted_residual.1} parent=0
    _
  %s9 = ssub.s32 1, %s7
  %s10 = scalar_select 0, %s9, %s7
  loop: start=0, step=1, limit=4
  $region2: #{inverted_residual.1} parent=0 // loop_pre_header
    _
  $region3: #{inverted_residual.1} parent=0 // loop_header
    %s12 = sphi 0, %s16
    %p13 = scmp.ge.s32.totalorder %s12, 4
    %s19 = sphi 0, %s31
    %s20 = sphi 0, %s27
    %s21 = sphi 0, %s19
    %s22 = sphi 0, %s20
    %s23 = sphi 0, %s21
    %s24 = sphi 0, %s22
    %s34 = sphi 0, %s36
    %s37 = sphi 0, %s34
    %s38 = sphi 0, %s37
    %s54 = sphi 0, %s38
    %s60 = sphi 0, %s62
    %s63 = sphi 0, %s60
    %s64 = sphi 0, %s63
    %s80 = sphi 0, %s64
    %s86 = sphi 0, %s88
    %s89 = sphi 0, %s86
    %s90 = sphi 0, %s89
    %s106 = sphi 0, %s90
    %s110 = sphi 0, %s110
    %s112 = sphi 0, %s110
    %s113 = sphi 0, %s112
    %s127 = sphi 0, %s113
    %s133 = sphi 0, %s135
    %s136 = sphi 0, %s133
    %s137 = sphi 0, %s136
    %s153 = sphi 0, %s137
    %s157 = sphi 0, %s157
    %s159 = sphi 0, %s157
    %s160 = sphi 0, %s159
    %s174 = sphi 0, %s160
    %s180 = sphi 0, %s182
    %s183 = sphi 0, %s180
    %s184 = sphi 0, %s183
    %s200 = sphi 0, %s184
  $region4: #{inverted_residual.1} parent=0 // loop_header_branch
    %15 = sbr.rel (%p13) target = $region8
  $region5: #{inverted_residual.1} parent=0 // loop_body
    %s17 = ssub.s32 %s12, 1
    %s18 = ssub.s32 %s12, 2
    %s25 = sadd.s32 1, %s20
    %p26 = scmp.ge.s32.totalorder %s25, 1
    %s27 = scalar_select %p26, 0, %s25
    %s28 = sadd.s32 1, %s19
    %s29 = scalar_select %p26, %s28, %s19
    %p30 = scmp.ge.s32.totalorder %s29, 2
    %s31 = scalar_select %p30, 0, %s29
    %s32 = ssub.s32 %s19, %s31
    %p33 = scmp.eq.s32.totalorder %s32, 0
    %s35 = sadd.s32 %s34, 1
    %s36 = scalar_select %p33, %s34, %s35
    %p39 = pneg %p33
    %p40 = scmp.eq.s32.totalorder %s12, 1
    %p41 = por %p39, %p40
    %p42 = scmp.ne.s32.totalorder %s34, %s37
    %p43 = scmp.eq.s32.totalorder %s12, 0
    %p44 = por %p42, %p43
    %p45 = scmp.ne.s32.totalorder %s34, %s37
    %p46 = scmp.eq.s32.totalorder %s17, 1
    %p47 = por %p45, %p46
    %p48 = scmp.ne.s32.totalorder %s37, %s38
    %p49 = scmp.eq.s32.totalorder %s17, 0
    %p50 = por %p48, %p49
    %p51 = scmp.ne.s32.totalorder %s37, %s38
    %p52 = scmp.eq.s32.totalorder %s18, 1
    %p53 = por %p51, %p52
    %p55 = scmp.ne.s32.totalorder %s38, %s54
    %p56 = scmp.eq.s32.totalorder %s18, 0
    %p57 = por %p55, %p56
    %s58 = ssub.s32 %s20, %s27
    %p59 = scmp.eq.s32.totalorder %s58, 0
    %s61 = sadd.s32 %s60, 1
    %s62 = scalar_select %p59, %s60, %s61
    %p65 = pneg %p59
    %p66 = scmp.eq.s32.totalorder %s12, 1
    %p67 = por %p65, %p66
    %p68 = scmp.ne.s32.totalorder %s60, %s63
    %p69 = scmp.eq.s32.totalorder %s12, 0
    %p70 = por %p68, %p69
    %p71 = scmp.ne.s32.totalorder %s60, %s63
    %p72 = scmp.eq.s32.totalorder %s17, 1
    %p73 = por %p71, %p72
    %p74 = scmp.ne.s32.totalorder %s63, %s64
    %p75 = scmp.eq.s32.totalorder %s17, 0
    %p76 = por %p74, %p75
    %p77 = scmp.ne.s32.totalorder %s63, %s64
    %p78 = scmp.eq.s32.totalorder %s18, 1
    %p79 = por %p77, %p78
    %p81 = scmp.ne.s32.totalorder %s64, %s80
    %p82 = scmp.eq.s32.totalorder %s18, 0
    %p83 = por %p81, %p82
    %s84 = ssub.s32 %s20, %s27
    %p85 = scmp.eq.s32.totalorder %s84, 0
    %s87 = sadd.s32 %s86, 1
    %s88 = scalar_select %p85, %s86, %s87
    %p91 = pneg %p85
    %p92 = scmp.eq.s32.totalorder %s12, 1
    %p93 = por %p91, %p92
    %p94 = scmp.ne.s32.totalorder %s86, %s89
    %p95 = scmp.eq.s32.totalorder %s12, 0
    %p96 = por %p94, %p95
    %p97 = scmp.ne.s32.totalorder %s86, %s89
    %p98 = scmp.eq.s32.totalorder %s17, 1
    %p99 = por %p97, %p98
    %p100 = scmp.ne.s32.totalorder %s89, %s90
    %p101 = scmp.eq.s32.totalorder %s17, 0
    %p102 = por %p100, %p101
    %p103 = scmp.ne.s32.totalorder %s89, %s90
    %p104 = scmp.eq.s32.totalorder %s18, 1
    %p105 = por %p103, %p104
    %p107 = scmp.ne.s32.totalorder %s90, %s106
    %p108 = scmp.eq.s32.totalorder %s18, 0
    %p109 = por %p107, %p108
    %s111 = sadd.s32 %s110, 1
    %p114 = scmp.eq.s32.totalorder %s12, 1
    %p115 = scmp.ne.s32.totalorder %s110, %s112
    %p116 = scmp.eq.s32.totalorder %s12, 0
    %p117 = por %p115, %p116
    %p118 = scmp.ne.s32.totalorder %s110, %s112
    %p119 = scmp.eq.s32.totalorder %s17, 1
    %p120 = por %p118, %p119
    %p121 = scmp.ne.s32.totalorder %s112, %s113
    %p122 = scmp.eq.s32.totalorder %s17, 0
    %p123 = por %p121, %p122
    %p124 = scmp.ne.s32.totalorder %s112, %s113
    %p125 = scmp.eq.s32.totalorder %s18, 1
    %p126 = por %p124, %p125
    %p128 = scmp.ne.s32.totalorder %s113, %s127
    %p129 = scmp.eq.s32.totalorder %s18, 0
    %p130 = por %p128, %p129
    %s131 = ssub.s32 %s20, %s27
    %p132 = scmp.eq.s32.totalorder %s131, 0
    %s134 = sadd.s32 %s133, 1
    %s135 = scalar_select %p132, %s133, %s134
    %p138 = pneg %p132
    %p139 = scmp.eq.s32.totalorder %s12, 1
    %p140 = por %p138, %p139
    %p141 = scmp.ne.s32.totalorder %s133, %s136
    %p142 = scmp.eq.s32.totalorder %s12, 0
    %p143 = por %p141, %p142
    %p144 = scmp.ne.s32.totalorder %s133, %s136
    %p145 = scmp.eq.s32.totalorder %s17, 1
    %p146 = por %p144, %p145
    %p147 = scmp.ne.s32.totalorder %s136, %s137
    %p148 = scmp.eq.s32.totalorder %s17, 0
    %p149 = por %p147, %p148
    %p150 = scmp.ne.s32.totalorder %s136, %s137
    %p151 = scmp.eq.s32.totalorder %s18, 1
    %p152 = por %p150, %p151
    %p154 = scmp.ne.s32.totalorder %s137, %s153
    %p155 = scmp.eq.s32.totalorder %s18, 0
    %p156 = por %p154, %p155
    %s158 = sadd.s32 %s157, 1
    %p161 = scmp.eq.s32.totalorder %s12, 1
    %p162 = scmp.ne.s32.totalorder %s157, %s159
    %p163 = scmp.eq.s32.totalorder %s12, 0
    %p164 = por %p162, %p163
    %p165 = scmp.ne.s32.totalorder %s157, %s159
    %p166 = scmp.eq.s32.totalorder %s17, 1
    %p167 = por %p165, %p166
    %p168 = scmp.ne.s32.totalorder %s159, %s160
    %p169 = scmp.eq.s32.totalorder %s17, 0
    %p170 = por %p168, %p169
    %p171 = scmp.ne.s32.totalorder %s159, %s160
    %p172 = scmp.eq.s32.totalorder %s18, 1
    %p173 = por %p171, %p172
    %p175 = scmp.ne.s32.totalorder %s160, %s174
    %p176 = scmp.eq.s32.totalorder %s18, 0
    %p177 = por %p175, %p176
    %s178 = ssub.s32 %s19, %s31
    %p179 = scmp.eq.s32.totalorder %s178, 0
    %s181 = sadd.s32 %s180, 1
    %s182 = scalar_select %p179, %s180, %s181
    %p185 = pneg %p179
    %p186 = scmp.eq.s32.totalorder %s12, 1
    %p187 = por %p185, %p186
    %p188 = scmp.ne.s32.totalorder %s180, %s183
    %p189 = scmp.eq.s32.totalorder %s12, 0
    %p190 = por %p188, %p189
    %p191 = scmp.ne.s32.totalorder %s180, %s183
    %p192 = scmp.eq.s32.totalorder %s17, 1
    %p193 = por %p191, %p192
    %p194 = scmp.ne.s32.totalorder %s183, %s184
    %p195 = scmp.eq.s32.totalorder %s17, 0
    %p196 = por %p194, %p195
    %p197 = scmp.ne.s32.totalorder %s183, %s184
    %p198 = scmp.eq.s32.totalorder %s18, 1
    %p199 = por %p197, %p198
    %p201 = scmp.ne.s32.totalorder %s184, %s200
    %p202 = scmp.eq.s32.totalorder %s18, 0
    %p203 = por %p201, %p202
    %p204 = scmp.le.s32.totalorder 1, %s12
    %p205 = scmp.lt.s32.totalorder %s12, 3
    %p206 = pnand %p204, %p205
    %p207 = pneg %p206
    // Predicated region
    $region9: #{inverted_residual.1} parent=5 // pred_check
      _
    $region10: #{inverted_residual.1} parent=5 // pred_check_branch
      %209 = sbr.rel (%p206) target = $region12
    $region11: #{inverted_residual.1} parent=5 // pred_region
      %s210 = ssub.s32 %s12, 1
      // Predicated region
      $region13: #{inverted_residual.1} parent=11 // pred_check
        %p211 = pneg %p76
      $region14: #{inverted_residual.1} parent=11 // pred_check_branch
        %213 = sbr.rel (%p211) target = $region16
      $region15: #{inverted_residual.1} parent=11 // pred_region
        %p214 = scmp.lt.s32.totalorder %s22, 0
        %s215 = scalar_select %p214, %s22, 0
        %s216 = smul.addr %s215, 16
        %s217 = smul.addr %s216, 4
        %s218 = scalar_lea.vmem %s1, %s217
      $region16: #{inverted_residual.1} parent=11 // pred_fallthru
        _
      // Predicated region
      $region17: #{inverted_residual.1} parent=11 // pred_check
        %p219 = pneg %p102
      $region18: #{inverted_residual.1} parent=11 // pred_check_branch
        %221 = sbr.rel (%p219) target = $region20
      $region19: #{inverted_residual.1} parent=11 // pred_region
        %p222 = scmp.lt.s32.totalorder %s22, 0
        %s223 = scalar_select %p222, %s22, 0
        %s224 = smul.addr %s223, 16
        %s225 = smul.addr %s224, 8
        %s226 = scalar_lea.vmem %s2, %s225
      $region20: #{inverted_residual.1} parent=11 // pred_fallthru
        _
      // Predicated region
      $region21: #{inverted_residual.1} parent=11 // pred_check
        %p227 = pneg %p123
      $region22: #{inverted_residual.1} parent=11 // pred_check_branch
        %229 = sbr.rel (%p227) target = $region24
      $region23: #{inverted_residual.1} parent=11 // pred_region
        _
      $region24: #{inverted_residual.1} parent=11 // pred_fallthru
        _
      // Predicated region
      $region25: #{inverted_residual.1} parent=11 // pred_check
        %p230 = pneg %p149
      $region26: #{inverted_residual.1} parent=11 // pred_check_branch
        %232 = sbr.rel (%p230) target = $region28
      $region27: #{inverted_residual.1} parent=11 // pred_region
        %p233 = scmp.lt.s32.totalorder %s22, 0
        %s234 = scalar_select %p233, %s22, 0
        %s235 = smul.addr %s234, 4
        %s236 = smul.addr %s235, 4
        %s237 = scalar_lea.vmem %s4, %s236
      $region28: #{inverted_residual.1} parent=11 // pred_fallthru
        _
      // Predicated region
      $region29: #{inverted_residual.1} parent=11 // pred_check
        %p238 = pneg %p170
      $region30: #{inverted_residual.1} parent=11 // pred_check_branch
        %240 = sbr.rel (%p238) target = $region32
      $region31: #{inverted_residual.1} parent=11 // pred_region
        _
      $region32: #{inverted_residual.1} parent=11 // pred_fallthru
        _
    $region12: #{inverted_residual.1} parent=5 // pred_fallthru
      _
    %p241 = scmp.lt.s32.totalorder %s12, 2
    // Predicated region
    $region33: #{inverted_residual.1} parent=5 // pred_check
      %p242 = pneg %p241
    $region34: #{inverted_residual.1} parent=5 // pred_check_branch
      %244 = sbr.rel (%p242) target = $region36
    $region35: #{inverted_residual.1} parent=5 // pred_region
      // Predicated region
      $region37: #{inverted_residual.1} parent=35 // pred_check
        %p245 = pneg %p44
      $region38: #{inverted_residual.1} parent=35 // pred_check_branch
        %247 = sbr.rel (%p245) target = $region40
      $region39: #{inverted_residual.1} parent=35 // pred_region
        %p248 = scmp.lt.s32.totalorder %s19, 1
        %s249 = scalar_select %p248, %s19, 1
        %s250 = smul.addr %s249, 8
        %s251 = smul.addr %s250, 8
        %s252 = scalar_lea.vmem %s0, %s251
      $region40: #{inverted_residual.1} parent=35 // pred_fallthru
        _
    $region36: #{inverted_residual.1} parent=5 // pred_fallthru
      _
    %p253 = scmp.le.s32.totalorder 1, %s12
    %p254 = scmp.lt.s32.totalorder %s12, 3
    %p255 = pnand %p253, %p254
    %p256 = pneg %p255
    // Predicated region
    $region41: #{inverted_residual.1} parent=5 // pred_check
      _
    $region42: #{inverted_residual.1} parent=5 // pred_check_branch
      %258 = sbr.rel (%p255) target = $region44
    $region43: #{inverted_residual.1} parent=5 // pred_region
      %s259 = ssub.s32 %s12, 1
      %p260 = scmp.lt.s32.totalorder %s21, 1
      %s261 = scalar_select %p260, %s21, 1
      %s262 = smul.addr %s261, 8
      %s263 = smul.addr %s262, 8
      %s264 = scalar_lea.vmem %s0, %s263
      %p265 = pneg %p50
      %p266 = pneg %p47
      %p267 = scmp.lt.s32.totalorder %s22, 0
      %s268 = scalar_select %p267, %s22, 0
      %s269 = smul.addr %s268, 16
      %s270 = smul.addr %s269, 4
      %s271 = scalar_lea.vmem %s1, %s270
      %p272 = pneg %p76
      %p273 = pneg %p73
      %p274 = scmp.lt.s32.totalorder %s22, 0
      %s275 = scalar_select %p274, %s22, 0
      %s276 = smul.addr %s275, 16
      %s277 = smul.addr %s276, 8
      %s278 = scalar_lea.vmem %s2, %s277
      %p279 = pneg %p102
      %p280 = pneg %p99
      %p281 = pneg %p123
      %p282 = pneg %p120
      %p283 = scmp.lt.s32.totalorder %s22, 0
      %s284 = scalar_select %p283, %s22, 0
      %s285 = smul.addr %s284, 4
      %s286 = smul.addr %s285, 4
      %s287 = scalar_lea.vmem %s4, %s286
      %p288 = pneg %p149
      %p289 = pneg %p146
      %p290 = pneg %p170
      %p291 = pneg %p167
      %p292 = pneg %p196
      %p293 = pneg %p193
      %p294 = scmp.lt.s32.totalorder %s21, 1
      %s295 = scalar_select %p294, %s21, 1
      %s296 = smul.addr %s295, 8
      %s297 = smul.addr %s296, 8
      %s298 = scalar_lea.vmem %s6, %s297
      %p299 = scmp.lt.s32.totalorder %s21, 1
      %s300 = scalar_select %p299, %s21, 1
      %s301 = smul.addr %s300, 8
      %s302 = smul.addr %s301, 8
      %s303 = scalar_lea.vmem %s0, %s302
      %p304 = scmp.lt.s32.totalorder %s22, 0
      %s305 = scalar_select %p304, %s22, 0
      %s306 = smul.addr %s305, 16
      %s307 = smul.addr %s306, 4
      %s308 = scalar_lea.vmem %s1, %s307
      %p309 = scmp.lt.s32.totalorder %s22, 0
      %s310 = scalar_select %p309, %s22, 0
      %s311 = smul.addr %s310, 16
      %s312 = smul.addr %s311, 8
      %s313 = scalar_lea.vmem %s2, %s312
      %p314 = scmp.lt.s32.totalorder %s22, 0
      %s315 = scalar_select %p314, %s22, 0
      %s316 = smul.addr %s315, 4
      %s317 = smul.addr %s316, 4
      %s318 = scalar_lea.vmem %s4, %s317
      %p319 = scmp.lt.s32.totalorder %s21, 1
      %s320 = scalar_select %p319, %s21, 1
      %s321 = smul.addr %s320, 8
      %s322 = smul.addr %s321, 8
      %s323 = scalar_lea.vmem %s6, %s322
      %p325 = scmp.eq.s32.totalorder %s22, 0
      // Predicated region
      $region45: #{inverted_residual.1} parent=43 // pred_check
        %p326 = pneg %p325
      $region46: #{inverted_residual.1} parent=43 // pred_check_branch
        %328 = sbr.rel (%p326) target = $region48
      $region47: #{inverted_residual.1} parent=43 // pred_region
        %v329 = vld [vmem:[%s303] sm:$0xff]
        %v330 = vld [vmem:[%s303 + $0x8] sm:$0xff]
        %v331 = vld [vmem:[%s303 + $0x10] sm:$0xff]
        %v332 = vld [vmem:[%s303 + $0x18] sm:$0xff]
        %v333 = vld [vmem:[%s303 + $0x20] sm:$0xff]
        %v334 = vld [vmem:[%s303 + $0x28] sm:$0xff]
        %v335 = vld [vmem:[%s303 + $0x30] sm:$0xff]
        %v336 = vld [vmem:[%s303 + $0x38] sm:$0xff]
        %v337 = vpack.c.bf16 %v330, %v329
        %v338 = vpack.c.bf16 %v332, %v331
        %v339 = vpack.c.bf16 %v334, %v333
        %v340 = vpack.c.bf16 %v336, %v335
        %341 = vst [vmem:[#allocation2] sm:$0xff] %v337
        %342 = vst [vmem:[#allocation2 + $0x8] sm:$0xff] %v338
        %343 = vst [vmem:[#allocation2 + $0x10] sm:$0xff] %v339
        %344 = vst [vmem:[#allocation2 + $0x18] sm:$0xff] %v340
      $region48: #{inverted_residual.1} parent=43 // pred_fallthru
        _
      %v345 = vld [vmem:[%s313] sm:$0xff]
      %v346 = vld [vmem:[%s313 + $0x8] sm:$0xff]
      %v347 = vld [vmem:[%s313 + $0x10] sm:$0xff]
      %v348 = vld [vmem:[%s313 + $0x18] sm:$0xff]
      %v349 = vld [vmem:[%s313 + $0x20] sm:$0xff]
      %v350 = vld [vmem:[%s313 + $0x28] sm:$0xff]
      %v351 = vld [vmem:[%s313 + $0x30] sm:$0xff]
      %v352 = vld [vmem:[%s313 + $0x38] sm:$0xff]
      %v353 = vld [vmem:[%s313 + $0x40] sm:$0xff]
      %v354 = vld [vmem:[%s313 + $0x48] sm:$0xff]
      %v355 = vld [vmem:[%s313 + $0x50] sm:$0xff]
      %v356 = vld [vmem:[%s313 + $0x58] sm:$0xff]
      %v357 = vld [vmem:[%s313 + $0x60] sm:$0xff]
      %v358 = vld [vmem:[%s313 + $0x68] sm:$0xff]
      %v359 = vld [vmem:[%s313 + $0x70] sm:$0xff]
      %v360 = vld [vmem:[%s313 + $0x78] sm:$0xff]
      %v361 = vld [vmem:[%s308] sm:$0xf]
      %v362 = vld [vmem:[%s308 + $0x4] sm:$0xf]
      %v363 = vld [vmem:[%s308 + $0x8] sm:$0xf]
      %v364 = vld [vmem:[%s308 + $0xc] sm:$0xf]
      %v365 = vld [vmem:[%s308 + $0x10] sm:$0xf]
      %v366 = vld [vmem:[%s308 + $0x14] sm:$0xf]
      %v367 = vld [vmem:[%s308 + $0x18] sm:$0xf]
      %v368 = vld [vmem:[%s308 + $0x1c] sm:$0xf]
      %v369 = vld [vmem:[%s308 + $0x20] sm:$0xf]
      %v370 = vld [vmem:[%s308 + $0x24] sm:$0xf]
      %v371 = vld [vmem:[%s308 + $0x28] sm:$0xf]
      %v372 = vld [vmem:[%s308 + $0x2c] sm:$0xf]
      %v373 = vld [vmem:[%s308 + $0x30] sm:$0xf]
      %v374 = vld [vmem:[%s308 + $0x34] sm:$0xf]
      %v375 = vld [vmem:[%s308 + $0x38] sm:$0xf]
      %v376 = vld [vmem:[%s308 + $0x3c] sm:$0xf]
      %v377 = vld [vmem:[#allocation2] sm:$0xff]
      %v378 = vld [vmem:[#allocation2 + $0x8] sm:$0xff]
      %v379 = vld [vmem:[#allocation2 + $0x10] sm:$0xff]
      %v380 = vld [vmem:[#allocation2 + $0x18] sm:$0xff]
      %382 = vset.pattern.permute.xlu0 9
      %383 = vperm.xlu0 %382, %v345
      %v384 = vpop.permute.xlu0 %383
      %387 = vset.pattern.permute.xlu0 9
      %388 = vperm.xlu0 %387, %v346
      %v389 = vpop.permute.xlu0 %388
      %392 = vset.pattern.permute.xlu0 9
      %393 = vperm.xlu0 %392, %v347
      %v394 = vpop.permute.xlu0 %393
      %397 = vset.pattern.permute.xlu0 9
      %398 = vperm.xlu0 %397, %v348
      %v399 = vpop.permute.xlu0 %398
      %402 = vset.pattern.permute.xlu0 9
      %403 = vperm.xlu0 %402, %v349
      %v404 = vpop.permute.xlu0 %403
      %407 = vset.pattern.permute.xlu0 9
      %408 = vperm.xlu0 %407, %v350
      %v409 = vpop.permute.xlu0 %408
      %412 = vset.pattern.permute.xlu0 9
      %413 = vperm.xlu0 %412, %v351
      %v414 = vpop.permute.xlu0 %413
      %417 = vset.pattern.permute.xlu0 9
      %418 = vperm.xlu0 %417, %v352
      %v419 = vpop.permute.xlu0 %418
      %422 = vset.pattern.permute.xlu0 9
      %423 = vperm.xlu0 %422, %v353
      %v424 = vpop.permute.xlu0 %423
      %427 = vset.pattern.permute.xlu0 9
      %428 = vperm.xlu0 %427, %v354
      %v429 = vpop.permute.xlu0 %428
      %432 = vset.pattern.permute.xlu0 9
      %433 = vperm.xlu0 %432, %v355
      %v434 = vpop.permute.xlu0 %433
      %437 = vset.pattern.permute.xlu0 9
      %438 = vperm.xlu0 %437, %v356
      %v439 = vpop.permute.xlu0 %438
      %442 = vset.pattern.permute.xlu0 9
      %443 = vperm.xlu0 %442, %v357
      %v444 = vpop.permute.xlu0 %443
      %447 = vset.pattern.permute.xlu0 9
      %448 = vperm.xlu0 %447, %v358
      %v449 = vpop.permute.xlu0 %448
      %452 = vset.pattern.permute.xlu0 9
      %453 = vperm.xlu0 %452, %v359
      %v454 = vpop.permute.xlu0 %453
      %457 = vset.pattern.permute.xlu0 9
      %458 = vperm.xlu0 %457, %v360
      %v459 = vpop.permute.xlu0 %458
      %v477 = vunpack.c.l.b16 %v361
      %v478 = vunpack.c.l.b16 %v362
      %v479 = vunpack.c.l.b16 %v363
      %v480 = vunpack.c.l.b16 %v364
      %v481 = vunpack.c.l.b16 %v365
      %v482 = vunpack.c.l.b16 %v366
      %v483 = vunpack.c.l.b16 %v367
      %v484 = vunpack.c.l.b16 %v368
      %v485 = vunpack.c.l.b16 %v369
      %v486 = vunpack.c.l.b16 %v370
      %v487 = vunpack.c.l.b16 %v371
      %v488 = vunpack.c.l.b16 %v372
      %v489 = vunpack.c.l.b16 %v373
      %v490 = vunpack.c.l.b16 %v374
      %v491 = vunpack.c.l.b16 %v375
      %v492 = vunpack.c.l.b16 %v376
      %v493 = vpack.c.b16 %v478, %v477
      %v494 = vpack.c.b16 %v480, %v479
      %v495 = vpack.c.b16 %v482, %v481
      %v496 = vpack.c.b16 %v484, %v483
      %v497 = vpack.c.b16 %v486, %v485
      %v498 = vpack.c.b16 %v488, %v487
      %v499 = vpack.c.b16 %v490, %v489
      %v500 = vpack.c.b16 %v492, %v491
      %v505 = vunpack.c.l.b16 %v377
      %v506 = vunpack.c.h.b16 %v377
      %v507 = vunpack.c.l.b16 %v378
      %v508 = vunpack.c.h.b16 %v378
      %v509 = vunpack.c.l.b16 %v379
      %v510 = vunpack.c.h.b16 %v379
      %v511 = vunpack.c.l.b16 %v380
      %v512 = vunpack.c.h.b16 %v380
      %v513 = vpack.c.b16 %v507, %v505
      %v514 = vpack.c.b16 %v508, %v506
      %v515 = vpack.c.b16 %v511, %v509
      %v516 = vpack.c.b16 %v512, %v510
      %vm521 = vcmask 261120
      %v523 = vsel %vm521, %v493, 0
      %v526 = vsel %vm521, %v494, 0
      %v529 = vsel %vm521, %v495, 0
      %v532 = vsel %vm521, %v496, 0
      %v535 = vsel %vm521, %v497, 0
      %v538 = vsel %vm521, %v498, 0
      %v541 = vsel %vm521, %v499, 0
      %v544 = vsel %vm521, %v500, 0
      %546 = vmatpush.bf16.msra.mxu0 0
      %547 = vmatpush.bf16.msra.mxu0 0
      %548 = vmatpush.bf16.msra.mxu0 0
      %549 = vmatpush.bf16.msra.mxu0 0
      %550 = vmatpush.bf16.msra.mxu0 0
      %551 = vmatpush.bf16.msra.mxu0 0
      %552 = vmatpush.bf16.msra.mxu0 %v515
      %553 = vmatpush.bf16.msra.mxu0 %v513
      %554 = vmatmul.bf16.gmra.mxu0 %v523
      %v555 = vpop.f32.mrf.mxu0
      %v556 = vadd.f32 %v384, %v555
      %v557 = vpop.f32.mrf.mxu0
      %v558 = vadd.f32 %v389, %v557
      %559 = vmatmul.bf16.gmra.mxu0 %v526
      %v560 = vpop.f32.mrf.mxu0
      %v561 = vadd.f32 %v394, %v560
      %v562 = vpop.f32.mrf.mxu0
      %v563 = vadd.f32 %v399, %v562
      %564 = vmatmul.bf16.gmra.mxu0 %v529
      %v565 = vpop.f32.mrf.mxu0
      %v566 = vadd.f32 %v404, %v565
      %v567 = vpop.f32.mrf.mxu0
      %v568 = vadd.f32 %v409, %v567
      %569 = vmatmul.bf16.gmra.mxu0 %v532
      %v570 = vpop.f32.mrf.mxu0
      %v571 = vadd.f32 %v414, %v570
      %v572 = vpop.f32.mrf.mxu0
      %v573 = vadd.f32 %v419, %v572
      %574 = vmatmul.bf16.gmra.mxu0 %v535
      %v575 = vpop.f32.mrf.mxu0
      %v576 = vadd.f32 %v424, %v575
      %v577 = vpop.f32.mrf.mxu0
      %v578 = vadd.f32 %v429, %v577
      %579 = vmatmul.bf16.gmra.mxu0 %v538
      %v580 = vpop.f32.mrf.mxu0
      %v581 = vadd.f32 %v434, %v580
      %v582 = vpop.f32.mrf.mxu0
      %v583 = vadd.f32 %v439, %v582
      %584 = vmatmul.bf16.gmra.mxu0 %v541
      %v585 = vpop.f32.mrf.mxu0
      %v586 = vadd.f32 %v444, %v585
      %v587 = vpop.f32.mrf.mxu0
      %v588 = vadd.f32 %v449, %v587
      %589 = vmatmul.bf16.gmra.mxu0 %v544
      %v590 = vpop.f32.mrf.mxu0
      %v591 = vadd.f32 %v454, %v590
      %v592 = vpop.f32.mrf.mxu0
      %v593 = vadd.f32 %v459, %v592
      %594 = vdwg.mxu0
      %595 = vmatpush.bf16.msra.mxu0 0
      %596 = vmatpush.bf16.msra.mxu0 0
      %597 = vmatpush.bf16.msra.mxu0 0
      %598 = vmatpush.bf16.msra.mxu0 0
      %599 = vmatpush.bf16.msra.mxu0 0
      %600 = vmatpush.bf16.msra.mxu0 0
      %601 = vmatpush.bf16.msra.mxu0 %v516
      %602 = vmatpush.bf16.msra.mxu0 %v514
      %603 = vmatmul.bf16.gmra.mxu0 %v523
      %v604 = vpop.f32.mrf.mxu0
      %v605 = vadd.f32 %v384, %v604
      %v606 = vpop.f32.mrf.mxu0
      %v607 = vadd.f32 %v389, %v606
      %608 = vmatmul.bf16.gmra.mxu0 %v526
      %v609 = vpop.f32.mrf.mxu0
      %v610 = vadd.f32 %v394, %v609
      %v611 = vpop.f32.mrf.mxu0
      %v612 = vadd.f32 %v399, %v611
      %613 = vmatmul.bf16.gmra.mxu0 %v529
      %v614 = vpop.f32.mrf.mxu0
      %v615 = vadd.f32 %v404, %v614
      %v616 = vpop.f32.mrf.mxu0
      %v617 = vadd.f32 %v409, %v616
      %618 = vmatmul.bf16.gmra.mxu0 %v532
      %v619 = vpop.f32.mrf.mxu0
      %v620 = vadd.f32 %v414, %v619
      %v621 = vpop.f32.mrf.mxu0
      %v622 = vadd.f32 %v419, %v621
      %623 = vmatmul.bf16.gmra.mxu0 %v535
      %v624 = vpop.f32.mrf.mxu0
      %v625 = vadd.f32 %v424, %v624
      %v626 = vpop.f32.mrf.mxu0
      %v627 = vadd.f32 %v429, %v626
      %628 = vmatmul.bf16.gmra.mxu0 %v538
      %v629 = vpop.f32.mrf.mxu0
      %v630 = vadd.f32 %v434, %v629
      %v631 = vpop.f32.mrf.mxu0
      %v632 = vadd.f32 %v439, %v631
      %633 = vmatmul.bf16.gmra.mxu0 %v541
      %v634 = vpop.f32.mrf.mxu0
      %v635 = vadd.f32 %v444, %v634
      %v636 = vpop.f32.mrf.mxu0
      %v637 = vadd.f32 %v449, %v636
      %638 = vmatmul.bf16.gmra.mxu0 %v544
      %v639 = vpop.f32.mrf.mxu0
      %v640 = vadd.f32 %v454, %v639
      %v641 = vpop.f32.mrf.mxu0
      %v642 = vadd.f32 %v459, %v641
      %643 = vdwg.mxu0
      %v644 = vmax.f32 %v556, 0.0
      %v645 = vmax.f32 %v605, 0.0
      %v646 = vmax.f32 %v558, 0.0
      %v647 = vmax.f32 %v607, 0.0
      %v648 = vmax.f32 %v561, 0.0
      %v649 = vmax.f32 %v610, 0.0
      %v650 = vmax.f32 %v563, 0.0
      %v651 = vmax.f32 %v612, 0.0
      %v652 = vmax.f32 %v566, 0.0
      %v653 = vmax.f32 %v615, 0.0
      %v654 = vmax.f32 %v568, 0.0
      %v655 = vmax.f32 %v617, 0.0
      %v656 = vmax.f32 %v571, 0.0
      %v657 = vmax.f32 %v620, 0.0
      %v658 = vmax.f32 %v573, 0.0
      %v659 = vmax.f32 %v622, 0.0
      %v660 = vmax.f32 %v576, 0.0
      %v661 = vmax.f32 %v625, 0.0
      %v662 = vmax.f32 %v578, 0.0
      %v663 = vmax.f32 %v627, 0.0
      %v664 = vmax.f32 %v581, 0.0
      %v665 = vmax.f32 %v630, 0.0
      %v666 = vmax.f32 %v583, 0.0
      %v667 = vmax.f32 %v632, 0.0
      %v668 = vmax.f32 %v586, 0.0
      %v669 = vmax.f32 %v635, 0.0
      %v670 = vmax.f32 %v588, 0.0
      %v671 = vmax.f32 %v637, 0.0
      %v672 = vmax.f32 %v591, 0.0
      %v673 = vmax.f32 %v640, 0.0
      %v674 = vmax.f32 %v593, 0.0
      %v675 = vmax.f32 %v642, 0.0
      %v676 = vmin.f32 %v644, 6.0
      %v677 = vmin.f32 %v645, 6.0
      %v678 = vmin.f32 %v646, 6.0
      %v679 = vmin.f32 %v647, 6.0
      %v680 = vmin.f32 %v648, 6.0
      %v681 = vmin.f32 %v649, 6.0
      %v682 = vmin.f32 %v650, 6.0
      %v683 = vmin.f32 %v651, 6.0
      %v684 = vmin.f32 %v652, 6.0
      %v685 = vmin.f32 %v653, 6.0
      %v686 = vmin.f32 %v654, 6.0
      %v687 = vmin.f32 %v655, 6.0
      %v688 = vmin.f32 %v656, 6.0
      %v689 = vmin.f32 %v657, 6.0
      %v690 = vmin.f32 %v658, 6.0
      %v691 = vmin.f32 %v659, 6.0
      %v692 = vmin.f32 %v660, 6.0
      %v693 = vmin.f32 %v661, 6.0
      %v694 = vmin.f32 %v662, 6.0
      %v695 = vmin.f32 %v663, 6.0
      %v696 = vmin.f32 %v664, 6.0
      %v697 = vmin.f32 %v665, 6.0
      %v698 = vmin.f32 %v666, 6.0
      %v699 = vmin.f32 %v667, 6.0
      %v700 = vmin.f32 %v668, 6.0
      %v701 = vmin.f32 %v669, 6.0
      %v702 = vmin.f32 %v670, 6.0
      %v703 = vmin.f32 %v671, 6.0
      %v704 = vmin.f32 %v672, 6.0
      %v705 = vmin.f32 %v673, 6.0
      %v706 = vmin.f32 %v674, 6.0
      %v707 = vmin.f32 %v675, 6.0
      %v708 = vld [vmem:[%s3] sm:$0xff]
      %v709 = vld [vmem:[%s3 + $0x8] sm:$0xff]
      %710 = vrot.lane.b32.xlu0 %v676, 17
      %v711 = vpop.permute.xlu0 %710
      %712 = vrot.lane.b32.xlu0 %v678, 17
      %v713 = vpop.permute.xlu0 %712
      %714 = vrot.lane.b32.xlu0 %v680, 17
      %v715 = vpop.permute.xlu0 %714
      %716 = vrot.lane.b32.xlu0 %v682, 17
      %v717 = vpop.permute.xlu0 %716
      %718 = vrot.lane.b32.xlu0 %v684, 17
      %v719 = vpop.permute.xlu0 %718
      %720 = vrot.lane.b32.xlu0 %v686, 17
      %v721 = vpop.permute.xlu0 %720
      %722 = vrot.lane.b32.xlu0 %v688, 17
      %v723 = vpop.permute.xlu0 %722
      %724 = vrot.lane.b32.xlu0 %v690, 17
      %v725 = vpop.permute.xlu0 %724
      %726 = vrot.lane.b32.xlu0 %v692, 17
      %v727 = vpop.permute.xlu0 %726
      %728 = vrot.lane.b32.xlu0 %v694, 17
      %v729 = vpop.permute.xlu0 %728
      %730 = vrot.lane.b32.xlu0 %v696, 17
      %v731 = vpop.permute.xlu0 %730
      %732 = vrot.lane.b32.xlu0 %v698, 17
      %v733 = vpop.permute.xlu0 %732
      %734 = vrot.lane.b32.xlu0 %v700, 17
      %v735 = vpop.permute.xlu0 %734
      %736 = vrot.lane.b32.xlu0 %v702, 17
      %v737 = vpop.permute.xlu0 %736
      %738 = vrot.lane.b32.xlu0 %v704, 17
      %v739 = vpop.permute.xlu0 %738
      %740 = vrot.lane.b32.xlu0 %v706, 17
      %v741 = vpop.permute.xlu0 %740
      %742 = vrot.lane.b32.xlu0 %v677, 17
      %v743 = vpop.permute.xlu0 %742
      %744 = vrot.lane.b32.xlu0 %v679, 17
      %v745 = vpop.permute.xlu0 %744
      %746 = vrot.lane.b32.xlu0 %v681, 17
      %v747 = vpop.permute.xlu0 %746
      %748 = vrot.lane.b32.xlu0 %v683, 17
      %v749 = vpop.permute.xlu0 %748
      %750 = vrot.lane.b32.xlu0 %v685, 17
      %v751 = vpop.permute.xlu0 %750
      %752 = vrot.lane.b32.xlu0 %v687, 17
      %v753 = vpop.permute.xlu0 %752
      %754 = vrot.lane.b32.xlu0 %v689, 17
      %v755 = vpop.permute.xlu0 %754
      %756 = vrot.lane.b32.xlu0 %v691, 17
      %v757 = vpop.permute.xlu0 %756
      %758 = vrot.lane.b32.xlu0 %v693, 17
      %v759 = vpop.permute.xlu0 %758
      %760 = vrot.lane.b32.xlu0 %v695, 17
      %v761 = vpop.permute.xlu0 %760
      %762 = vrot.lane.b32.xlu0 %v697, 17
      %v763 = vpop.permute.xlu0 %762
      %764 = vrot.lane.b32.xlu0 %v699, 17
      %v765 = vpop.permute.xlu0 %764
      %766 = vrot.lane.b32.xlu0 %v701, 17
      %v767 = vpop.permute.xlu0 %766
      %768 = vrot.lane.b32.xlu0 %v703, 17
      %v769 = vpop.permute.xlu0 %768
      %770 = vrot.lane.b32.xlu0 %v705, 17
      %v771 = vpop.permute.xlu0 %770
      %772 = vrot.lane.b32.xlu0 %v707, 17
      %v773 = vpop.permute.xlu0 %772
      %v774 = vlaneseq
      %v775 = vand.u32 %v774, 127
      %vm776 = vcmp.lt.s32.totalorder %v775, 17
      %v777 = vsel %vm776, %v711, %v743
      %v778 = vsel %vm776, %v713, %v745
      %v779 = vsel %vm776, %v715, %v747
      %v780 = vsel %vm776, %v717, %v749
      %v781 = vsel %vm776, %v719, %v751
      %v782 = vsel %vm776, %v721, %v753
      %v783 = vsel %vm776, %v723, %v755
      %v784 = vsel %vm776, %v725, %v757
      %v785 = vsel %vm776, %v727, %v759
      %v786 = vsel %vm776, %v729, %v761
      %v787 = vsel %vm776, %v731, %v763
      %v788 = vsel %vm776, %v733, %v765
      %v789 = vsel %vm776, %v735, %v767
      %v790 = vsel %vm776, %v737, %v769
      %v791 = vsel %vm776, %v739, %v771
      %v792 = vsel %vm776, %v741, %v773
      %v793 = vsel %vm776, %v743, %v711
      %v794 = vsel %vm776, %v745, %v713
      %v795 = vsel %vm776, %v747, %v715
      %v796 = vsel %vm776, %v749, %v717
      %v797 = vsel %vm776, %v751, %v719
      %v798 = vsel %vm776, %v753, %v721
      %v799 = vsel %vm776, %v755, %v723
      %v800 = vsel %vm776, %v757, %v725
      %v801 = vsel %vm776, %v759, %v727
      %v802 = vsel %vm776, %v761, %v729
      %v803 = vsel %vm776, %v763, %v731
      %v804 = vsel %vm776, %v765, %v733
      %v805 = vsel %vm776, %v767, %v735
      %v806 = vsel %vm776, %v769, %v737
      %v807 = vsel %vm776, %v771, %v739
      %v808 = vsel %vm776, %v773, %v741
      %809 = vset.pattern.permute.xlu0 0
      %810 = vperm.xlu0 %809, %v345
      %v811 = vpop.permute.xlu0 %810
      %813 = vset.pattern.permute.xlu0 0
      %814 = vperm.xlu0 %813, %v346
      %v815 = vpop.permute.xlu0 %814
      %817 = vset.pattern.permute.xlu0 0
      %818 = vperm.xlu0 %817, %v347
      %v819 = vpop.permute.xlu0 %818
      %821 = vset.pattern.permute.xlu0 0
      %822 = vperm.xlu0 %821, %v348
      %v823 = vpop.permute.xlu0 %822
      %825 = vset.pattern.permute.xlu0 0
      %826 = vperm.xlu0 %825, %v349
      %v827 = vpop.permute.xlu0 %826
      %829 = vset.pattern.permute.xlu0 0
      %830 = vperm.xlu0 %829, %v350
      %v831 = vpop.permute.xlu0 %830
      %833 = vset.pattern.permute.xlu0 0
      %834 = vperm.xlu0 %833, %v351
      %v835 = vpop.permute.xlu0 %834
      %837 = vset.pattern.permute.xlu0 0
      %838 = vperm.xlu0 %837, %v352
      %v839 = vpop.permute.xlu0 %838
      %841 = vset.pattern.permute.xlu0 0
      %842 = vperm.xlu0 %841, %v353
      %v843 = vpop.permute.xlu0 %842
      %845 = vset.pattern.permute.xlu0 0
      %846 = vperm.xlu0 %845, %v354
      %v847 = vpop.permute.xlu0 %846
      %849 = vset.pattern.permute.xlu0 0
      %850 = vperm.xlu0 %849, %v355
      %v851 = vpop.permute.xlu0 %850
      %853 = vset.pattern.permute.xlu0 0
      %854 = vperm.xlu0 %853, %v356
      %v855 = vpop.permute.xlu0 %854
      %857 = vset.pattern.permute.xlu0 0
      %858 = vperm.xlu0 %857, %v357
      %v859 = vpop.permute.xlu0 %858
      %861 = vset.pattern.permute.xlu0 0
      %862 = vperm.xlu0 %861, %v358
      %v863 = vpop.permute.xlu0 %862
      %865 = vset.pattern.permute.xlu0 0
      %866 = vperm.xlu0 %865, %v359
      %v867 = vpop.permute.xlu0 %866
      %869 = vset.pattern.permute.xlu0 0
      %870 = vperm.xlu0 %869, %v360
      %v871 = vpop.permute.xlu0 %870
      %v873 = vmul.f32 %v793, %v811
      %v874 = vmul.f32 %v777, %v811
      %v875 = vmul.f32 %v794, %v815
      %v876 = vmul.f32 %v778, %v815
      %v877 = vmul.f32 %v795, %v819
      %v878 = vmul.f32 %v779, %v819
      %v879 = vmul.f32 %v796, %v823
      %v880 = vmul.f32 %v780, %v823
      %v881 = vmul.f32 %v797, %v827
      %v882 = vmul.f32 %v781, %v827
      %v883 = vmul.f32 %v798, %v831
      %v884 = vmul.f32 %v782, %v831
      %v885 = vmul.f32 %v799, %v835
      %v886 = vmul.f32 %v783, %v835
      %v887 = vmul.f32 %v800, %v839
      %v888 = vmul.f32 %v784, %v839
      %v889 = vmul.f32 %v801, %v843
      %v890 = vmul.f32 %v785, %v843
      %v891 = vmul.f32 %v802, %v847
      %v892 = vmul.f32 %v786, %v847
      %v893 = vmul.f32 %v803, %v851
      %v894 = vmul.f32 %v787, %v851
      %v895 = vmul.f32 %v804, %v855
      %v896 = vmul.f32 %v788, %v855
      %v897 = vmul.f32 %v805, %v859
      %v898 = vmul.f32 %v789, %v859
      %v899 = vmul.f32 %v806, %v863
      %v900 = vmul.f32 %v790, %v863
      %v901 = vmul.f32 %v807, %v867
      %v902 = vmul.f32 %v791, %v867
      %v903 = vmul.f32 %v808, %v871
      %v904 = vmul.f32 %v792, %v871
      %v905 = vperm.slane %v708, 0
      %v906 = vperm.slane %v709, 0
      %v907 = vmul.f32 %v873, %v905
      %v908 = vmul.f32 %v874, %v906
      %v909 = vmul.f32 %v875, %v905
      %v910 = vmul.f32 %v876, %v906
      %v911 = vmul.f32 %v877, %v905
      %v912 = vmul.f32 %v878, %v906
      %v913 = vmul.f32 %v879, %v905
      %v914 = vmul.f32 %v880, %v906
      %v915 = vmul.f32 %v881, %v905
      %v916 = vmul.f32 %v882, %v906
      %v917 = vmul.f32 %v883, %v905
      %v918 = vmul.f32 %v884, %v906
      %v919 = vmul.f32 %v885, %v905
      %v920 = vmul.f32 %v886, %v906
      %v921 = vmul.f32 %v887, %v905
      %v922 = vmul.f32 %v888, %v906
      %v923 = vmul.f32 %v889, %v905
      %v924 = vmul.f32 %v890, %v906
      %v925 = vmul.f32 %v891, %v905
      %v926 = vmul.f32 %v892, %v906
      %v927 = vmul.f32 %v893, %v905
      %v928 = vmul.f32 %v894, %v906
      %v929 = vmul.f32 %v895, %v905
      %v930 = vmul.f32 %v896, %v906
      %v931 = vmul.f32 %v897, %v905
      %v932 = vmul.f32 %v898, %v906
      %v933 = vmul.f32 %v899, %v905
      %v934 = vmul.f32 %v900, %v906
      %v935 = vmul.f32 %v901, %v905
      %v936 = vmul.f32 %v902, %v906
      %v937 = vmul.f32 %v903, %v905
      %v938 = vmul.f32 %v904, %v906
      %v939 = vadd.f32 %v907, 0.0
      %v940 = vadd.f32 %v908, 0.0
      %v941 = vadd.f32 %v909, 0.0
      %v942 = vadd.f32 %v910, 0.0
      %v943 = vadd.f32 %v911, 0.0
      %v944 = vadd.f32 %v912, 0.0
      %v945 = vadd.f32 %v913, 0.0
      %v946 = vadd.f32 %v914, 0.0
      %v947 = vadd.f32 %v915, 0.0
      %v948 = vadd.f32 %v916, 0.0
      %v949 = vadd.f32 %v917, 0.0
      %v950 = vadd.f32 %v918, 0.0
      %v951 = vadd.f32 %v919, 0.0
      %v952 = vadd.f32 %v920, 0.0
      %v953 = vadd.f32 %v921, 0.0
      %v954 = vadd.f32 %v922, 0.0
      %v955 = vadd.f32 %v923, 0.0
      %v956 = vadd.f32 %v924, 0.0
      %v957 = vadd.f32 %v925, 0.0
      %v958 = vadd.f32 %v926, 0.0
      %v959 = vadd.f32 %v927, 0.0
      %v960 = vadd.f32 %v928, 0.0
      %v961 = vadd.f32 %v929, 0.0
      %v962 = vadd.f32 %v930, 0.0
      %v963 = vadd.f32 %v931, 0.0
      %v964 = vadd.f32 %v932, 0.0
      %v965 = vadd.f32 %v933, 0.0
      %v966 = vadd.f32 %v934, 0.0
      %v967 = vadd.f32 %v935, 0.0
      %v968 = vadd.f32 %v936, 0.0
      %v969 = vadd.f32 %v937, 0.0
      %v970 = vadd.f32 %v938, 0.0
      %971 = vrot.lane.b32.xlu0 %v676, 16
      %v972 = vpop.permute.xlu0 %971
      %973 = vrot.lane.b32.xlu0 %v678, 16
      %v974 = vpop.permute.xlu0 %973
      %975 = vrot.lane.b32.xlu0 %v680, 16
      %v976 = vpop.permute.xlu0 %975
      %977 = vrot.lane.b32.xlu0 %v682, 16
      %v978 = vpop.permute.xlu0 %977
      %979 = vrot.lane.b32.xlu0 %v684, 16
      %v980 = vpop.permute.xlu0 %979
      %981 = vrot.lane.b32.xlu0 %v686, 16
      %v982 = vpop.permute.xlu0 %981
      %983 = vrot.lane.b32.xlu0 %v688, 16
      %v984 = vpop.permute.xlu0 %983
      %985 = vrot.lane.b32.xlu0 %v690, 16
      %v986 = vpop.permute.xlu0 %985
      %987 = vrot.lane.b32.xlu0 %v692, 16
      %v988 = vpop.permute.xlu0 %987
      %989 = vrot.lane.b32.xlu0 %v694, 16
      %v990 = vpop.permute.xlu0 %989
      %991 = vrot.lane.b32.xlu0 %v696, 16
      %v992 = vpop.permute.xlu0 %991
      %993 = vrot.lane.b32.xlu0 %v698, 16
      %v994 = vpop.permute.xlu0 %993
      %995 = vrot.lane.b32.xlu0 %v700, 16
      %v996 = vpop.permute.xlu0 %995
      %997 = vrot.lane.b32.xlu0 %v702, 16
      %v998 = vpop.permute.xlu0 %997
      %999 = vrot.lane.b32.xlu0 %v704, 16
      %v1000 = vpop.permute.xlu0 %999
      %1001 = vrot.lane.b32.xlu0 %v706, 16
      %v1002 = vpop.permute.xlu0 %1001
      %1003 = vrot.lane.b32.xlu0 %v677, 16
      %v1004 = vpop.permute.xlu0 %1003
      %1005 = vrot.lane.b32.xlu0 %v679, 16
      %v1006 = vpop.permute.xlu0 %1005
      %1007 = vrot.lane.b32.xlu0 %v681, 16
      %v1008 = vpop.permute.xlu0 %1007
      %1009 = vrot.lane.b32.xlu0 %v683, 16
      %v1010 = vpop.permute.xlu0 %1009
      %1011 = vrot.lane.b32.xlu0 %v685, 16
      %v1012 = vpop.permute.xlu0 %1011
      %1013 = vrot.lane.b32.xlu0 %v687, 16
      %v1014 = vpop.permute.xlu0 %1013
      %1015 = vrot.lane.b32.xlu0 %v689, 16
      %v1016 = vpop.permute.xlu0 %1015
      %1017 = vrot.lane.b32.xlu0 %v691, 16
      %v1018 = vpop.permute.xlu0 %1017
      %1019 = vrot.lane.b32.xlu0 %v693, 16
      %v1020 = vpop.permute.xlu0 %1019
      %1021 = vrot.lane.b32.xlu0 %v695, 16
      %v1022 = vpop.permute.xlu0 %1021
      %1023 = vrot.lane.b32.xlu0 %v697, 16
      %v1024 = vpop.permute.xlu0 %1023
      %1025 = vrot.lane.b32.xlu0 %v699, 16
      %v1026 = vpop.permute.xlu0 %1025
      %1027 = vrot.lane.b32.xlu0 %v701, 16
      %v1028 = vpop.permute.xlu0 %1027
      %1029 = vrot.lane.b32.xlu0 %v703, 16
      %v1030 = vpop.permute.xlu0 %1029
      %1031 = vrot.lane.b32.xlu0 %v705, 16
      %v1032 = vpop.permute.xlu0 %1031
      %1033 = vrot.lane.b32.xlu0 %v707, 16
      %v1034 = vpop.permute.xlu0 %1033
      %vm1035 = vcmp.lt.s32.totalorder %v775, 16
      %v1036 = vsel %vm1035, %v972, %v1004
      %v1037 = vsel %vm1035, %v974, %v1006
      %v1038 = vsel %vm1035, %v976, %v1008
      %v1039 = vsel %vm1035, %v978, %v1010
      %v1040 = vsel %vm1035, %v980, %v1012
      %v1041 = vsel %vm1035, %v982, %v1014
      %v1042 = vsel %vm1035, %v984, %v1016
      %v1043 = vsel %vm1035, %v986, %v1018
      %v1044 = vsel %vm1035, %v988, %v1020
      %v1045 = vsel %vm1035, %v990, %v1022
      %v1046 = vsel %vm1035, %v992, %v1024
      %v1047 = vsel %vm1035, %v994, %v1026
      %v1048 = vsel %vm1035, %v996, %v1028
      %v1049 = vsel %vm1035, %v998, %v1030
      %v1050 = vsel %vm1035, %v1000, %v1032
      %v1051 = vsel %vm1035, %v1002, %v1034
      %v1052 = vsel %vm1035, %v1004, %v972
      %v1053 = vsel %vm1035, %v1006, %v974
      %v1054 = vsel %vm1035, %v1008, %v976
      %v1055 = vsel %vm1035, %v1010, %v978
      %v1056 = vsel %vm1035, %v1012, %v980
      %v1057 = vsel %vm1035, %v1014, %v982
      %v1058 = vsel %vm1035, %v1016, %v984
      %v1059 = vsel %vm1035, %v1018, %v986
      %v1060 = vsel %vm1035, %v1020, %v988
      %v1061 = vsel %vm1035, %v1022, %v990
      %v1062 = vsel %vm1035, %v1024, %v992
      %v1063 = vsel %vm1035, %v1026, %v994
      %v1064 = vsel %vm1035, %v1028, %v996
      %v1065 = vsel %vm1035, %v1030, %v998
      %v1066 = vsel %vm1035, %v1032, %v1000
      %v1067 = vsel %vm1035, %v1034, %v1002
      %1068 = vset.pattern.permute.xlu0 1
      %1069 = vperm.xlu0 %1068, %v345
      %v1070 = vpop.permute.xlu0 %1069
      %1072 = vset.pattern.permute.xlu0 1
      %1073 = vperm.xlu0 %1072, %v346
      %v1074 = vpop.permute.xlu0 %1073
      %1076 = vset.pattern.permute.xlu0 1
      %1077 = vperm.xlu0 %1076, %v347
      %v1078 = vpop.permute.xlu0 %1077
      %1080 = vset.pattern.permute.xlu0 1
      %1081 = vperm.xlu0 %1080, %v348
      %v1082 = vpop.permute.xlu0 %1081
      %1084 = vset.pattern.permute.xlu0 1
      %1085 = vperm.xlu0 %1084, %v349
      %v1086 = vpop.permute.xlu0 %1085
      %1088 = vset.pattern.permute.xlu0 1
      %1089 = vperm.xlu0 %1088, %v350
      %v1090 = vpop.permute.xlu0 %1089
      %1092 = vset.pattern.permute.xlu0 1
      %1093 = vperm.xlu0 %1092, %v351
      %v1094 = vpop.permute.xlu0 %1093
      %1096 = vset.pattern.permute.xlu0 1
      %1097 = vperm.xlu0 %1096, %v352
      %v1098 = vpop.permute.xlu0 %1097
      %1100 = vset.pattern.permute.xlu0 1
      %1101 = vperm.xlu0 %1100, %v353
      %v1102 = vpop.permute.xlu0 %1101
      %1104 = vset.pattern.permute.xlu0 1
      %1105 = vperm.xlu0 %1104, %v354
      %v1106 = vpop.permute.xlu0 %1105
      %1108 = vset.pattern.permute.xlu0 1
      %1109 = vperm.xlu0 %1108, %v355
      %v1110 = vpop.permute.xlu0 %1109
      %1112 = vset.pattern.permute.xlu0 1
      %1113 = vperm.xlu0 %1112, %v356
      %v1114 = vpop.permute.xlu0 %1113
      %1116 = vset.pattern.permute.xlu0 1
      %1117 = vperm.xlu0 %1116, %v357
      %v1118 = vpop.permute.xlu0 %1117
      %1120 = vset.pattern.permute.xlu0 1
      %1121 = vperm.xlu0 %1120, %v358
      %v1122 = vpop.permute.xlu0 %1121
      %1124 = vset.pattern.permute.xlu0 1
      %1125 = vperm.xlu0 %1124, %v359
      %v1126 = vpop.permute.xlu0 %1125
      %1128 = vset.pattern.permute.xlu0 1
      %1129 = vperm.xlu0 %1128, %v360
      %v1130 = vpop.permute.xlu0 %1129
      %v1132 = vmul.f32 %v1052, %v1070
      %v1133 = vmul.f32 %v1036, %v1070
      %v1134 = vmul.f32 %v1053, %v1074
      %v1135 = vmul.f32 %v1037, %v1074
      %v1136 = vmul.f32 %v1054, %v1078
      %v1137 = vmul.f32 %v1038, %v1078
      %v1138 = vmul.f32 %v1055, %v1082
      %v1139 = vmul.f32 %v1039, %v1082
      %v1140 = vmul.f32 %v1056, %v1086
      %v1141 = vmul.f32 %v1040, %v1086
      %v1142 = vmul.f32 %v1057, %v1090
      %v1143 = vmul.f32 %v1041, %v1090
      %v1144 = vmul.f32 %v1058, %v1094
      %v1145 = vmul.f32 %v1042, %v1094
      %v1146 = vmul.f32 %v1059, %v1098
      %v1147 = vmul.f32 %v1043, %v1098
      %v1148 = vmul.f32 %v1060, %v1102
      %v1149 = vmul.f32 %v1044, %v1102
      %v1150 = vmul.f32 %v1061, %v1106
      %v1151 = vmul.f32 %v1045, %v1106
      %v1152 = vmul.f32 %v1062, %v1110
      %v1153 = vmul.f32 %v1046, %v1110
      %v1154 = vmul.f32 %v1063, %v1114
      %v1155 = vmul.f32 %v1047, %v1114
      %v1156 = vmul.f32 %v1064, %v1118
      %v1157 = vmul.f32 %v1048, %v1118
      %v1158 = vmul.f32 %v1065, %v1122
      %v1159 = vmul.f32 %v1049, %v1122
      %v1160 = vmul.f32 %v1066, %v1126
      %v1161 = vmul.f32 %v1050, %v1126
      %v1162 = vmul.f32 %v1067, %v1130
      %v1163 = vmul.f32 %v1051, %v1130
      %v1164 = vperm.slane %v708, 1
      %v1165 = vperm.slane %v709, 1
      %v1166 = vmul.f32 %v1132, %v1164
      %v1167 = vmul.f32 %v1133, %v1165
      %v1168 = vmul.f32 %v1134, %v1164
      %v1169 = vmul.f32 %v1135, %v1165
      %v1170 = vmul.f32 %v1136, %v1164
      %v1171 = vmul.f32 %v1137, %v1165
      %v1172 = vmul.f32 %v1138, %v1164
      %v1173 = vmul.f32 %v1139, %v1165
      %v1174 = vmul.f32 %v1140, %v1164
      %v1175 = vmul.f32 %v1141, %v1165
      %v1176 = vmul.f32 %v1142, %v1164
      %v1177 = vmul.f32 %v1143, %v1165
      %v1178 = vmul.f32 %v1144, %v1164
      %v1179 = vmul.f32 %v1145, %v1165
      %v1180 = vmul.f32 %v1146, %v1164
      %v1181 = vmul.f32 %v1147, %v1165
      %v1182 = vmul.f32 %v1148, %v1164
      %v1183 = vmul.f32 %v1149, %v1165
      %v1184 = vmul.f32 %v1150, %v1164
      %v1185 = vmul.f32 %v1151, %v1165
      %v1186 = vmul.f32 %v1152, %v1164
      %v1187 = vmul.f32 %v1153, %v1165
      %v1188 = vmul.f32 %v1154, %v1164
      %v1189 = vmul.f32 %v1155, %v1165
      %v1190 = vmul.f32 %v1156, %v1164
      %v1191 = vmul.f32 %v1157, %v1165
      %v1192 = vmul.f32 %v1158, %v1164
      %v1193 = vmul.f32 %v1159, %v1165
      %v1194 = vmul.f32 %v1160, %v1164
      %v1195 = vmul.f32 %v1161, %v1165
      %v1196 = vmul.f32 %v1162, %v1164
      %v1197 = vmul.f32 %v1163, %v1165
      %v1198 = vadd.f32 %v939, %v1166
      %v1199 = vadd.f32 %v940, %v1167
      %v1200 = vadd.f32 %v941, %v1168
      %v1201 = vadd.f32 %v942, %v1169
      %v1202 = vadd.f32 %v943, %v1170
      %v1203 = vadd.f32 %v944, %v1171
      %v1204 = vadd.f32 %v945, %v1172
      %v1205 = vadd.f32 %v946, %v1173
      %v1206 = vadd.f32 %v947, %v1174
      %v1207 = vadd.f32 %v948, %v1175
      %v1208 = vadd.f32 %v949, %v1176
      %v1209 = vadd.f32 %v950, %v1177
      %v1210 = vadd.f32 %v951, %v1178
      %v1211 = vadd.f32 %v952, %v1179
      %v1212 = vadd.f32 %v953, %v1180
      %v1213 = vadd.f32 %v954, %v1181
      %v1214 = vadd.f32 %v955, %v1182
      %v1215 = vadd.f32 %v956, %v1183
      %v1216 = vadd.f32 %v957, %v1184
      %v1217 = vadd.f32 %v958, %v1185
      %v1218 = vadd.f32 %v959, %v1186
      %v1219 = vadd.f32 %v960, %v1187
      %v1220 = vadd.f32 %v961, %v1188
      %v1221 = vadd.f32 %v962, %v1189
      %v1222 = vadd.f32 %v963, %v1190
      %v1223 = vadd.f32 %v964, %v1191
      %v1224 = vadd.f32 %v965, %v1192
      %v1225 = vadd.f32 %v966, %v1193
      %v1226 = vadd.f32 %v967, %v1194
      %v1227 = vadd.f32 %v968, %v1195
      %v1228 = vadd.f32 %v969, %v1196
      %v1229 = vadd.f32 %v970, %v1197
      %1230 = vrot.lane.b32.xlu0 %v676, 15
      %v1231 = vpop.permute.xlu0 %1230
      %1232 = vrot.lane.b32.xlu0 %v678, 15
      %v1233 = vpop.permute.xlu0 %1232
      %1234 = vrot.lane.b32.xlu0 %v680, 15
      %v1235 = vpop.permute.xlu0 %1234
      %1236 = vrot.lane.b32.xlu0 %v682, 15
      %v1237 = vpop.permute.xlu0 %1236
      %1238 = vrot.lane.b32.xlu0 %v684, 15
      %v1239 = vpop.permute.xlu0 %1238
      %1240 = vrot.lane.b32.xlu0 %v686, 15
      %v1241 = vpop.permute.xlu0 %1240
      %1242 = vrot.lane.b32.xlu0 %v688, 15
      %v1243 = vpop.permute.xlu0 %1242
      %1244 = vrot.lane.b32.xlu0 %v690, 15
      %v1245 = vpop.permute.xlu0 %1244
      %1246 = vrot.lane.b32.xlu0 %v692, 15
      %v1247 = vpop.permute.xlu0 %1246
      %1248 = vrot.lane.b32.xlu0 %v694, 15
      %v1249 = vpop.permute.xlu0 %1248
      %1250 = vrot.lane.b32.xlu0 %v696, 15
      %v1251 = vpop.permute.xlu0 %1250
      %1252 = vrot.lane.b32.xlu0 %v698, 15
      %v1253 = vpop.permute.xlu0 %1252
      %1254 = vrot.lane.b32.xlu0 %v700, 15
      %v1255 = vpop.permute.xlu0 %1254
      %1256 = vrot.lane.b32.xlu0 %v702, 15
      %v1257 = vpop.permute.xlu0 %1256
      %1258 = vrot.lane.b32.xlu0 %v704, 15
      %v1259 = vpop.permute.xlu0 %1258
      %1260 = vrot.lane.b32.xlu0 %v706, 15
      %v1261 = vpop.permute.xlu0 %1260
      %1262 = vrot.lane.b32.xlu0 %v677, 15
      %v1263 = vpop.permute.xlu0 %1262
      %1264 = vrot.lane.b32.xlu0 %v679, 15
      %v1265 = vpop.permute.xlu0 %1264
      %1266 = vrot.lane.b32.xlu0 %v681, 15
      %v1267 = vpop.permute.xlu0 %1266
      %1268 = vrot.lane.b32.xlu0 %v683, 15
      %v1269 = vpop.permute.xlu0 %1268
      %1270 = vrot.lane.b32.xlu0 %v685, 15
      %v1271 = vpop.permute.xlu0 %1270
      %1272 = vrot.lane.b32.xlu0 %v687, 15
      %v1273 = vpop.permute.xlu0 %1272
      %1274 = vrot.lane.b32.xlu0 %v689, 15
      %v1275 = vpop.permute.xlu0 %1274
      %1276 = vrot.lane.b32.xlu0 %v691, 15
      %v1277 = vpop.permute.xlu0 %1276
      %1278 = vrot.lane.b32.xlu0 %v693, 15
      %v1279 = vpop.permute.xlu0 %1278
      %1280 = vrot.lane.b32.xlu0 %v695, 15
      %v1281 = vpop.permute.xlu0 %1280
      %1282 = vrot.lane.b32.xlu0 %v697, 15
      %v1283 = vpop.permute.xlu0 %1282
      %1284 = vrot.lane.b32.xlu0 %v699, 15
      %v1285 = vpop.permute.xlu0 %1284
      %1286 = vrot.lane.b32.xlu0 %v701, 15
      %v1287 = vpop.permute.xlu0 %1286
      %1288 = vrot.lane.b32.xlu0 %v703, 15
      %v1289 = vpop.permute.xlu0 %1288
      %1290 = vrot.lane.b32.xlu0 %v705, 15
      %v1291 = vpop.permute.xlu0 %1290
      %1292 = vrot.lane.b32.xlu0 %v707, 15
      %v1293 = vpop.permute.xlu0 %1292
      %vm1294 = vcmp.lt.s32.totalorder %v775, 15
      %v1295 = vsel %vm1294, %v1231, %v1263
      %v1296 = vsel %vm1294, %v1233, %v1265
      %v1297 = vsel %vm1294, %v1235, %v1267
      %v1298 = vsel %vm1294, %v1237, %v1269
      %v1299 = vsel %vm1294, %v1239, %v1271
      %v1300 = vsel %vm1294, %v1241, %v1273
      %v1301 = vsel %vm1294, %v1243, %v1275
      %v1302 = vsel %vm1294, %v1245, %v1277
      %v1303 = vsel %vm1294, %v1247, %v1279
      %v1304 = vsel %vm1294, %v1249, %v1281
      %v1305 = vsel %vm1294, %v1251, %v1283
      %v1306 = vsel %vm1294, %v1253, %v1285
      %v1307 = vsel %vm1294, %v1255, %v1287
      %v1308 = vsel %vm1294, %v1257, %v1289
      %v1309 = vsel %vm1294, %v1259, %v1291
      %v1310 = vsel %vm1294, %v1261, %v1293
      %v1311 = vsel %vm1294, %v1263, %v1231
      %v1312 = vsel %vm1294, %v1265, %v1233
      %v1313 = vsel %vm1294, %v1267, %v1235
      %v1314 = vsel %vm1294, %v1269, %v1237
      %v1315 = vsel %vm1294, %v1271, %v1239
      %v1316 = vsel %vm1294, %v1273, %v1241
      %v1317 = vsel %vm1294, %v1275, %v1243
      %v1318 = vsel %vm1294, %v1277, %v1245
      %v1319 = vsel %vm1294, %v1279, %v1247
      %v1320 = vsel %vm1294, %v1281, %v1249
      %v1321 = vsel %vm1294, %v1283, %v1251
      %v1322 = vsel %vm1294, %v1285, %v1253
      %v1323 = vsel %vm1294, %v1287, %v1255
      %v1324 = vsel %vm1294, %v1289, %v1257
      %v1325 = vsel %vm1294, %v1291, %v1259
      %v1326 = vsel %vm1294, %v1293, %v1261
      %1327 = vset.pattern.permute.xlu0 2
      %1328 = vperm.xlu0 %1327, %v345
      %v1329 = vpop.permute.xlu0 %1328
      %1331 = vset.pattern.permute.xlu0 2
      %1332 = vperm.xlu0 %1331, %v346
      %v1333 = vpop.permute.xlu0 %1332
      %1335 = vset.pattern.permute.xlu0 2
      %1336 = vperm.xlu0 %1335, %v347
      %v1337 = vpop.permute.xlu0 %1336
      %1339 = vset.pattern.permute.xlu0 2
      %1340 = vperm.xlu0 %1339, %v348
      %v1341 = vpop.permute.xlu0 %1340
      %1343 = vset.pattern.permute.xlu0 2
      %1344 = vperm.xlu0 %1343, %v349
      %v1345 = vpop.permute.xlu0 %1344
      %1347 = vset.pattern.permute.xlu0 2
      %1348 = vperm.xlu0 %1347, %v350
      %v1349 = vpop.permute.xlu0 %1348
      %1351 = vset.pattern.permute.xlu0 2
      %1352 = vperm.xlu0 %1351, %v351
      %v1353 = vpop.permute.xlu0 %1352
      %1355 = vset.pattern.permute.xlu0 2
      %1356 = vperm.xlu0 %1355, %v352
      %v1357 = vpop.permute.xlu0 %1356
      %1359 = vset.pattern.permute.xlu0 2
      %1360 = vperm.xlu0 %1359, %v353
      %v1361 = vpop.permute.xlu0 %1360
      %1363 = vset.pattern.permute.xlu0 2
      %1364 = vperm.xlu0 %1363, %v354
      %v1365 = vpop.permute.xlu0 %1364
      %1367 = vset.pattern.permute.xlu0 2
      %1368 = vperm.xlu0 %1367, %v355
      %v1369 = vpop.permute.xlu0 %1368
      %1371 = vset.pattern.permute.xlu0 2
      %1372 = vperm.xlu0 %1371, %v356
      %v1373 = vpop.permute.xlu0 %1372
      %1375 = vset.pattern.permute.xlu0 2
      %1376 = vperm.xlu0 %1375, %v357
      %v1377 = vpop.permute.xlu0 %1376
      %1379 = vset.pattern.permute.xlu0 2
      %1380 = vperm.xlu0 %1379, %v358
      %v1381 = vpop.permute.xlu0 %1380
      %1383 = vset.pattern.permute.xlu0 2
      %1384 = vperm.xlu0 %1383, %v359
      %v1385 = vpop.permute.xlu0 %1384
      %1387 = vset.pattern.permute.xlu0 2
      %1388 = vperm.xlu0 %1387, %v360
      %v1389 = vpop.permute.xlu0 %1388
      %v1391 = vmul.f32 %v1311, %v1329
      %v1392 = vmul.f32 %v1295, %v1329
      %v1393 = vmul.f32 %v1312, %v1333
      %v1394 = vmul.f32 %v1296, %v1333
      %v1395 = vmul.f32 %v1313, %v1337
      %v1396 = vmul.f32 %v1297, %v1337
      %v1397 = vmul.f32 %v1314, %v1341
      %v1398 = vmul.f32 %v1298, %v1341
      %v1399 = vmul.f32 %v1315, %v1345
      %v1400 = vmul.f32 %v1299, %v1345
      %v1401 = vmul.f32 %v1316, %v1349
      %v1402 = vmul.f32 %v1300, %v1349
      %v1403 = vmul.f32 %v1317, %v1353
      %v1404 = vmul.f32 %v1301, %v1353
      %v1405 = vmul.f32 %v1318, %v1357
      %v1406 = vmul.f32 %v1302, %v1357
      %v1407 = vmul.f32 %v1319, %v1361
      %v1408 = vmul.f32 %v1303, %v1361
      %v1409 = vmul.f32 %v1320, %v1365
      %v1410 = vmul.f32 %v1304, %v1365
      %v1411 = vmul.f32 %v1321, %v1369
      %v1412 = vmul.f32 %v1305, %v1369
      %v1413 = vmul.f32 %v1322, %v1373
      %v1414 = vmul.f32 %v1306, %v1373
      %v1415 = vmul.f32 %v1323, %v1377
      %v1416 = vmul.f32 %v1307, %v1377
      %v1417 = vmul.f32 %v1324, %v1381
      %v1418 = vmul.f32 %v1308, %v1381
      %v1419 = vmul.f32 %v1325, %v1385
      %v1420 = vmul.f32 %v1309, %v1385
      %v1421 = vmul.f32 %v1326, %v1389
      %v1422 = vmul.f32 %v1310, %v1389
      %v1423 = vperm.slane %v708, 2
      %v1424 = vperm.slane %v709, 2
      %v1425 = vmul.f32 %v1391, %v1423
      %v1426 = vmul.f32 %v1392, %v1424
      %v1427 = vmul.f32 %v1393, %v1423
      %v1428 = vmul.f32 %v1394, %v1424
      %v1429 = vmul.f32 %v1395, %v1423
      %v1430 = vmul.f32 %v1396, %v1424
      %v1431 = vmul.f32 %v1397, %v1423
      %v1432 = vmul.f32 %v1398, %v1424
      %v1433 = vmul.f32 %v1399, %v1423
      %v1434 = vmul.f32 %v1400, %v1424
      %v1435 = vmul.f32 %v1401, %v1423
      %v1436 = vmul.f32 %v1402, %v1424
      %v1437 = vmul.f32 %v1403, %v1423
      %v1438 = vmul.f32 %v1404, %v1424
      %v1439 = vmul.f32 %v1405, %v1423
      %v1440 = vmul.f32 %v1406, %v1424
      %v1441 = vmul.f32 %v1407, %v1423
      %v1442 = vmul.f32 %v1408, %v1424
      %v1443 = vmul.f32 %v1409, %v1423
      %v1444 = vmul.f32 %v1410, %v1424
      %v1445 = vmul.f32 %v1411, %v1423
      %v1446 = vmul.f32 %v1412, %v1424
      %v1447 = vmul.f32 %v1413, %v1423
      %v1448 = vmul.f32 %v1414, %v1424
      %v1449 = vmul.f32 %v1415, %v1423
      %v1450 = vmul.f32 %v1416, %v1424
      %v1451 = vmul.f32 %v1417, %v1423
      %v1452 = vmul.f32 %v1418, %v1424
      %v1453 = vmul.f32 %v1419, %v1423
      %v1454 = vmul.f32 %v1420, %v1424
      %v1455 = vmul.f32 %v1421, %v1423
      %v1456 = vmul.f32 %v1422, %v1424
      %v1457 = vadd.f32 %v1198, %v1425
      %v1458 = vadd.f32 %v1199, %v1426
      %v1459 = vadd.f32 %v1200, %v1427
      %v1460 = vadd.f32 %v1201, %v1428
      %v1461 = vadd.f32 %v1202, %v1429
      %v1462 = vadd.f32 %v1203, %v1430
      %v1463 = vadd.f32 %v1204, %v1431
      %v1464 = vadd.f32 %v1205, %v1432
      %v1465 = vadd.f32 %v1206, %v1433
      %v1466 = vadd.f32 %v1207, %v1434
      %v1467 = vadd.f32 %v1208, %v1435
      %v1468 = vadd.f32 %v1209, %v1436
      %v1469 = vadd.f32 %v1210, %v1437
      %v1470 = vadd.f32 %v1211, %v1438
      %v1471 = vadd.f32 %v1212, %v1439
      %v1472 = vadd.f32 %v1213, %v1440
      %v1473 = vadd.f32 %v1214, %v1441
      %v1474 = vadd.f32 %v1215, %v1442
      %v1475 = vadd.f32 %v1216, %v1443
      %v1476 = vadd.f32 %v1217, %v1444
      %v1477 = vadd.f32 %v1218, %v1445
      %v1478 = vadd.f32 %v1219, %v1446
      %v1479 = vadd.f32 %v1220, %v1447
      %v1480 = vadd.f32 %v1221, %v1448
      %v1481 = vadd.f32 %v1222, %v1449
      %v1482 = vadd.f32 %v1223, %v1450
      %v1483 = vadd.f32 %v1224, %v1451
      %v1484 = vadd.f32 %v1225, %v1452
      %v1485 = vadd.f32 %v1226, %v1453
      %v1486 = vadd.f32 %v1227, %v1454
      %v1487 = vadd.f32 %v1228, %v1455
      %v1488 = vadd.f32 %v1229, %v1456
      %1489 = vrot.lane.b32.xlu0 %v676, 1
      %v1490 = vpop.permute.xlu0 %1489
      %1491 = vrot.lane.b32.xlu0 %v678, 1
      %v1492 = vpop.permute.xlu0 %1491
      %1493 = vrot.lane.b32.xlu0 %v680, 1
      %v1494 = vpop.permute.xlu0 %1493
      %1495 = vrot.lane.b32.xlu0 %v682, 1
      %v1496 = vpop.permute.xlu0 %1495
      %1497 = vrot.lane.b32.xlu0 %v684, 1
      %v1498 = vpop.permute.xlu0 %1497
      %1499 = vrot.lane.b32.xlu0 %v686, 1
      %v1500 = vpop.permute.xlu0 %1499
      %1501 = vrot.lane.b32.xlu0 %v688, 1
      %v1502 = vpop.permute.xlu0 %1501
      %1503 = vrot.lane.b32.xlu0 %v690, 1
      %v1504 = vpop.permute.xlu0 %1503
      %1505 = vrot.lane.b32.xlu0 %v692, 1
      %v1506 = vpop.permute.xlu0 %1505
      %1507 = vrot.lane.b32.xlu0 %v694, 1
      %v1508 = vpop.permute.xlu0 %1507
      %1509 = vrot.lane.b32.xlu0 %v696, 1
      %v1510 = vpop.permute.xlu0 %1509
      %1511 = vrot.lane.b32.xlu0 %v698, 1
      %v1512 = vpop.permute.xlu0 %1511
      %1513 = vrot.lane.b32.xlu0 %v700, 1
      %v1514 = vpop.permute.xlu0 %1513
      %1515 = vrot.lane.b32.xlu0 %v702, 1
      %v1516 = vpop.permute.xlu0 %1515
      %1517 = vrot.lane.b32.xlu0 %v704, 1
      %v1518 = vpop.permute.xlu0 %1517
      %1519 = vrot.lane.b32.xlu0 %v706, 1
      %v1520 = vpop.permute.xlu0 %1519
      %1521 = vrot.lane.b32.xlu0 %v677, 1
      %v1522 = vpop.permute.xlu0 %1521
      %1523 = vrot.lane.b32.xlu0 %v679, 1
      %v1524 = vpop.permute.xlu0 %1523
      %1525 = vrot.lane.b32.xlu0 %v681, 1
      %v1526 = vpop.permute.xlu0 %1525
      %1527 = vrot.lane.b32.xlu0 %v683, 1
      %v1528 = vpop.permute.xlu0 %1527
      %1529 = vrot.lane.b32.xlu0 %v685, 1
      %v1530 = vpop.permute.xlu0 %1529
      %1531 = vrot.lane.b32.xlu0 %v687, 1
      %v1532 = vpop.permute.xlu0 %1531
      %1533 = vrot.lane.b32.xlu0 %v689, 1
      %v1534 = vpop.permute.xlu0 %1533
      %1535 = vrot.lane.b32.xlu0 %v691, 1
      %v1536 = vpop.permute.xlu0 %1535
      %1537 = vrot.lane.b32.xlu0 %v693, 1
      %v1538 = vpop.permute.xlu0 %1537
      %1539 = vrot.lane.b32.xlu0 %v695, 1
      %v1540 = vpop.permute.xlu0 %1539
      %1541 = vrot.lane.b32.xlu0 %v697, 1
      %v1542 = vpop.permute.xlu0 %1541
      %1543 = vrot.lane.b32.xlu0 %v699, 1
      %v1544 = vpop.permute.xlu0 %1543
      %1545 = vrot.lane.b32.xlu0 %v701, 1
      %v1546 = vpop.permute.xlu0 %1545
      %1547 = vrot.lane.b32.xlu0 %v703, 1
      %v1548 = vpop.permute.xlu0 %1547
      %1549 = vrot.lane.b32.xlu0 %v705, 1
      %v1550 = vpop.permute.xlu0 %1549
      %1551 = vrot.lane.b32.xlu0 %v707, 1
      %v1552 = vpop.permute.xlu0 %1551
      %vm1553 = vcmp.lt.s32.totalorder %v775, 1
      %v1554 = vsel %vm1553, %v1490, %v1522
      %v1555 = vsel %vm1553, %v1492, %v1524
      %v1556 = vsel %vm1553, %v1494, %v1526
      %v1557 = vsel %vm1553, %v1496, %v1528
      %v1558 = vsel %vm1553, %v1498, %v1530
      %v1559 = vsel %vm1553, %v1500, %v1532
      %v1560 = vsel %vm1553, %v1502, %v1534
      %v1561 = vsel %vm1553, %v1504, %v1536
      %v1562 = vsel %vm1553, %v1506, %v1538
      %v1563 = vsel %vm1553, %v1508, %v1540
      %v1564 = vsel %vm1553, %v1510, %v1542
      %v1565 = vsel %vm1553, %v1512, %v1544
      %v1566 = vsel %vm1553, %v1514, %v1546
      %v1567 = vsel %vm1553, %v1516, %v1548
      %v1568 = vsel %vm1553, %v1518, %v1550
      %v1569 = vsel %vm1553, %v1520, %v1552
      %v1570 = vsel %vm1553, %v1522, %v1490
      %v1571 = vsel %vm1553, %v1524, %v1492
      %v1572 = vsel %vm1553, %v1526, %v1494
      %v1573 = vsel %vm1553, %v1528, %v1496
      %v1574 = vsel %vm1553, %v1530, %v1498
      %v1575 = vsel %vm1553, %v1532, %v1500
      %v1576 = vsel %vm1553, %v1534, %v1502
      %v1577 = vsel %vm1553, %v1536, %v1504
      %v1578 = vsel %vm1553, %v1538, %v1506
      %v1579 = vsel %vm1553, %v1540, %v1508
      %v1580 = vsel %vm1553, %v1542, %v1510
      %v1581 = vsel %vm1553, %v1544, %v1512
      %v1582 = vsel %vm1553, %v1546, %v1514
      %v1583 = vsel %vm1553, %v1548, %v1516
      %v1584 = vsel %vm1553, %v1550, %v1518
      %v1585 = vsel %vm1553, %v1552, %v1520
      %1586 = vset.pattern.permute.xlu0 3
      %1587 = vperm.xlu0 %1586, %v345
      %v1588 = vpop.permute.xlu0 %1587
      %1590 = vset.pattern.permute.xlu0 3
      %1591 = vperm.xlu0 %1590, %v346
      %v1592 = vpop.permute.xlu0 %1591
      %1594 = vset.pattern.permute.xlu0 3
      %1595 = vperm.xlu0 %1594, %v347
      %v1596 = vpop.permute.xlu0 %1595
      %1598 = vset.pattern.permute.xlu0 3
      %1599 = vperm.xlu0 %1598, %v348
      %v1600 = vpop.permute.xlu0 %1599
      %1602 = vset.pattern.permute.xlu0 3
      %1603 = vperm.xlu0 %1602, %v349
      %v1604 = vpop.permute.xlu0 %1603
      %1606 = vset.pattern.permute.xlu0 3
      %1607 = vperm.xlu0 %1606, %v350
      %v1608 = vpop.permute.xlu0 %1607
      %1610 = vset.pattern.permute.xlu0 3
      %1611 = vperm.xlu0 %1610, %v351
      %v1612 = vpop.permute.xlu0 %1611
      %1614 = vset.pattern.permute.xlu0 3
      %1615 = vperm.xlu0 %1614, %v352
      %v1616 = vpop.permute.xlu0 %1615
      %1618 = vset.pattern.permute.xlu0 3
      %1619 = vperm.xlu0 %1618, %v353
      %v1620 = vpop.permute.xlu0 %1619
      %1622 = vset.pattern.permute.xlu0 3
      %1623 = vperm.xlu0 %1622, %v354
      %v1624 = vpop.permute.xlu0 %1623
      %1626 = vset.pattern.permute.xlu0 3
      %1627 = vperm.xlu0 %1626, %v355
      %v1628 = vpop.permute.xlu0 %1627
      %1630 = vset.pattern.permute.xlu0 3
      %1631 = vperm.xlu0 %1630, %v356
      %v1632 = vpop.permute.xlu0 %1631
      %1634 = vset.pattern.permute.xlu0 3
      %1635 = vperm.xlu0 %1634, %v357
      %v1636 = vpop.permute.xlu0 %1635
      %1638 = vset.pattern.permute.xlu0 3
      %1639 = vperm.xlu0 %1638, %v358
      %v1640 = vpop.permute.xlu0 %1639
      %1642 = vset.pattern.permute.xlu0 3
      %1643 = vperm.xlu0 %1642, %v359
      %v1644 = vpop.permute.xlu0 %1643
      %1646 = vset.pattern.permute.xlu0 3
      %1647 = vperm.xlu0 %1646, %v360
      %v1648 = vpop.permute.xlu0 %1647
      %v1650 = vmul.f32 %v1570, %v1588
      %v1651 = vmul.f32 %v1554, %v1588
      %v1652 = vmul.f32 %v1571, %v1592
      %v1653 = vmul.f32 %v1555, %v1592
      %v1654 = vmul.f32 %v1572, %v1596
      %v1655 = vmul.f32 %v1556, %v1596
      %v1656 = vmul.f32 %v1573, %v1600
      %v1657 = vmul.f32 %v1557, %v1600
      %v1658 = vmul.f32 %v1574, %v1604
      %v1659 = vmul.f32 %v1558, %v1604
      %v1660 = vmul.f32 %v1575, %v1608
      %v1661 = vmul.f32 %v1559, %v1608
      %v1662 = vmul.f32 %v1576, %v1612
      %v1663 = vmul.f32 %v1560, %v1612
      %v1664 = vmul.f32 %v1577, %v1616
      %v1665 = vmul.f32 %v1561, %v1616
      %v1666 = vmul.f32 %v1578, %v1620
      %v1667 = vmul.f32 %v1562, %v1620
      %v1668 = vmul.f32 %v1579, %v1624
      %v1669 = vmul.f32 %v1563, %v1624
      %v1670 = vmul.f32 %v1580, %v1628
      %v1671 = vmul.f32 %v1564, %v1628
      %v1672 = vmul.f32 %v1581, %v1632
      %v1673 = vmul.f32 %v1565, %v1632
      %v1674 = vmul.f32 %v1582, %v1636
      %v1675 = vmul.f32 %v1566, %v1636
      %v1676 = vmul.f32 %v1583, %v1640
      %v1677 = vmul.f32 %v1567, %v1640
      %v1678 = vmul.f32 %v1584, %v1644
      %v1679 = vmul.f32 %v1568, %v1644
      %v1680 = vmul.f32 %v1585, %v1648
      %v1681 = vmul.f32 %v1569, %v1648
      %v1682 = vperm.slane %v708, 3
      %v1683 = vperm.slane %v709, 3
      %v1684 = vmul.f32 %v1650, %v1682
      %v1685 = vmul.f32 %v1651, %v1683
      %v1686 = vmul.f32 %v1652, %v1682
      %v1687 = vmul.f32 %v1653, %v1683
      %v1688 = vmul.f32 %v1654, %v1682
      %v1689 = vmul.f32 %v1655, %v1683
      %v1690 = vmul.f32 %v1656, %v1682
      %v1691 = vmul.f32 %v1657, %v1683
      %v1692 = vmul.f32 %v1658, %v1682
      %v1693 = vmul.f32 %v1659, %v1683
      %v1694 = vmul.f32 %v1660, %v1682
      %v1695 = vmul.f32 %v1661, %v1683
      %v1696 = vmul.f32 %v1662, %v1682
      %v1697 = vmul.f32 %v1663, %v1683
      %v1698 = vmul.f32 %v1664, %v1682
      %v1699 = vmul.f32 %v1665, %v1683
      %v1700 = vmul.f32 %v1666, %v1682
      %v1701 = vmul.f32 %v1667, %v1683
      %v1702 = vmul.f32 %v1668, %v1682
      %v1703 = vmul.f32 %v1669, %v1683
      %v1704 = vmul.f32 %v1670, %v1682
      %v1705 = vmul.f32 %v1671, %v1683
      %v1706 = vmul.f32 %v1672, %v1682
      %v1707 = vmul.f32 %v1673, %v1683
      %v1708 = vmul.f32 %v1674, %v1682
      %v1709 = vmul.f32 %v1675, %v1683
      %v1710 = vmul.f32 %v1676, %v1682
      %v1711 = vmul.f32 %v1677, %v1683
      %v1712 = vmul.f32 %v1678, %v1682
      %v1713 = vmul.f32 %v1679, %v1683
      %v1714 = vmul.f32 %v1680, %v1682
      %v1715 = vmul.f32 %v1681, %v1683
      %v1716 = vadd.f32 %v1457, %v1684
      %v1717 = vadd.f32 %v1458, %v1685
      %v1718 = vadd.f32 %v1459, %v1686
      %v1719 = vadd.f32 %v1460, %v1687
      %v1720 = vadd.f32 %v1461, %v1688
      %v1721 = vadd.f32 %v1462, %v1689
      %v1722 = vadd.f32 %v1463, %v1690
      %v1723 = vadd.f32 %v1464, %v1691
      %v1724 = vadd.f32 %v1465, %v1692
      %v1725 = vadd.f32 %v1466, %v1693
      %v1726 = vadd.f32 %v1467, %v1694
      %v1727 = vadd.f32 %v1468, %v1695
      %v1728 = vadd.f32 %v1469, %v1696
      %v1729 = vadd.f32 %v1470, %v1697
      %v1730 = vadd.f32 %v1471, %v1698
      %v1731 = vadd.f32 %v1472, %v1699
      %v1732 = vadd.f32 %v1473, %v1700
      %v1733 = vadd.f32 %v1474, %v1701
      %v1734 = vadd.f32 %v1475, %v1702
      %v1735 = vadd.f32 %v1476, %v1703
      %v1736 = vadd.f32 %v1477, %v1704
      %v1737 = vadd.f32 %v1478, %v1705
      %v1738 = vadd.f32 %v1479, %v1706
      %v1739 = vadd.f32 %v1480, %v1707
      %v1740 = vadd.f32 %v1481, %v1708
      %v1741 = vadd.f32 %v1482, %v1709
      %v1742 = vadd.f32 %v1483, %v1710
      %v1743 = vadd.f32 %v1484, %v1711
      %v1744 = vadd.f32 %v1485, %v1712
      %v1745 = vadd.f32 %v1486, %v1713
      %v1746 = vadd.f32 %v1487, %v1714
      %v1747 = vadd.f32 %v1488, %v1715
      %1748 = vset.pattern.permute.xlu0 4
      %1749 = vperm.xlu0 %1748, %v345
      %v1750 = vpop.permute.xlu0 %1749
      %1752 = vset.pattern.permute.xlu0 4
      %1753 = vperm.xlu0 %1752, %v346
      %v1754 = vpop.permute.xlu0 %1753
      %1756 = vset.pattern.permute.xlu0 4
      %1757 = vperm.xlu0 %1756, %v347
      %v1758 = vpop.permute.xlu0 %1757
      %1760 = vset.pattern.permute.xlu0 4
      %1761 = vperm.xlu0 %1760, %v348
      %v1762 = vpop.permute.xlu0 %1761
      %1764 = vset.pattern.permute.xlu0 4
      %1765 = vperm.xlu0 %1764, %v349
      %v1766 = vpop.permute.xlu0 %1765
      %1768 = vset.pattern.permute.xlu0 4
      %1769 = vperm.xlu0 %1768, %v350
      %v1770 = vpop.permute.xlu0 %1769
      %1772 = vset.pattern.permute.xlu0 4
      %1773 = vperm.xlu0 %1772, %v351
      %v1774 = vpop.permute.xlu0 %1773
      %1776 = vset.pattern.permute.xlu0 4
      %1777 = vperm.xlu0 %1776, %v352
      %v1778 = vpop.permute.xlu0 %1777
      %1780 = vset.pattern.permute.xlu0 4
      %1781 = vperm.xlu0 %1780, %v353
      %v1782 = vpop.permute.xlu0 %1781
      %1784 = vset.pattern.permute.xlu0 4
      %1785 = vperm.xlu0 %1784, %v354
      %v1786 = vpop.permute.xlu0 %1785
      %1788 = vset.pattern.permute.xlu0 4
      %1789 = vperm.xlu0 %1788, %v355
      %v1790 = vpop.permute.xlu0 %1789
      %1792 = vset.pattern.permute.xlu0 4
      %1793 = vperm.xlu0 %1792, %v356
      %v1794 = vpop.permute.xlu0 %1793
      %1796 = vset.pattern.permute.xlu0 4
      %1797 = vperm.xlu0 %1796, %v357
      %v1798 = vpop.permute.xlu0 %1797
      %1800 = vset.pattern.permute.xlu0 4
      %1801 = vperm.xlu0 %1800, %v358
      %v1802 = vpop.permute.xlu0 %1801
      %1804 = vset.pattern.permute.xlu0 4
      %1805 = vperm.xlu0 %1804, %v359
      %v1806 = vpop.permute.xlu0 %1805
      %1808 = vset.pattern.permute.xlu0 4
      %1809 = vperm.xlu0 %1808, %v360
      %v1810 = vpop.permute.xlu0 %1809
      %v1812 = vmul.f32 %v676, %v1750
      %v1813 = vmul.f32 %v677, %v1750
      %v1814 = vmul.f32 %v678, %v1754
      %v1815 = vmul.f32 %v679, %v1754
      %v1816 = vmul.f32 %v680, %v1758
      %v1817 = vmul.f32 %v681, %v1758
      %v1818 = vmul.f32 %v682, %v1762
      %v1819 = vmul.f32 %v683, %v1762
      %v1820 = vmul.f32 %v684, %v1766
      %v1821 = vmul.f32 %v685, %v1766
      %v1822 = vmul.f32 %v686, %v1770
      %v1823 = vmul.f32 %v687, %v1770
      %v1824 = vmul.f32 %v688, %v1774
      %v1825 = vmul.f32 %v689, %v1774
      %v1826 = vmul.f32 %v690, %v1778
      %v1827 = vmul.f32 %v691, %v1778
      %v1828 = vmul.f32 %v692, %v1782
      %v1829 = vmul.f32 %v693, %v1782
      %v1830 = vmul.f32 %v694, %v1786
      %v1831 = vmul.f32 %v695, %v1786
      %v1832 = vmul.f32 %v696, %v1790
      %v1833 = vmul.f32 %v697, %v1790
      %v1834 = vmul.f32 %v698, %v1794
      %v1835 = vmul.f32 %v699, %v1794
      %v1836 = vmul.f32 %v700, %v1798
      %v1837 = vmul.f32 %v701, %v1798
      %v1838 = vmul.f32 %v702, %v1802
      %v1839 = vmul.f32 %v703, %v1802
      %v1840 = vmul.f32 %v704, %v1806
      %v1841 = vmul.f32 %v705, %v1806
      %v1842 = vmul.f32 %v706, %v1810
      %v1843 = vmul.f32 %v707, %v1810
      %v1844 = vadd.f32 %v1716, %v1812
      %v1845 = vadd.f32 %v1717, %v1813
      %v1846 = vadd.f32 %v1718, %v1814
      %v1847 = vadd.f32 %v1719, %v1815
      %v1848 = vadd.f32 %v1720, %v1816
      %v1849 = vadd.f32 %v1721, %v1817
      %v1850 = vadd.f32 %v1722, %v1818
      %v1851 = vadd.f32 %v1723, %v1819
      %v1852 = vadd.f32 %v1724, %v1820
      %v1853 = vadd.f32 %v1725, %v1821
      %v1854 = vadd.f32 %v1726, %v1822
      %v1855 = vadd.f32 %v1727, %v1823
      %v1856 = vadd.f32 %v1728, %v1824
      %v1857 = vadd.f32 %v1729, %v1825
      %v1858 = vadd.f32 %v1730, %v1826
      %v1859 = vadd.f32 %v1731, %v1827
      %v1860 = vadd.f32 %v1732, %v1828
      %v1861 = vadd.f32 %v1733, %v1829
      %v1862 = vadd.f32 %v1734, %v1830
      %v1863 = vadd.f32 %v1735, %v1831
      %v1864 = vadd.f32 %v1736, %v1832
      %v1865 = vadd.f32 %v1737, %v1833
      %v1866 = vadd.f32 %v1738, %v1834
      %v1867 = vadd.f32 %v1739, %v1835
      %v1868 = vadd.f32 %v1740, %v1836
      %v1869 = vadd.f32 %v1741, %v1837
      %v1870 = vadd.f32 %v1742, %v1838
      %v1871 = vadd.f32 %v1743, %v1839
      %v1872 = vadd.f32 %v1744, %v1840
      %v1873 = vadd.f32 %v1745, %v1841
      %v1874 = vadd.f32 %v1746, %v1842
      %v1875 = vadd.f32 %v1747, %v1843
      %1876 = vrot.lane.b32.xlu0 %v676, 127
      %v1877 = vpop.permute.xlu0 %1876
      %1878 = vrot.lane.b32.xlu0 %v678, 127
      %v1879 = vpop.permute.xlu0 %1878
      %1880 = vrot.lane.b32.xlu0 %v680, 127
      %v1881 = vpop.permute.xlu0 %1880
      %1882 = vrot.lane.b32.xlu0 %v682, 127
      %v1883 = vpop.permute.xlu0 %1882
      %1884 = vrot.lane.b32.xlu0 %v684, 127
      %v1885 = vpop.permute.xlu0 %1884
      %1886 = vrot.lane.b32.xlu0 %v686, 127
      %v1887 = vpop.permute.xlu0 %1886
      %1888 = vrot.lane.b32.xlu0 %v688, 127
      %v1889 = vpop.permute.xlu0 %1888
      %1890 = vrot.lane.b32.xlu0 %v690, 127
      %v1891 = vpop.permute.xlu0 %1890
      %1892 = vrot.lane.b32.xlu0 %v692, 127
      %v1893 = vpop.permute.xlu0 %1892
      %1894 = vrot.lane.b32.xlu0 %v694, 127
      %v1895 = vpop.permute.xlu0 %1894
      %1896 = vrot.lane.b32.xlu0 %v696, 127
      %v1897 = vpop.permute.xlu0 %1896
      %1898 = vrot.lane.b32.xlu0 %v698, 127
      %v1899 = vpop.permute.xlu0 %1898
      %1900 = vrot.lane.b32.xlu0 %v700, 127
      %v1901 = vpop.permute.xlu0 %1900
      %1902 = vrot.lane.b32.xlu0 %v702, 127
      %v1903 = vpop.permute.xlu0 %1902
      %1904 = vrot.lane.b32.xlu0 %v704, 127
      %v1905 = vpop.permute.xlu0 %1904
      %1906 = vrot.lane.b32.xlu0 %v706, 127
      %v1907 = vpop.permute.xlu0 %1906
      %1908 = vrot.lane.b32.xlu0 %v677, 127
      %v1909 = vpop.permute.xlu0 %1908
      %1910 = vrot.lane.b32.xlu0 %v679, 127
      %v1911 = vpop.permute.xlu0 %1910
      %1912 = vrot.lane.b32.xlu0 %v681, 127
      %v1913 = vpop.permute.xlu0 %1912
      %1914 = vrot.lane.b32.xlu0 %v683, 127
      %v1915 = vpop.permute.xlu0 %1914
      %1916 = vrot.lane.b32.xlu0 %v685, 127
      %v1917 = vpop.permute.xlu0 %1916
      %1918 = vrot.lane.b32.xlu0 %v687, 127
      %v1919 = vpop.permute.xlu0 %1918
      %1920 = vrot.lane.b32.xlu0 %v689, 127
      %v1921 = vpop.permute.xlu0 %1920
      %1922 = vrot.lane.b32.xlu0 %v691, 127
      %v1923 = vpop.permute.xlu0 %1922
      %1924 = vrot.lane.b32.xlu0 %v693, 127
      %v1925 = vpop.permute.xlu0 %1924
      %1926 = vrot.lane.b32.xlu0 %v695, 127
      %v1927 = vpop.permute.xlu0 %1926
      %1928 = vrot.lane.b32.xlu0 %v697, 127
      %v1929 = vpop.permute.xlu0 %1928
      %1930 = vrot.lane.b32.xlu0 %v699, 127
      %v1931 = vpop.permute.xlu0 %1930
      %1932 = vrot.lane.b32.xlu0 %v701, 127
      %v1933 = vpop.permute.xlu0 %1932
      %1934 = vrot.lane.b32.xlu0 %v703, 127
      %v1935 = vpop.permute.xlu0 %1934
      %1936 = vrot.lane.b32.xlu0 %v705, 127
      %v1937 = vpop.permute.xlu0 %1936
      %1938 = vrot.lane.b32.xlu0 %v707, 127
      %v1939 = vpop.permute.xlu0 %1938
      %vm1940 = vcmp.lt.s32.totalorder %v775, 127
      %v1941 = vsel %vm1940, %v1877, %v1909
      %v1942 = vsel %vm1940, %v1879, %v1911
      %v1943 = vsel %vm1940, %v1881, %v1913
      %v1944 = vsel %vm1940, %v1883, %v1915
      %v1945 = vsel %vm1940, %v1885, %v1917
      %v1946 = vsel %vm1940, %v1887, %v1919
      %v1947 = vsel %vm1940, %v1889, %v1921
      %v1948 = vsel %vm1940, %v1891, %v1923
      %v1949 = vsel %vm1940, %v1893, %v1925
      %v1950 = vsel %vm1940, %v1895, %v1927
      %v1951 = vsel %vm1940, %v1897, %v1929
      %v1952 = vsel %vm1940, %v1899, %v1931
      %v1953 = vsel %vm1940, %v1901, %v1933
      %v1954 = vsel %vm1940, %v1903, %v1935
      %v1955 = vsel %vm1940, %v1905, %v1937
      %v1956 = vsel %vm1940, %v1907, %v1939
      %v1957 = vsel %vm1940, %v1909, %v1877
      %v1958 = vsel %vm1940, %v1911, %v1879
      %v1959 = vsel %vm1940, %v1913, %v1881
      %v1960 = vsel %vm1940, %v1915, %v1883
      %v1961 = vsel %vm1940, %v1917, %v1885
      %v1962 = vsel %vm1940, %v1919, %v1887
      %v1963 = vsel %vm1940, %v1921, %v1889
      %v1964 = vsel %vm1940, %v1923, %v1891
      %v1965 = vsel %vm1940, %v1925, %v1893
      %v1966 = vsel %vm1940, %v1927, %v1895
      %v1967 = vsel %vm1940, %v1929, %v1897
      %v1968 = vsel %vm1940, %v1931, %v1899
      %v1969 = vsel %vm1940, %v1933, %v1901
      %v1970 = vsel %vm1940, %v1935, %v1903
      %v1971 = vsel %vm1940, %v1937, %v1905
      %v1972 = vsel %vm1940, %v1939, %v1907
      %1973 = vset.pattern.permute.xlu0 5
      %1974 = vperm.xlu0 %1973, %v345
      %v1975 = vpop.permute.xlu0 %1974
      %1977 = vset.pattern.permute.xlu0 5
      %1978 = vperm.xlu0 %1977, %v346
      %v1979 = vpop.permute.xlu0 %1978
      %1981 = vset.pattern.permute.xlu0 5
      %1982 = vperm.xlu0 %1981, %v347
      %v1983 = vpop.permute.xlu0 %1982
      %1985 = vset.pattern.permute.xlu0 5
      %1986 = vperm.xlu0 %1985, %v348
      %v1987 = vpop.permute.xlu0 %1986
      %1989 = vset.pattern.permute.xlu0 5
      %1990 = vperm.xlu0 %1989, %v349
      %v1991 = vpop.permute.xlu0 %1990
      %1993 = vset.pattern.permute.xlu0 5
      %1994 = vperm.xlu0 %1993, %v350
      %v1995 = vpop.permute.xlu0 %1994
      %1997 = vset.pattern.permute.xlu0 5
      %1998 = vperm.xlu0 %1997, %v351
      %v1999 = vpop.permute.xlu0 %1998
      %2001 = vset.pattern.permute.xlu0 5
      %2002 = vperm.xlu0 %2001, %v352
      %v2003 = vpop.permute.xlu0 %2002
      %2005 = vset.pattern.permute.xlu0 5
      %2006 = vperm.xlu0 %2005, %v353
      %v2007 = vpop.permute.xlu0 %2006
      %2009 = vset.pattern.permute.xlu0 5
      %2010 = vperm.xlu0 %2009, %v354
      %v2011 = vpop.permute.xlu0 %2010
      %2013 = vset.pattern.permute.xlu0 5
      %2014 = vperm.xlu0 %2013, %v355
      %v2015 = vpop.permute.xlu0 %2014
      %2017 = vset.pattern.permute.xlu0 5
      %2018 = vperm.xlu0 %2017, %v356
      %v2019 = vpop.permute.xlu0 %2018
      %2021 = vset.pattern.permute.xlu0 5
      %2022 = vperm.xlu0 %2021, %v357
      %v2023 = vpop.permute.xlu0 %2022
      %2025 = vset.pattern.permute.xlu0 5
      %2026 = vperm.xlu0 %2025, %v358
      %v2027 = vpop.permute.xlu0 %2026
      %2029 = vset.pattern.permute.xlu0 5
      %2030 = vperm.xlu0 %2029, %v359
      %v2031 = vpop.permute.xlu0 %2030
      %2033 = vset.pattern.permute.xlu0 5
      %2034 = vperm.xlu0 %2033, %v360
      %v2035 = vpop.permute.xlu0 %2034
      %v2037 = vmul.f32 %v1941, %v1975
      %v2038 = vmul.f32 %v1957, %v1975
      %v2039 = vmul.f32 %v1942, %v1979
      %v2040 = vmul.f32 %v1958, %v1979
      %v2041 = vmul.f32 %v1943, %v1983
      %v2042 = vmul.f32 %v1959, %v1983
      %v2043 = vmul.f32 %v1944, %v1987
      %v2044 = vmul.f32 %v1960, %v1987
      %v2045 = vmul.f32 %v1945, %v1991
      %v2046 = vmul.f32 %v1961, %v1991
      %v2047 = vmul.f32 %v1946, %v1995
      %v2048 = vmul.f32 %v1962, %v1995
      %v2049 = vmul.f32 %v1947, %v1999
      %v2050 = vmul.f32 %v1963, %v1999
      %v2051 = vmul.f32 %v1948, %v2003
      %v2052 = vmul.f32 %v1964, %v2003
      %v2053 = vmul.f32 %v1949, %v2007
      %v2054 = vmul.f32 %v1965, %v2007
      %v2055 = vmul.f32 %v1950, %v2011
      %v2056 = vmul.f32 %v1966, %v2011
      %v2057 = vmul.f32 %v1951, %v2015
      %v2058 = vmul.f32 %v1967, %v2015
      %v2059 = vmul.f32 %v1952, %v2019
      %v2060 = vmul.f32 %v1968, %v2019
      %v2061 = vmul.f32 %v1953, %v2023
      %v2062 = vmul.f32 %v1969, %v2023
      %v2063 = vmul.f32 %v1954, %v2027
      %v2064 = vmul.f32 %v1970, %v2027
      %v2065 = vmul.f32 %v1955, %v2031
      %v2066 = vmul.f32 %v1971, %v2031
      %v2067 = vmul.f32 %v1956, %v2035
      %v2068 = vmul.f32 %v1972, %v2035
      %v2069 = vperm.slane %v708, 4
      %v2070 = vperm.slane %v709, 4
      %v2071 = vmul.f32 %v2037, %v2069
      %v2072 = vmul.f32 %v2038, %v2070
      %v2073 = vmul.f32 %v2039, %v2069
      %v2074 = vmul.f32 %v2040, %v2070
      %v2075 = vmul.f32 %v2041, %v2069
      %v2076 = vmul.f32 %v2042, %v2070
      %v2077 = vmul.f32 %v2043, %v2069
      %v2078 = vmul.f32 %v2044, %v2070
      %v2079 = vmul.f32 %v2045, %v2069
      %v2080 = vmul.f32 %v2046, %v2070
      %v2081 = vmul.f32 %v2047, %v2069
      %v2082 = vmul.f32 %v2048, %v2070
      %v2083 = vmul.f32 %v2049, %v2069
      %v2084 = vmul.f32 %v2050, %v2070
      %v2085 = vmul.f32 %v2051, %v2069
      %v2086 = vmul.f32 %v2052, %v2070
      %v2087 = vmul.f32 %v2053, %v2069
      %v2088 = vmul.f32 %v2054, %v2070
      %v2089 = vmul.f32 %v2055, %v2069
      %v2090 = vmul.f32 %v2056, %v2070
      %v2091 = vmul.f32 %v2057, %v2069
      %v2092 = vmul.f32 %v2058, %v2070
      %v2093 = vmul.f32 %v2059, %v2069
      %v2094 = vmul.f32 %v2060, %v2070
      %v2095 = vmul.f32 %v2061, %v2069
      %v2096 = vmul.f32 %v2062, %v2070
      %v2097 = vmul.f32 %v2063, %v2069
      %v2098 = vmul.f32 %v2064, %v2070
      %v2099 = vmul.f32 %v2065, %v2069
      %v2100 = vmul.f32 %v2066, %v2070
      %v2101 = vmul.f32 %v2067, %v2069
      %v2102 = vmul.f32 %v2068, %v2070
      %v2103 = vadd.f32 %v1844, %v2071
      %v2104 = vadd.f32 %v1845, %v2072
      %v2105 = vadd.f32 %v1846, %v2073
      %v2106 = vadd.f32 %v1847, %v2074
      %v2107 = vadd.f32 %v1848, %v2075
      %v2108 = vadd.f32 %v1849, %v2076
      %v2109 = vadd.f32 %v1850, %v2077
      %v2110 = vadd.f32 %v1851, %v2078
      %v2111 = vadd.f32 %v1852, %v2079
      %v2112 = vadd.f32 %v1853, %v2080
      %v2113 = vadd.f32 %v1854, %v2081
      %v2114 = vadd.f32 %v1855, %v2082
      %v2115 = vadd.f32 %v1856, %v2083
      %v2116 = vadd.f32 %v1857, %v2084
      %v2117 = vadd.f32 %v1858, %v2085
      %v2118 = vadd.f32 %v1859, %v2086
      %v2119 = vadd.f32 %v1860, %v2087
      %v2120 = vadd.f32 %v1861, %v2088
      %v2121 = vadd.f32 %v1862, %v2089
      %v2122 = vadd.f32 %v1863, %v2090
      %v2123 = vadd.f32 %v1864, %v2091
      %v2124 = vadd.f32 %v1865, %v2092
      %v2125 = vadd.f32 %v1866, %v2093
      %v2126 = vadd.f32 %v1867, %v2094
      %v2127 = vadd.f32 %v1868, %v2095
      %v2128 = vadd.f32 %v1869, %v2096
      %v2129 = vadd.f32 %v1870, %v2097
      %v2130 = vadd.f32 %v1871, %v2098
      %v2131 = vadd.f32 %v1872, %v2099
      %v2132 = vadd.f32 %v1873, %v2100
      %v2133 = vadd.f32 %v1874, %v2101
      %v2134 = vadd.f32 %v1875, %v2102
      %2135 = vrot.lane.b32.xlu0 %v676, 113
      %v2136 = vpop.permute.xlu0 %2135
      %2137 = vrot.lane.b32.xlu0 %v678, 113
      %v2138 = vpop.permute.xlu0 %2137
      %2139 = vrot.lane.b32.xlu0 %v680, 113
      %v2140 = vpop.permute.xlu0 %2139
      %2141 = vrot.lane.b32.xlu0 %v682, 113
      %v2142 = vpop.permute.xlu0 %2141
      %2143 = vrot.lane.b32.xlu0 %v684, 113
      %v2144 = vpop.permute.xlu0 %2143
      %2145 = vrot.lane.b32.xlu0 %v686, 113
      %v2146 = vpop.permute.xlu0 %2145
      %2147 = vrot.lane.b32.xlu0 %v688, 113
      %v2148 = vpop.permute.xlu0 %2147
      %2149 = vrot.lane.b32.xlu0 %v690, 113
      %v2150 = vpop.permute.xlu0 %2149
      %2151 = vrot.lane.b32.xlu0 %v692, 113
      %v2152 = vpop.permute.xlu0 %2151
      %2153 = vrot.lane.b32.xlu0 %v694, 113
      %v2154 = vpop.permute.xlu0 %2153
      %2155 = vrot.lane.b32.xlu0 %v696, 113
      %v2156 = vpop.permute.xlu0 %2155
      %2157 = vrot.lane.b32.xlu0 %v698, 113
      %v2158 = vpop.permute.xlu0 %2157
      %2159 = vrot.lane.b32.xlu0 %v700, 113
      %v2160 = vpop.permute.xlu0 %2159
      %2161 = vrot.lane.b32.xlu0 %v702, 113
      %v2162 = vpop.permute.xlu0 %2161
      %2163 = vrot.lane.b32.xlu0 %v704, 113
      %v2164 = vpop.permute.xlu0 %2163
      %2165 = vrot.lane.b32.xlu0 %v706, 113
      %v2166 = vpop.permute.xlu0 %2165
      %2167 = vrot.lane.b32.xlu0 %v677, 113
      %v2168 = vpop.permute.xlu0 %2167
      %2169 = vrot.lane.b32.xlu0 %v679, 113
      %v2170 = vpop.permute.xlu0 %2169
      %2171 = vrot.lane.b32.xlu0 %v681, 113
      %v2172 = vpop.permute.xlu0 %2171
      %2173 = vrot.lane.b32.xlu0 %v683, 113
      %v2174 = vpop.permute.xlu0 %2173
      %2175 = vrot.lane.b32.xlu0 %v685, 113
      %v2176 = vpop.permute.xlu0 %2175
      %2177 = vrot.lane.b32.xlu0 %v687, 113
      %v2178 = vpop.permute.xlu0 %2177
      %2179 = vrot.lane.b32.xlu0 %v689, 113
      %v2180 = vpop.permute.xlu0 %2179
      %2181 = vrot.lane.b32.xlu0 %v691, 113
      %v2182 = vpop.permute.xlu0 %2181
      %2183 = vrot.lane.b32.xlu0 %v693, 113
      %v2184 = vpop.permute.xlu0 %2183
      %2185 = vrot.lane.b32.xlu0 %v695, 113
      %v2186 = vpop.permute.xlu0 %2185
      %2187 = vrot.lane.b32.xlu0 %v697, 113
      %v2188 = vpop.permute.xlu0 %2187
      %2189 = vrot.lane.b32.xlu0 %v699, 113
      %v2190 = vpop.permute.xlu0 %2189
      %2191 = vrot.lane.b32.xlu0 %v701, 113
      %v2192 = vpop.permute.xlu0 %2191
      %2193 = vrot.lane.b32.xlu0 %v703, 113
      %v2194 = vpop.permute.xlu0 %2193
      %2195 = vrot.lane.b32.xlu0 %v705, 113
      %v2196 = vpop.permute.xlu0 %2195
      %2197 = vrot.lane.b32.xlu0 %v707, 113
      %v2198 = vpop.permute.xlu0 %2197
      %vm2199 = vcmp.lt.s32.totalorder %v775, 113
      %v2200 = vsel %vm2199, %v2136, %v2168
      %v2201 = vsel %vm2199, %v2138, %v2170
      %v2202 = vsel %vm2199, %v2140, %v2172
      %v2203 = vsel %vm2199, %v2142, %v2174
      %v2204 = vsel %vm2199, %v2144, %v2176
      %v2205 = vsel %vm2199, %v2146, %v2178
      %v2206 = vsel %vm2199, %v2148, %v2180
      %v2207 = vsel %vm2199, %v2150, %v2182
      %v2208 = vsel %vm2199, %v2152, %v2184
      %v2209 = vsel %vm2199, %v2154, %v2186
      %v2210 = vsel %vm2199, %v2156, %v2188
      %v2211 = vsel %vm2199, %v2158, %v2190
      %v2212 = vsel %vm2199, %v2160, %v2192
      %v2213 = vsel %vm2199, %v2162, %v2194
      %v2214 = vsel %vm2199, %v2164, %v2196
      %v2215 = vsel %vm2199, %v2166, %v2198
      %v2216 = vsel %vm2199, %v2168, %v2136
      %v2217 = vsel %vm2199, %v2170, %v2138
      %v2218 = vsel %vm2199, %v2172, %v2140
      %v2219 = vsel %vm2199, %v2174, %v2142
      %v2220 = vsel %vm2199, %v2176, %v2144
      %v2221 = vsel %vm2199, %v2178, %v2146
      %v2222 = vsel %vm2199, %v2180, %v2148
      %v2223 = vsel %vm2199, %v2182, %v2150
      %v2224 = vsel %vm2199, %v2184, %v2152
      %v2225 = vsel %vm2199, %v2186, %v2154
      %v2226 = vsel %vm2199, %v2188, %v2156
      %v2227 = vsel %vm2199, %v2190, %v2158
      %v2228 = vsel %vm2199, %v2192, %v2160
      %v2229 = vsel %vm2199, %v2194, %v2162
      %v2230 = vsel %vm2199, %v2196, %v2164
      %v2231 = vsel %vm2199, %v2198, %v2166
      %2232 = vset.pattern.permute.xlu0 6
      %2233 = vperm.xlu0 %2232, %v345
      %v2234 = vpop.permute.xlu0 %2233
      %2236 = vset.pattern.permute.xlu0 6
      %2237 = vperm.xlu0 %2236, %v346
      %v2238 = vpop.permute.xlu0 %2237
      %2240 = vset.pattern.permute.xlu0 6
      %2241 = vperm.xlu0 %2240, %v347
      %v2242 = vpop.permute.xlu0 %2241
      %2244 = vset.pattern.permute.xlu0 6
      %2245 = vperm.xlu0 %2244, %v348
      %v2246 = vpop.permute.xlu0 %2245
      %2248 = vset.pattern.permute.xlu0 6
      %2249 = vperm.xlu0 %2248, %v349
      %v2250 = vpop.permute.xlu0 %2249
      %2252 = vset.pattern.permute.xlu0 6
      %2253 = vperm.xlu0 %2252, %v350
      %v2254 = vpop.permute.xlu0 %2253
      %2256 = vset.pattern.permute.xlu0 6
      %2257 = vperm.xlu0 %2256, %v351
      %v2258 = vpop.permute.xlu0 %2257
      %2260 = vset.pattern.permute.xlu0 6
      %2261 = vperm.xlu0 %2260, %v352
      %v2262 = vpop.permute.xlu0 %2261
      %2264 = vset.pattern.permute.xlu0 6
      %2265 = vperm.xlu0 %2264, %v353
      %v2266 = vpop.permute.xlu0 %2265
      %2268 = vset.pattern.permute.xlu0 6
      %2269 = vperm.xlu0 %2268, %v354
      %v2270 = vpop.permute.xlu0 %2269
      %2272 = vset.pattern.permute.xlu0 6
      %2273 = vperm.xlu0 %2272, %v355
      %v2274 = vpop.permute.xlu0 %2273
      %2276 = vset.pattern.permute.xlu0 6
      %2277 = vperm.xlu0 %2276, %v356
      %v2278 = vpop.permute.xlu0 %2277
      %2280 = vset.pattern.permute.xlu0 6
      %2281 = vperm.xlu0 %2280, %v357
      %v2282 = vpop.permute.xlu0 %2281
      %2284 = vset.pattern.permute.xlu0 6
      %2285 = vperm.xlu0 %2284, %v358
      %v2286 = vpop.permute.xlu0 %2285
      %2288 = vset.pattern.permute.xlu0 6
      %2289 = vperm.xlu0 %2288, %v359
      %v2290 = vpop.permute.xlu0 %2289
      %2292 = vset.pattern.permute.xlu0 6
      %2293 = vperm.xlu0 %2292, %v360
      %v2294 = vpop.permute.xlu0 %2293
      %v2296 = vmul.f32 %v2200, %v2234
      %v2297 = vmul.f32 %v2216, %v2234
      %v2298 = vmul.f32 %v2201, %v2238
      %v2299 = vmul.f32 %v2217, %v2238
      %v2300 = vmul.f32 %v2202, %v2242
      %v2301 = vmul.f32 %v2218, %v2242
      %v2302 = vmul.f32 %v2203, %v2246
      %v2303 = vmul.f32 %v2219, %v2246
      %v2304 = vmul.f32 %v2204, %v2250
      %v2305 = vmul.f32 %v2220, %v2250
      %v2306 = vmul.f32 %v2205, %v2254
      %v2307 = vmul.f32 %v2221, %v2254
      %v2308 = vmul.f32 %v2206, %v2258
      %v2309 = vmul.f32 %v2222, %v2258
      %v2310 = vmul.f32 %v2207, %v2262
      %v2311 = vmul.f32 %v2223, %v2262
      %v2312 = vmul.f32 %v2208, %v2266
      %v2313 = vmul.f32 %v2224, %v2266
      %v2314 = vmul.f32 %v2209, %v2270
      %v2315 = vmul.f32 %v2225, %v2270
      %v2316 = vmul.f32 %v2210, %v2274
      %v2317 = vmul.f32 %v2226, %v2274
      %v2318 = vmul.f32 %v2211, %v2278
      %v2319 = vmul.f32 %v2227, %v2278
      %v2320 = vmul.f32 %v2212, %v2282
      %v2321 = vmul.f32 %v2228, %v2282
      %v2322 = vmul.f32 %v2213, %v2286
      %v2323 = vmul.f32 %v2229, %v2286
      %v2324 = vmul.f32 %v2214, %v2290
      %v2325 = vmul.f32 %v2230, %v2290
      %v2326 = vmul.f32 %v2215, %v2294
      %v2327 = vmul.f32 %v2231, %v2294
      %v2328 = vperm.slane %v708, 5
      %v2329 = vperm.slane %v709, 5
      %v2330 = vmul.f32 %v2296, %v2328
      %v2331 = vmul.f32 %v2297, %v2329
      %v2332 = vmul.f32 %v2298, %v2328
      %v2333 = vmul.f32 %v2299, %v2329
      %v2334 = vmul.f32 %v2300, %v2328
      %v2335 = vmul.f32 %v2301, %v2329
      %v2336 = vmul.f32 %v2302, %v2328
      %v2337 = vmul.f32 %v2303, %v2329
      %v2338 = vmul.f32 %v2304, %v2328
      %v2339 = vmul.f32 %v2305, %v2329
      %v2340 = vmul.f32 %v2306, %v2328
      %v2341 = vmul.f32 %v2307, %v2329
      %v2342 = vmul.f32 %v2308, %v2328
      %v2343 = vmul.f32 %v2309, %v2329
      %v2344 = vmul.f32 %v2310, %v2328
      %v2345 = vmul.f32 %v2311, %v2329
      %v2346 = vmul.f32 %v2312, %v2328
      %v2347 = vmul.f32 %v2313, %v2329
      %v2348 = vmul.f32 %v2314, %v2328
      %v2349 = vmul.f32 %v2315, %v2329
      %v2350 = vmul.f32 %v2316, %v2328
      %v2351 = vmul.f32 %v2317, %v2329
      %v2352 = vmul.f32 %v2318, %v2328
      %v2353 = vmul.f32 %v2319, %v2329
      %v2354 = vmul.f32 %v2320, %v2328
      %v2355 = vmul.f32 %v2321, %v2329
      %v2356 = vmul.f32 %v2322, %v2328
      %v2357 = vmul.f32 %v2323, %v2329
      %v2358 = vmul.f32 %v2324, %v2328
      %v2359 = vmul.f32 %v2325, %v2329
      %v2360 = vmul.f32 %v2326, %v2328
      %v2361 = vmul.f32 %v2327, %v2329
      %v2362 = vadd.f32 %v2103, %v2330
      %v2363 = vadd.f32 %v2104, %v2331
      %v2364 = vadd.f32 %v2105, %v2332
      %v2365 = vadd.f32 %v2106, %v2333
      %v2366 = vadd.f32 %v2107, %v2334
      %v2367 = vadd.f32 %v2108, %v2335
      %v2368 = vadd.f32 %v2109, %v2336
      %v2369 = vadd.f32 %v2110, %v2337
      %v2370 = vadd.f32 %v2111, %v2338
      %v2371 = vadd.f32 %v2112, %v2339
      %v2372 = vadd.f32 %v2113, %v2340
      %v2373 = vadd.f32 %v2114, %v2341
      %v2374 = vadd.f32 %v2115, %v2342
      %v2375 = vadd.f32 %v2116, %v2343
      %v2376 = vadd.f32 %v2117, %v2344
      %v2377 = vadd.f32 %v2118, %v2345
      %v2378 = vadd.f32 %v2119, %v2346
      %v2379 = vadd.f32 %v2120, %v2347
      %v2380 = vadd.f32 %v2121, %v2348
      %v2381 = vadd.f32 %v2122, %v2349
      %v2382 = vadd.f32 %v2123, %v2350
      %v2383 = vadd.f32 %v2124, %v2351
      %v2384 = vadd.f32 %v2125, %v2352
      %v2385 = vadd.f32 %v2126, %v2353
      %v2386 = vadd.f32 %v2127, %v2354
      %v2387 = vadd.f32 %v2128, %v2355
      %v2388 = vadd.f32 %v2129, %v2356
      %v2389 = vadd.f32 %v2130, %v2357
      %v2390 = vadd.f32 %v2131, %v2358
      %v2391 = vadd.f32 %v2132, %v2359
      %v2392 = vadd.f32 %v2133, %v2360
      %v2393 = vadd.f32 %v2134, %v2361
      %2394 = vrot.lane.b32.xlu0 %v676, 112
      %v2395 = vpop.permute.xlu0 %2394
      %2396 = vrot.lane.b32.xlu0 %v678, 112
      %v2397 = vpop.permute.xlu0 %2396
      %2398 = vrot.lane.b32.xlu0 %v680, 112
      %v2399 = vpop.permute.xlu0 %2398
      %2400 = vrot.lane.b32.xlu0 %v682, 112
      %v2401 = vpop.permute.xlu0 %2400
      %2402 = vrot.lane.b32.xlu0 %v684, 112
      %v2403 = vpop.permute.xlu0 %2402
      %2404 = vrot.lane.b32.xlu0 %v686, 112
      %v2405 = vpop.permute.xlu0 %2404
      %2406 = vrot.lane.b32.xlu0 %v688, 112
      %v2407 = vpop.permute.xlu0 %2406
      %2408 = vrot.lane.b32.xlu0 %v690, 112
      %v2409 = vpop.permute.xlu0 %2408
      %2410 = vrot.lane.b32.xlu0 %v692, 112
      %v2411 = vpop.permute.xlu0 %2410
      %2412 = vrot.lane.b32.xlu0 %v694, 112
      %v2413 = vpop.permute.xlu0 %2412
      %2414 = vrot.lane.b32.xlu0 %v696, 112
      %v2415 = vpop.permute.xlu0 %2414
      %2416 = vrot.lane.b32.xlu0 %v698, 112
      %v2417 = vpop.permute.xlu0 %2416
      %2418 = vrot.lane.b32.xlu0 %v700, 112
      %v2419 = vpop.permute.xlu0 %2418
      %2420 = vrot.lane.b32.xlu0 %v702, 112
      %v2421 = vpop.permute.xlu0 %2420
      %2422 = vrot.lane.b32.xlu0 %v704, 112
      %v2423 = vpop.permute.xlu0 %2422
      %2424 = vrot.lane.b32.xlu0 %v706, 112
      %v2425 = vpop.permute.xlu0 %2424
      %2426 = vrot.lane.b32.xlu0 %v677, 112
      %v2427 = vpop.permute.xlu0 %2426
      %2428 = vrot.lane.b32.xlu0 %v679, 112
      %v2429 = vpop.permute.xlu0 %2428
      %2430 = vrot.lane.b32.xlu0 %v681, 112
      %v2431 = vpop.permute.xlu0 %2430
      %2432 = vrot.lane.b32.xlu0 %v683, 112
      %v2433 = vpop.permute.xlu0 %2432
      %2434 = vrot.lane.b32.xlu0 %v685, 112
      %v2435 = vpop.permute.xlu0 %2434
      %2436 = vrot.lane.b32.xlu0 %v687, 112
      %v2437 = vpop.permute.xlu0 %2436
      %2438 = vrot.lane.b32.xlu0 %v689, 112
      %v2439 = vpop.permute.xlu0 %2438
      %2440 = vrot.lane.b32.xlu0 %v691, 112
      %v2441 = vpop.permute.xlu0 %2440
      %2442 = vrot.lane.b32.xlu0 %v693, 112
      %v2443 = vpop.permute.xlu0 %2442
      %2444 = vrot.lane.b32.xlu0 %v695, 112
      %v2445 = vpop.permute.xlu0 %2444
      %2446 = vrot.lane.b32.xlu0 %v697, 112
      %v2447 = vpop.permute.xlu0 %2446
      %2448 = vrot.lane.b32.xlu0 %v699, 112
      %v2449 = vpop.permute.xlu0 %2448
      %2450 = vrot.lane.b32.xlu0 %v701, 112
      %v2451 = vpop.permute.xlu0 %2450
      %2452 = vrot.lane.b32.xlu0 %v703, 112
      %v2453 = vpop.permute.xlu0 %2452
      %2454 = vrot.lane.b32.xlu0 %v705, 112
      %v2455 = vpop.permute.xlu0 %2454
      %2456 = vrot.lane.b32.xlu0 %v707, 112
      %v2457 = vpop.permute.xlu0 %2456
      %vm2458 = vcmp.lt.s32.totalorder %v775, 112
      %v2459 = vsel %vm2458, %v2395, %v2427
      %v2460 = vsel %vm2458, %v2397, %v2429
      %v2461 = vsel %vm2458, %v2399, %v2431
      %v2462 = vsel %vm2458, %v2401, %v2433
      %v2463 = vsel %vm2458, %v2403, %v2435
      %v2464 = vsel %vm2458, %v2405, %v2437
      %v2465 = vsel %vm2458, %v2407, %v2439
      %v2466 = vsel %vm2458, %v2409, %v2441
      %v2467 = vsel %vm2458, %v2411, %v2443
      %v2468 = vsel %vm2458, %v2413, %v2445
      %v2469 = vsel %vm2458, %v2415, %v2447
      %v2470 = vsel %vm2458, %v2417, %v2449
      %v2471 = vsel %vm2458, %v2419, %v2451
      %v2472 = vsel %vm2458, %v2421, %v2453
      %v2473 = vsel %vm2458, %v2423, %v2455
      %v2474 = vsel %vm2458, %v2425, %v2457
      %v2475 = vsel %vm2458, %v2427, %v2395
      %v2476 = vsel %vm2458, %v2429, %v2397
      %v2477 = vsel %vm2458, %v2431, %v2399
      %v2478 = vsel %vm2458, %v2433, %v2401
      %v2479 = vsel %vm2458, %v2435, %v2403
      %v2480 = vsel %vm2458, %v2437, %v2405
      %v2481 = vsel %vm2458, %v2439, %v2407
      %v2482 = vsel %vm2458, %v2441, %v2409
      %v2483 = vsel %vm2458, %v2443, %v2411
      %v2484 = vsel %vm2458, %v2445, %v2413
      %v2485 = vsel %vm2458, %v2447, %v2415
      %v2486 = vsel %vm2458, %v2449, %v2417
      %v2487 = vsel %vm2458, %v2451, %v2419
      %v2488 = vsel %vm2458, %v2453, %v2421
      %v2489 = vsel %vm2458, %v2455, %v2423
      %v2490 = vsel %vm2458, %v2457, %v2425
      %2491 = vset.pattern.permute.xlu0 7
      %2492 = vperm.xlu0 %2491, %v345
      %v2493 = vpop.permute.xlu0 %2492
      %2495 = vset.pattern.permute.xlu0 7
      %2496 = vperm.xlu0 %2495, %v346
      %v2497 = vpop.permute.xlu0 %2496
      %2499 = vset.pattern.permute.xlu0 7
      %2500 = vperm.xlu0 %2499, %v347
      %v2501 = vpop.permute.xlu0 %2500
      %2503 = vset.pattern.permute.xlu0 7
      %2504 = vperm.xlu0 %2503, %v348
      %v2505 = vpop.permute.xlu0 %2504
      %2507 = vset.pattern.permute.xlu0 7
      %2508 = vperm.xlu0 %2507, %v349
      %v2509 = vpop.permute.xlu0 %2508
      %2511 = vset.pattern.permute.xlu0 7
      %2512 = vperm.xlu0 %2511, %v350
      %v2513 = vpop.permute.xlu0 %2512
      %2515 = vset.pattern.permute.xlu0 7
      %2516 = vperm.xlu0 %2515, %v351
      %v2517 = vpop.permute.xlu0 %2516
      %2519 = vset.pattern.permute.xlu0 7
      %2520 = vperm.xlu0 %2519, %v352
      %v2521 = vpop.permute.xlu0 %2520
      %2523 = vset.pattern.permute.xlu0 7
      %2524 = vperm.xlu0 %2523, %v353
      %v2525 = vpop.permute.xlu0 %2524
      %2527 = vset.pattern.permute.xlu0 7
      %2528 = vperm.xlu0 %2527, %v354
      %v2529 = vpop.permute.xlu0 %2528
      %2531 = vset.pattern.permute.xlu0 7
      %2532 = vperm.xlu0 %2531, %v355
      %v2533 = vpop.permute.xlu0 %2532
      %2535 = vset.pattern.permute.xlu0 7
      %2536 = vperm.xlu0 %2535, %v356
      %v2537 = vpop.permute.xlu0 %2536
      %2539 = vset.pattern.permute.xlu0 7
      %2540 = vperm.xlu0 %2539, %v357
      %v2541 = vpop.permute.xlu0 %2540
      %2543 = vset.pattern.permute.xlu0 7
      %2544 = vperm.xlu0 %2543, %v358
      %v2545 = vpop.permute.xlu0 %2544
      %2547 = vset.pattern.permute.xlu0 7
      %2548 = vperm.xlu0 %2547, %v359
      %v2549 = vpop.permute.xlu0 %2548
      %2551 = vset.pattern.permute.xlu0 7
      %2552 = vperm.xlu0 %2551, %v360
      %v2553 = vpop.permute.xlu0 %2552
      %v2555 = vmul.f32 %v2459, %v2493
      %v2556 = vmul.f32 %v2475, %v2493
      %v2557 = vmul.f32 %v2460, %v2497
      %v2558 = vmul.f32 %v2476, %v2497
      %v2559 = vmul.f32 %v2461, %v2501
      %v2560 = vmul.f32 %v2477, %v2501
      %v2561 = vmul.f32 %v2462, %v2505
      %v2562 = vmul.f32 %v2478, %v2505
      %v2563 = vmul.f32 %v2463, %v2509
      %v2564 = vmul.f32 %v2479, %v2509
      %v2565 = vmul.f32 %v2464, %v2513
      %v2566 = vmul.f32 %v2480, %v2513
      %v2567 = vmul.f32 %v2465, %v2517
      %v2568 = vmul.f32 %v2481, %v2517
      %v2569 = vmul.f32 %v2466, %v2521
      %v2570 = vmul.f32 %v2482, %v2521
      %v2571 = vmul.f32 %v2467, %v2525
      %v2572 = vmul.f32 %v2483, %v2525
      %v2573 = vmul.f32 %v2468, %v2529
      %v2574 = vmul.f32 %v2484, %v2529
      %v2575 = vmul.f32 %v2469, %v2533
      %v2576 = vmul.f32 %v2485, %v2533
      %v2577 = vmul.f32 %v2470, %v2537
      %v2578 = vmul.f32 %v2486, %v2537
      %v2579 = vmul.f32 %v2471, %v2541
      %v2580 = vmul.f32 %v2487, %v2541
      %v2581 = vmul.f32 %v2472, %v2545
      %v2582 = vmul.f32 %v2488, %v2545
      %v2583 = vmul.f32 %v2473, %v2549
      %v2584 = vmul.f32 %v2489, %v2549
      %v2585 = vmul.f32 %v2474, %v2553
      %v2586 = vmul.f32 %v2490, %v2553
      %v2587 = vperm.slane %v708, 6
      %v2588 = vperm.slane %v709, 6
      %v2589 = vmul.f32 %v2555, %v2587
      %v2590 = vmul.f32 %v2556, %v2588
      %v2591 = vmul.f32 %v2557, %v2587
      %v2592 = vmul.f32 %v2558, %v2588
      %v2593 = vmul.f32 %v2559, %v2587
      %v2594 = vmul.f32 %v2560, %v2588
      %v2595 = vmul.f32 %v2561, %v2587
      %v2596 = vmul.f32 %v2562, %v2588
      %v2597 = vmul.f32 %v2563, %v2587
      %v2598 = vmul.f32 %v2564, %v2588
      %v2599 = vmul.f32 %v2565, %v2587
      %v2600 = vmul.f32 %v2566, %v2588
      %v2601 = vmul.f32 %v2567, %v2587
      %v2602 = vmul.f32 %v2568, %v2588
      %v2603 = vmul.f32 %v2569, %v2587
      %v2604 = vmul.f32 %v2570, %v2588
      %v2605 = vmul.f32 %v2571, %v2587
      %v2606 = vmul.f32 %v2572, %v2588
      %v2607 = vmul.f32 %v2573, %v2587
      %v2608 = vmul.f32 %v2574, %v2588
      %v2609 = vmul.f32 %v2575, %v2587
      %v2610 = vmul.f32 %v2576, %v2588
      %v2611 = vmul.f32 %v2577, %v2587
      %v2612 = vmul.f32 %v2578, %v2588
      %v2613 = vmul.f32 %v2579, %v2587
      %v2614 = vmul.f32 %v2580, %v2588
      %v2615 = vmul.f32 %v2581, %v2587
      %v2616 = vmul.f32 %v2582, %v2588
      %v2617 = vmul.f32 %v2583, %v2587
      %v2618 = vmul.f32 %v2584, %v2588
      %v2619 = vmul.f32 %v2585, %v2587
      %v2620 = vmul.f32 %v2586, %v2588
      %v2621 = vadd.f32 %v2362, %v2589
      %v2622 = vadd.f32 %v2363, %v2590
      %v2623 = vadd.f32 %v2364, %v2591
      %v2624 = vadd.f32 %v2365, %v2592
      %v2625 = vadd.f32 %v2366, %v2593
      %v2626 = vadd.f32 %v2367, %v2594
      %v2627 = vadd.f32 %v2368, %v2595
      %v2628 = vadd.f32 %v2369, %v2596
      %v2629 = vadd.f32 %v2370, %v2597
      %v2630 = vadd.f32 %v2371, %v2598
      %v2631 = vadd.f32 %v2372, %v2599
      %v2632 = vadd.f32 %v2373, %v2600
      %v2633 = vadd.f32 %v2374, %v2601
      %v2634 = vadd.f32 %v2375, %v2602
      %v2635 = vadd.f32 %v2376, %v2603
      %v2636 = vadd.f32 %v2377, %v2604
      %v2637 = vadd.f32 %v2378, %v2605
      %v2638 = vadd.f32 %v2379, %v2606
      %v2639 = vadd.f32 %v2380, %v2607
      %v2640 = vadd.f32 %v2381, %v2608
      %v2641 = vadd.f32 %v2382, %v2609
      %v2642 = vadd.f32 %v2383, %v2610
      %v2643 = vadd.f32 %v2384, %v2611
      %v2644 = vadd.f32 %v2385, %v2612
      %v2645 = vadd.f32 %v2386, %v2613
      %v2646 = vadd.f32 %v2387, %v2614
      %v2647 = vadd.f32 %v2388, %v2615
      %v2648 = vadd.f32 %v2389, %v2616
      %v2649 = vadd.f32 %v2390, %v2617
      %v2650 = vadd.f32 %v2391, %v2618
      %v2651 = vadd.f32 %v2392, %v2619
      %v2652 = vadd.f32 %v2393, %v2620
      %2653 = vrot.lane.b32.xlu0 %v676, 111
      %v2654 = vpop.permute.xlu0 %2653
      %2655 = vrot.lane.b32.xlu0 %v678, 111
      %v2656 = vpop.permute.xlu0 %2655
      %2657 = vrot.lane.b32.xlu0 %v680, 111
      %v2658 = vpop.permute.xlu0 %2657
      %2659 = vrot.lane.b32.xlu0 %v682, 111
      %v2660 = vpop.permute.xlu0 %2659
      %2661 = vrot.lane.b32.xlu0 %v684, 111
      %v2662 = vpop.permute.xlu0 %2661
      %2663 = vrot.lane.b32.xlu0 %v686, 111
      %v2664 = vpop.permute.xlu0 %2663
      %2665 = vrot.lane.b32.xlu0 %v688, 111
      %v2666 = vpop.permute.xlu0 %2665
      %2667 = vrot.lane.b32.xlu0 %v690, 111
      %v2668 = vpop.permute.xlu0 %2667
      %2669 = vrot.lane.b32.xlu0 %v692, 111
      %v2670 = vpop.permute.xlu0 %2669
      %2671 = vrot.lane.b32.xlu0 %v694, 111
      %v2672 = vpop.permute.xlu0 %2671
      %2673 = vrot.lane.b32.xlu0 %v696, 111
      %v2674 = vpop.permute.xlu0 %2673
      %2675 = vrot.lane.b32.xlu0 %v698, 111
      %v2676 = vpop.permute.xlu0 %2675
      %2677 = vrot.lane.b32.xlu0 %v700, 111
      %v2678 = vpop.permute.xlu0 %2677
      %2679 = vrot.lane.b32.xlu0 %v702, 111
      %v2680 = vpop.permute.xlu0 %2679
      %2681 = vrot.lane.b32.xlu0 %v704, 111
      %v2682 = vpop.permute.xlu0 %2681
      %2683 = vrot.lane.b32.xlu0 %v706, 111
      %v2684 = vpop.permute.xlu0 %2683
      %2685 = vrot.lane.b32.xlu0 %v677, 111
      %v2686 = vpop.permute.xlu0 %2685
      %2687 = vrot.lane.b32.xlu0 %v679, 111
      %v2688 = vpop.permute.xlu0 %2687
      %2689 = vrot.lane.b32.xlu0 %v681, 111
      %v2690 = vpop.permute.xlu0 %2689
      %2691 = vrot.lane.b32.xlu0 %v683, 111
      %v2692 = vpop.permute.xlu0 %2691
      %2693 = vrot.lane.b32.xlu0 %v685, 111
      %v2694 = vpop.permute.xlu0 %2693
      %2695 = vrot.lane.b32.xlu0 %v687, 111
      %v2696 = vpop.permute.xlu0 %2695
      %2697 = vrot.lane.b32.xlu0 %v689, 111
      %v2698 = vpop.permute.xlu0 %2697
      %2699 = vrot.lane.b32.xlu0 %v691, 111
      %v2700 = vpop.permute.xlu0 %2699
      %2701 = vrot.lane.b32.xlu0 %v693, 111
      %v2702 = vpop.permute.xlu0 %2701
      %2703 = vrot.lane.b32.xlu0 %v695, 111
      %v2704 = vpop.permute.xlu0 %2703
      %2705 = vrot.lane.b32.xlu0 %v697, 111
      %v2706 = vpop.permute.xlu0 %2705
      %2707 = vrot.lane.b32.xlu0 %v699, 111
      %v2708 = vpop.permute.xlu0 %2707
      %2709 = vrot.lane.b32.xlu0 %v701, 111
      %v2710 = vpop.permute.xlu0 %2709
      %2711 = vrot.lane.b32.xlu0 %v703, 111
      %v2712 = vpop.permute.xlu0 %2711
      %2713 = vrot.lane.b32.xlu0 %v705, 111
      %v2714 = vpop.permute.xlu0 %2713
      %2715 = vrot.lane.b32.xlu0 %v707, 111
      %v2716 = vpop.permute.xlu0 %2715
      %vm2717 = vcmp.lt.s32.totalorder %v775, 111
      %v2718 = vsel %vm2717, %v2654, %v2686
      %v2719 = vsel %vm2717, %v2656, %v2688
      %v2720 = vsel %vm2717, %v2658, %v2690
      %v2721 = vsel %vm2717, %v2660, %v2692
      %v2722 = vsel %vm2717, %v2662, %v2694
      %v2723 = vsel %vm2717, %v2664, %v2696
      %v2724 = vsel %vm2717, %v2666, %v2698
      %v2725 = vsel %vm2717, %v2668, %v2700
      %v2726 = vsel %vm2717, %v2670, %v2702
      %v2727 = vsel %vm2717, %v2672, %v2704
      %v2728 = vsel %vm2717, %v2674, %v2706
      %v2729 = vsel %vm2717, %v2676, %v2708
      %v2730 = vsel %vm2717, %v2678, %v2710
      %v2731 = vsel %vm2717, %v2680, %v2712
      %v2732 = vsel %vm2717, %v2682, %v2714
      %v2733 = vsel %vm2717, %v2684, %v2716
      %v2734 = vsel %vm2717, %v2686, %v2654
      %v2735 = vsel %vm2717, %v2688, %v2656
      %v2736 = vsel %vm2717, %v2690, %v2658
      %v2737 = vsel %vm2717, %v2692, %v2660
      %v2738 = vsel %vm2717, %v2694, %v2662
      %v2739 = vsel %vm2717, %v2696, %v2664
      %v2740 = vsel %vm2717, %v2698, %v2666
      %v2741 = vsel %vm2717, %v2700, %v2668
      %v2742 = vsel %vm2717, %v2702, %v2670
      %v2743 = vsel %vm2717, %v2704, %v2672
      %v2744 = vsel %vm2717, %v2706, %v2674
      %v2745 = vsel %vm2717, %v2708, %v2676
      %v2746 = vsel %vm2717, %v2710, %v2678
      %v2747 = vsel %vm2717, %v2712, %v2680
      %v2748 = vsel %vm2717, %v2714, %v2682
      %v2749 = vsel %vm2717, %v2716, %v2684
      %2750 = vset.pattern.permute.xlu0 8
      %2751 = vperm.xlu0 %2750, %v345
      %v2752 = vpop.permute.xlu0 %2751
      %2754 = vset.pattern.permute.xlu0 8
      %2755 = vperm.xlu0 %2754, %v346
      %v2756 = vpop.permute.xlu0 %2755
      %2758 = vset.pattern.permute.xlu0 8
      %2759 = vperm.xlu0 %2758, %v347
      %v2760 = vpop.permute.xlu0 %2759
      %2762 = vset.pattern.permute.xlu0 8
      %2763 = vperm.xlu0 %2762, %v348
      %v2764 = vpop.permute.xlu0 %2763
      %2766 = vset.pattern.permute.xlu0 8
      %2767 = vperm.xlu0 %2766, %v349
      %v2768 = vpop.permute.xlu0 %2767
      %2770 = vset.pattern.permute.xlu0 8
      %2771 = vperm.xlu0 %2770, %v350
      %v2772 = vpop.permute.xlu0 %2771
      %2774 = vset.pattern.permute.xlu0 8
      %2775 = vperm.xlu0 %2774, %v351
      %v2776 = vpop.permute.xlu0 %2775
      %2778 = vset.pattern.permute.xlu0 8
      %2779 = vperm.xlu0 %2778, %v352
      %v2780 = vpop.permute.xlu0 %2779
      %2782 = vset.pattern.permute.xlu0 8
      %2783 = vperm.xlu0 %2782, %v353
      %v2784 = vpop.permute.xlu0 %2783
      %2786 = vset.pattern.permute.xlu0 8
      %2787 = vperm.xlu0 %2786, %v354
      %v2788 = vpop.permute.xlu0 %2787
      %2790 = vset.pattern.permute.xlu0 8
      %2791 = vperm.xlu0 %2790, %v355
      %v2792 = vpop.permute.xlu0 %2791
      %2794 = vset.pattern.permute.xlu0 8
      %2795 = vperm.xlu0 %2794, %v356
      %v2796 = vpop.permute.xlu0 %2795
      %2798 = vset.pattern.permute.xlu0 8
      %2799 = vperm.xlu0 %2798, %v357
      %v2800 = vpop.permute.xlu0 %2799
      %2802 = vset.pattern.permute.xlu0 8
      %2803 = vperm.xlu0 %2802, %v358
      %v2804 = vpop.permute.xlu0 %2803
      %2806 = vset.pattern.permute.xlu0 8
      %2807 = vperm.xlu0 %2806, %v359
      %v2808 = vpop.permute.xlu0 %2807
      %2810 = vset.pattern.permute.xlu0 8
      %2811 = vperm.xlu0 %2810, %v360
      %v2812 = vpop.permute.xlu0 %2811
      %v2814 = vmul.f32 %v2718, %v2752
      %v2815 = vmul.f32 %v2734, %v2752
      %v2816 = vmul.f32 %v2719, %v2756
      %v2817 = vmul.f32 %v2735, %v2756
      %v2818 = vmul.f32 %v2720, %v2760
      %v2819 = vmul.f32 %v2736, %v2760
      %v2820 = vmul.f32 %v2721, %v2764
      %v2821 = vmul.f32 %v2737, %v2764
      %v2822 = vmul.f32 %v2722, %v2768
      %v2823 = vmul.f32 %v2738, %v2768
      %v2824 = vmul.f32 %v2723, %v2772
      %v2825 = vmul.f32 %v2739, %v2772
      %v2826 = vmul.f32 %v2724, %v2776
      %v2827 = vmul.f32 %v2740, %v2776
      %v2828 = vmul.f32 %v2725, %v2780
      %v2829 = vmul.f32 %v2741, %v2780
      %v2830 = vmul.f32 %v2726, %v2784
      %v2831 = vmul.f32 %v2742, %v2784
      %v2832 = vmul.f32 %v2727, %v2788
      %v2833 = vmul.f32 %v2743, %v2788
      %v2834 = vmul.f32 %v2728, %v2792
      %v2835 = vmul.f32 %v2744, %v2792
      %v2836 = vmul.f32 %v2729, %v2796
      %v2837 = vmul.f32 %v2745, %v2796
      %v2838 = vmul.f32 %v2730, %v2800
      %v2839 = vmul.f32 %v2746, %v2800
      %v2840 = vmul.f32 %v2731, %v2804
      %v2841 = vmul.f32 %v2747, %v2804
      %v2842 = vmul.f32 %v2732, %v2808
      %v2843 = vmul.f32 %v2748, %v2808
      %v2844 = vmul.f32 %v2733, %v2812
      %v2845 = vmul.f32 %v2749, %v2812
      %v2846 = vperm.slane %v708, 7
      %v2847 = vperm.slane %v709, 7
      %v2848 = vmul.f32 %v2814, %v2846
      %v2849 = vmul.f32 %v2815, %v2847
      %v2850 = vmul.f32 %v2816, %v2846
      %v2851 = vmul.f32 %v2817, %v2847
      %v2852 = vmul.f32 %v2818, %v2846
      %v2853 = vmul.f32 %v2819, %v2847
      %v2854 = vmul.f32 %v2820, %v2846
      %v2855 = vmul.f32 %v2821, %v2847
      %v2856 = vmul.f32 %v2822, %v2846
      %v2857 = vmul.f32 %v2823, %v2847
      %v2858 = vmul.f32 %v2824, %v2846
      %v2859 = vmul.f32 %v2825, %v2847
      %v2860 = vmul.f32 %v2826, %v2846
      %v2861 = vmul.f32 %v2827, %v2847
      %v2862 = vmul.f32 %v2828, %v2846
      %v2863 = vmul.f32 %v2829, %v2847
      %v2864 = vmul.f32 %v2830, %v2846
      %v2865 = vmul.f32 %v2831, %v2847
      %v2866 = vmul.f32 %v2832, %v2846
      %v2867 = vmul.f32 %v2833, %v2847
      %v2868 = vmul.f32 %v2834, %v2846
      %v2869 = vmul.f32 %v2835, %v2847
      %v2870 = vmul.f32 %v2836, %v2846
      %v2871 = vmul.f32 %v2837, %v2847
      %v2872 = vmul.f32 %v2838, %v2846
      %v2873 = vmul.f32 %v2839, %v2847
      %v2874 = vmul.f32 %v2840, %v2846
      %v2875 = vmul.f32 %v2841, %v2847
      %v2876 = vmul.f32 %v2842, %v2846
      %v2877 = vmul.f32 %v2843, %v2847
      %v2878 = vmul.f32 %v2844, %v2846
      %v2879 = vmul.f32 %v2845, %v2847
      %v2880 = vadd.f32 %v2621, %v2848
      %v2881 = vadd.f32 %v2622, %v2849
      %v2882 = vadd.f32 %v2623, %v2850
      %v2883 = vadd.f32 %v2624, %v2851
      %v2884 = vadd.f32 %v2625, %v2852
      %v2885 = vadd.f32 %v2626, %v2853
      %v2886 = vadd.f32 %v2627, %v2854
      %v2887 = vadd.f32 %v2628, %v2855
      %v2888 = vadd.f32 %v2629, %v2856
      %v2889 = vadd.f32 %v2630, %v2857
      %v2890 = vadd.f32 %v2631, %v2858
      %v2891 = vadd.f32 %v2632, %v2859
      %v2892 = vadd.f32 %v2633, %v2860
      %v2893 = vadd.f32 %v2634, %v2861
      %v2894 = vadd.f32 %v2635, %v2862
      %v2895 = vadd.f32 %v2636, %v2863
      %v2896 = vadd.f32 %v2637, %v2864
      %v2897 = vadd.f32 %v2638, %v2865
      %v2898 = vadd.f32 %v2639, %v2866
      %v2899 = vadd.f32 %v2640, %v2867
      %v2900 = vadd.f32 %v2641, %v2868
      %v2901 = vadd.f32 %v2642, %v2869
      %v2902 = vadd.f32 %v2643, %v2870
      %v2903 = vadd.f32 %v2644, %v2871
      %v2904 = vadd.f32 %v2645, %v2872
      %v2905 = vadd.f32 %v2646, %v2873
      %v2906 = vadd.f32 %v2647, %v2874
      %v2907 = vadd.f32 %v2648, %v2875
      %v2908 = vadd.f32 %v2649, %v2876
      %v2909 = vadd.f32 %v2650, %v2877
      %v2910 = vadd.f32 %v2651, %v2878
      %v2911 = vadd.f32 %v2652, %v2879
      %2912 = vset.pattern.permute.xlu0 10
      %2913 = vperm.xlu0 %2912, %v345
      %v2914 = vpop.permute.xlu0 %2913
      %2916 = vset.pattern.permute.xlu0 10
      %2917 = vperm.xlu0 %2916, %v346
      %v2918 = vpop.permute.xlu0 %2917
      %2920 = vset.pattern.permute.xlu0 10
      %2921 = vperm.xlu0 %2920, %v347
      %v2922 = vpop.permute.xlu0 %2921
      %2924 = vset.pattern.permute.xlu0 10
      %2925 = vperm.xlu0 %2924, %v348
      %v2926 = vpop.permute.xlu0 %2925
      %2928 = vset.pattern.permute.xlu0 10
      %2929 = vperm.xlu0 %2928, %v349
      %v2930 = vpop.permute.xlu0 %2929
      %2932 = vset.pattern.permute.xlu0 10
      %2933 = vperm.xlu0 %2932, %v350
      %v2934 = vpop.permute.xlu0 %2933
      %2936 = vset.pattern.permute.xlu0 10
      %2937 = vperm.xlu0 %2936, %v351
      %v2938 = vpop.permute.xlu0 %2937
      %2940 = vset.pattern.permute.xlu0 10
      %2941 = vperm.xlu0 %2940, %v352
      %v2942 = vpop.permute.xlu0 %2941
      %2944 = vset.pattern.permute.xlu0 10
      %2945 = vperm.xlu0 %2944, %v353
      %v2946 = vpop.permute.xlu0 %2945
      %2948 = vset.pattern.permute.xlu0 10
      %2949 = vperm.xlu0 %2948, %v354
      %v2950 = vpop.permute.xlu0 %2949
      %2952 = vset.pattern.permute.xlu0 10
      %2953 = vperm.xlu0 %2952, %v355
      %v2954 = vpop.permute.xlu0 %2953
      %2956 = vset.pattern.permute.xlu0 10
      %2957 = vperm.xlu0 %2956, %v356
      %v2958 = vpop.permute.xlu0 %2957
      %2960 = vset.pattern.permute.xlu0 10
      %2961 = vperm.xlu0 %2960, %v357
      %v2962 = vpop.permute.xlu0 %2961
      %2964 = vset.pattern.permute.xlu0 10
      %2965 = vperm.xlu0 %2964, %v358
      %v2966 = vpop.permute.xlu0 %2965
      %2968 = vset.pattern.permute.xlu0 10
      %2969 = vperm.xlu0 %2968, %v359
      %v2970 = vpop.permute.xlu0 %2969
      %2972 = vset.pattern.permute.xlu0 10
      %2973 = vperm.xlu0 %2972, %v360
      %v2974 = vpop.permute.xlu0 %2973
      %v2976 = vadd.f32 %v2880, %v2914
      %v2977 = vadd.f32 %v2881, %v2914
      %v2978 = vadd.f32 %v2882, %v2918
      %v2979 = vadd.f32 %v2883, %v2918
      %v2980 = vadd.f32 %v2884, %v2922
      %v2981 = vadd.f32 %v2885, %v2922
      %v2982 = vadd.f32 %v2886, %v2926
      %v2983 = vadd.f32 %v2887, %v2926
      %v2984 = vadd.f32 %v2888, %v2930
      %v2985 = vadd.f32 %v2889, %v2930
      %v2986 = vadd.f32 %v2890, %v2934
      %v2987 = vadd.f32 %v2891, %v2934
      %v2988 = vadd.f32 %v2892, %v2938
      %v2989 = vadd.f32 %v2893, %v2938
      %v2990 = vadd.f32 %v2894, %v2942
      %v2991 = vadd.f32 %v2895, %v2942
      %v2992 = vadd.f32 %v2896, %v2946
      %v2993 = vadd.f32 %v2897, %v2946
      %v2994 = vadd.f32 %v2898, %v2950
      %v2995 = vadd.f32 %v2899, %v2950
      %v2996 = vadd.f32 %v2900, %v2954
      %v2997 = vadd.f32 %v2901, %v2954
      %v2998 = vadd.f32 %v2902, %v2958
      %v2999 = vadd.f32 %v2903, %v2958
      %v3000 = vadd.f32 %v2904, %v2962
      %v3001 = vadd.f32 %v2905, %v2962
      %v3002 = vadd.f32 %v2906, %v2966
      %v3003 = vadd.f32 %v2907, %v2966
      %v3004 = vadd.f32 %v2908, %v2970
      %v3005 = vadd.f32 %v2909, %v2970
      %v3006 = vadd.f32 %v2910, %v2974
      %v3007 = vadd.f32 %v2911, %v2974
      %v3008 = vmax.f32 %v2976, 0.0
      %v3009 = vmax.f32 %v2977, 0.0
      %v3010 = vmax.f32 %v2978, 0.0
      %v3011 = vmax.f32 %v2979, 0.0
      %v3012 = vmax.f32 %v2980, 0.0
      %v3013 = vmax.f32 %v2981, 0.0
      %v3014 = vmax.f32 %v2982, 0.0
      %v3015 = vmax.f32 %v2983, 0.0
      %v3016 = vmax.f32 %v2984, 0.0
      %v3017 = vmax.f32 %v2985, 0.0
      %v3018 = vmax.f32 %v2986, 0.0
      %v3019 = vmax.f32 %v2987, 0.0
      %v3020 = vmax.f32 %v2988, 0.0
      %v3021 = vmax.f32 %v2989, 0.0
      %v3022 = vmax.f32 %v2990, 0.0
      %v3023 = vmax.f32 %v2991, 0.0
      %v3024 = vmax.f32 %v2992, 0.0
      %v3025 = vmax.f32 %v2993, 0.0
      %v3026 = vmax.f32 %v2994, 0.0
      %v3027 = vmax.f32 %v2995, 0.0
      %v3028 = vmax.f32 %v2996, 0.0
      %v3029 = vmax.f32 %v2997, 0.0
      %v3030 = vmax.f32 %v2998, 0.0
      %v3031 = vmax.f32 %v2999, 0.0
      %v3032 = vmax.f32 %v3000, 0.0
      %v3033 = vmax.f32 %v3001, 0.0
      %v3034 = vmax.f32 %v3002, 0.0
      %v3035 = vmax.f32 %v3003, 0.0
      %v3036 = vmax.f32 %v3004, 0.0
      %v3037 = vmax.f32 %v3005, 0.0
      %v3038 = vmax.f32 %v3006, 0.0
      %v3039 = vmax.f32 %v3007, 0.0
      %v3040 = vmin.f32 %v3008, 6.0
      %v3041 = vmin.f32 %v3009, 6.0
      %v3042 = vmin.f32 %v3010, 6.0
      %v3043 = vmin.f32 %v3011, 6.0
      %v3044 = vmin.f32 %v3012, 6.0
      %v3045 = vmin.f32 %v3013, 6.0
      %v3046 = vmin.f32 %v3014, 6.0
      %v3047 = vmin.f32 %v3015, 6.0
      %v3048 = vmin.f32 %v3016, 6.0
      %v3049 = vmin.f32 %v3017, 6.0
      %v3050 = vmin.f32 %v3018, 6.0
      %v3051 = vmin.f32 %v3019, 6.0
      %v3052 = vmin.f32 %v3020, 6.0
      %v3053 = vmin.f32 %v3021, 6.0
      %v3054 = vmin.f32 %v3022, 6.0
      %v3055 = vmin.f32 %v3023, 6.0
      %v3056 = vmin.f32 %v3024, 6.0
      %v3057 = vmin.f32 %v3025, 6.0
      %v3058 = vmin.f32 %v3026, 6.0
      %v3059 = vmin.f32 %v3027, 6.0
      %v3060 = vmin.f32 %v3028, 6.0
      %v3061 = vmin.f32 %v3029, 6.0
      %v3062 = vmin.f32 %v3030, 6.0
      %v3063 = vmin.f32 %v3031, 6.0
      %v3064 = vmin.f32 %v3032, 6.0
      %v3065 = vmin.f32 %v3033, 6.0
      %v3066 = vmin.f32 %v3034, 6.0
      %v3067 = vmin.f32 %v3035, 6.0
      %v3068 = vmin.f32 %v3036, 6.0
      %v3069 = vmin.f32 %v3037, 6.0
      %v3070 = vmin.f32 %v3038, 6.0
      %v3071 = vmin.f32 %v3039, 6.0
      %v3072 = vpack.c.bf16 %v3042, %v3040
      %v3073 = vpack.c.bf16 %v3043, %v3041
      %v3074 = vpack.c.bf16 %v3046, %v3044
      %v3075 = vpack.c.bf16 %v3047, %v3045
      %v3076 = vpack.c.bf16 %v3050, %v3048
      %v3077 = vpack.c.bf16 %v3051, %v3049
      %v3078 = vpack.c.bf16 %v3054, %v3052
      %v3079 = vpack.c.bf16 %v3055, %v3053
      %v3080 = vpack.c.bf16 %v3058, %v3056
      %v3081 = vpack.c.bf16 %v3059, %v3057
      %v3082 = vpack.c.bf16 %v3062, %v3060
      %v3083 = vpack.c.bf16 %v3063, %v3061
      %v3084 = vpack.c.bf16 %v3066, %v3064
      %v3085 = vpack.c.bf16 %v3067, %v3065
      %v3086 = vpack.c.bf16 %v3070, %v3068
      %v3087 = vpack.c.bf16 %v3071, %v3069
      %v3088 = vld [vmem:[%s318] sm:$0xf]
      %v3089 = vld [vmem:[%s318 + $0x4] sm:$0xf]
      %v3090 = vld [vmem:[%s318 + $0x8] sm:$0xf]
      %v3091 = vld [vmem:[%s318 + $0xc] sm:$0xf]
      %v3096 = vunpack.c.l.b16 %v3088
      %v3097 = vunpack.c.l.b16 %v3089
      %v3098 = vunpack.c.l.b16 %v3090
      %v3099 = vunpack.c.l.b16 %v3091
      %v3100 = vpack.c.b16 %v3097, %v3096
      %v3101 = vpack.c.b16 %v3099, %v3098
      %3104 = vmatpush.bf16.msra.mxu0 %v3086
      %3105 = vmatpush.bf16.msra.mxu0 %v3084
      %3106 = vmatpush.bf16.msra.mxu0 %v3082
      %3107 = vmatpush.bf16.msra.mxu0 %v3080
      %3108 = vmatpush.bf16.msra.mxu0 %v3078
      %3109 = vmatpush.bf16.msra.mxu0 %v3076
      %3110 = vmatpush.bf16.msra.mxu0 %v3074
      %3111 = vmatpush.bf16.msra.mxu0 %v3072
      %3112 = vmatmul.bf16.gmra.mxu0 %v3100
      %v3113 = vpop.f32.mrf.mxu0
      %v3114 = vadd.f32 0.0, %v3113
      %v3115 = vpop.f32.mrf.mxu0
      %v3116 = vadd.f32 0.0, %v3115
      %3117 = vmatmul.bf16.gmra.mxu0 %v3101
      %v3118 = vpop.f32.mrf.mxu0
      %v3119 = vadd.f32 0.0, %v3118
      %v3120 = vpop.f32.mrf.mxu0
      %v3121 = vadd.f32 0.0, %v3120
      %3122 = vdwg.mxu0
      %3123 = vmatpush.bf16.msra.mxu0 %v3087
      %3124 = vmatpush.bf16.msra.mxu0 %v3085
      %3125 = vmatpush.bf16.msra.mxu0 %v3083
      %3126 = vmatpush.bf16.msra.mxu0 %v3081
      %3127 = vmatpush.bf16.msra.mxu0 %v3079
      %3128 = vmatpush.bf16.msra.mxu0 %v3077
      %3129 = vmatpush.bf16.msra.mxu0 %v3075
      %3130 = vmatpush.bf16.msra.mxu0 %v3073
      %3131 = vmatmul.bf16.gmra.mxu0 %v3100
      %v3132 = vpop.f32.mrf.mxu0
      %v3133 = vadd.f32 0.0, %v3132
      %v3134 = vpop.f32.mrf.mxu0
      %v3135 = vadd.f32 0.0, %v3134
      %3136 = vmatmul.bf16.gmra.mxu0 %v3101
      %v3137 = vpop.f32.mrf.mxu0
      %v3138 = vadd.f32 0.0, %v3137
      %v3139 = vpop.f32.mrf.mxu0
      %v3140 = vadd.f32 0.0, %v3139
      %3141 = vdwg.mxu0
      // Predicated region
      $region49: #{inverted_residual.1} parent=43 // pred_check
        %p3142 = pneg %p325
      $region50: #{inverted_residual.1} parent=43 // pred_check_branch
        %3144 = sbr.rel (%p3142) target = $region52
      $region51: #{inverted_residual.1} parent=43 // pred_region
        %3145 = vst [vmem:[%s323] sm:$0xff] %v3114
        %3146 = vst [vmem:[%s323 + $0x8] sm:$0xff] %v3133
        %3147 = vst [vmem:[%s323 + $0x10] sm:$0xff] %v3116
        %3148 = vst [vmem:[%s323 + $0x18] sm:$0xff] %v3135
        %3149 = vst [vmem:[%s323 + $0x20] sm:$0xff] %v3119
        %3150 = vst [vmem:[%s323 + $0x28] sm:$0xff] %v3138
        %3151 = vst [vmem:[%s323 + $0x30] sm:$0xff] %v3121
        %3152 = vst [vmem:[%s323 + $0x38] sm:$0xff] %v3140
      $region52: #{inverted_residual.1} parent=43 // pred_fallthru
        _
      %p3153 = scmp.gt.s32.totalorder %s22, 0
      // Predicated region
      $region53: #{inverted_residual.1} parent=43 // pred_check
        %p3154 = pneg %p3153
      $region54: #{inverted_residual.1} parent=43 // pred_check_branch
        %3156 = sbr.rel (%p3154) target = $region56
      $region55: #{inverted_residual.1} parent=43 // pred_region
        %v3157 = vld [vmem:[%s323] sm:$0xff]
        %v3158 = vld [vmem:[%s323 + $0x8] sm:$0xff]
        %v3159 = vld [vmem:[%s323 + $0x10] sm:$0xff]
        %v3160 = vld [vmem:[%s323 + $0x18] sm:$0xff]
        %v3161 = vld [vmem:[%s323 + $0x20] sm:$0xff]
        %v3162 = vld [vmem:[%s323 + $0x28] sm:$0xff]
        %v3163 = vld [vmem:[%s323 + $0x30] sm:$0xff]
        %v3164 = vld [vmem:[%s323 + $0x38] sm:$0xff]
        %v3165 = vadd.f32 %v3157, %v3114
        %v3166 = vadd.f32 %v3158, %v3133
        %v3167 = vadd.f32 %v3159, %v3116
        %v3168 = vadd.f32 %v3160, %v3135
        %v3169 = vadd.f32 %v3161, %v3119
        %v3170 = vadd.f32 %v3162, %v3138
        %v3171 = vadd.f32 %v3163, %v3121
        %v3172 = vadd.f32 %v3164, %v3140
        %3173 = vst [vmem:[%s323] sm:$0xff] %v3165
        %3174 = vst [vmem:[%s323 + $0x8] sm:$0xff] %v3166
        %3175 = vst [vmem:[%s323 + $0x10] sm:$0xff] %v3167
        %3176 = vst [vmem:[%s323 + $0x18] sm:$0xff] %v3168
        %3177 = vst [vmem:[%s323 + $0x20] sm:$0xff] %v3169
        %3178 = vst [vmem:[%s323 + $0x28] sm:$0xff] %v3170
        %3179 = vst [vmem:[%s323 + $0x30] sm:$0xff] %v3171
        %3180 = vst [vmem:[%s323 + $0x38] sm:$0xff] %v3172
      $region56: #{inverted_residual.1} parent=43 // pred_fallthru
        _
      // Predicated region
      $region57: #{inverted_residual.1} parent=43 // pred_check
        %p3181 = pneg %p325
      $region58: #{inverted_residual.1} parent=43 // pred_check_branch
        %3183 = sbr.rel (%p3181) target = $region60
      $region59: #{inverted_residual.1} parent=43 // pred_region
        %v3184 = vld [vmem:[%s323] sm:$0xff]
        %v3185 = vld [vmem:[%s323 + $0x8] sm:$0xff]
        %v3186 = vld [vmem:[%s323 + $0x10] sm:$0xff]
        %v3187 = vld [vmem:[%s323 + $0x18] sm:$0xff]
        %v3188 = vld [vmem:[%s323 + $0x20] sm:$0xff]
        %v3189 = vld [vmem:[%s323 + $0x28] sm:$0xff]
        %v3190 = vld [vmem:[%s323 + $0x30] sm:$0xff]
        %v3191 = vld [vmem:[%s323 + $0x38] sm:$0xff]
        %v3192 = vld [vmem:[%s5] sm:$0xff]
        %v3193 = vld [vmem:[%s5 + $0x8] sm:$0xff]
        %v3194 = vld [vmem:[%s5 + $0x10] sm:$0xff]
        %v3195 = vld [vmem:[%s5 + $0x18] sm:$0xff]
        %3197 = vset.pattern.permute.xlu0 0
        %3198 = vperm.xlu0 %3197, %v3192
        %v3199 = vpop.permute.xlu0 %3198
        %3202 = vset.pattern.permute.xlu0 0
        %3203 = vperm.xlu0 %3202, %v3193
        %v3204 = vpop.permute.xlu0 %3203
        %3207 = vset.pattern.permute.xlu0 0
        %3208 = vperm.xlu0 %3207, %v3194
        %v3209 = vpop.permute.xlu0 %3208
        %3212 = vset.pattern.permute.xlu0 0
        %3213 = vperm.xlu0 %3212, %v3195
        %v3214 = vpop.permute.xlu0 %3213
        %v3216 = vadd.f32 %v3184, %v3199
        %v3217 = vadd.f32 %v3185, %v3199
        %v3218 = vadd.f32 %v3186, %v3204
        %v3219 = vadd.f32 %v3187, %v3204
        %v3220 = vadd.f32 %v3188, %v3209
        %v3221 = vadd.f32 %v3189, %v3209
        %v3222 = vadd.f32 %v3190, %v3214
        %v3223 = vadd.f32 %v3191, %v3214
        %v3224 = vld [vmem:[%s303] sm:$0xff]
        %v3225 = vld [vmem:[%s303 + $0x8] sm:$0xff]
        %v3226 = vld [vmem:[%s303 + $0x10] sm:$0xff]
        %v3227 = vld [vmem:[%s303 + $0x18] sm:$0xff]
        %v3228 = vld [vmem:[%s303 + $0x20] sm:$0xff]
        %v3229 = vld [vmem:[%s303 + $0x28] sm:$0xff]
        %v3230 = vld [vmem:[%s303 + $0x30] sm:$0xff]
        %v3231 = vld [vmem:[%s303 + $0x38] sm:$0xff]
        %v3232 = vadd.f32 %v3216, %v3224
        %v3233 = vadd.f32 %v3217, %v3225
        %v3234 = vadd.f32 %v3218, %v3226
        %v3235 = vadd.f32 %v3219, %v3227
        %v3236 = vadd.f32 %v3220, %v3228
        %v3237 = vadd.f32 %v3221, %v3229
        %v3238 = vadd.f32 %v3222, %v3230
        %v3239 = vadd.f32 %v3223, %v3231
        %3240 = vst [vmem:[%s323] sm:$0xff] %v3232
        %3241 = vst [vmem:[%s323 + $0x8] sm:$0xff] %v3233
        %3242 = vst [vmem:[%s323 + $0x10] sm:$0xff] %v3234
        %3243 = vst [vmem:[%s323 + $0x18] sm:$0xff] %v3235
        %3244 = vst [vmem:[%s323 + $0x20] sm:$0xff] %v3236
        %3245 = vst [vmem:[%s323 + $0x28] sm:$0xff] %v3237
        %3246 = vst [vmem:[%s323 + $0x30] sm:$0xff] %v3238
        %3247 = vst [vmem:[%s323 + $0x38] sm:$0xff] %v3239
      $region60: #{inverted_residual.1} parent=43 // pred_fallthru
        _
      %p3248 = scmp.lt.s32.totalorder %s21, 1
      %s3249 = scalar_select %p3248, %s21, 1
      %s3250 = smul.addr %s3249, 8
      %s3251 = smul.addr %s3250, 8
      %s3252 = scalar_lea.vmem %s6, %s3251
      // Predicated region
      $region61: #{inverted_residual.1} parent=43 // pred_check
        %p3253 = pneg %p193
      $region62: #{inverted_residual.1} parent=43 // pred_check_branch
        %3255 = sbr.rel (%p3253) target = $region64
      $region63: #{inverted_residual.1} parent=43 // pred_region
        _
      $region64: #{inverted_residual.1} parent=43 // pred_fallthru
        _
    $region44: #{inverted_residual.1} parent=5 // pred_fallthru
      _
    %p3256 = scmp.le.s32.totalorder 2, %s12
    // Predicated region
    $region65: #{inverted_residual.1} parent=5 // pred_check
      %p3257 = pneg %p3256
    $region66: #{inverted_residual.1} parent=5 // pred_check_branch
      %3259 = sbr.rel (%p3257) target = $region68
    $region67: #{inverted_residual.1} parent=5 // pred_region
      %s3260 = ssub.s32 %s12, 2
      // Predicated region
      $region69: #{inverted_residual.1} parent=67 // pred_check
        %p3261 = pneg %p199
      $region70: #{inverted_residual.1} parent=67 // pred_check_branch
        %3263 = sbr.rel (%p3261) target = $region72
      $region71: #{inverted_residual.1} parent=67 // pred_region
        %p3264 = scmp.lt.s32.totalorder %s23, 1
        %s3265 = scalar_select %p3264, %s23, 1
        %s3266 = smul.addr %s3265, 8
        %s3267 = smul.addr %s3266, 8
        %s3268 = scalar_lea.vmem %s6, %s3267
      $region72: #{inverted_residual.1} parent=67 // pred_fallthru
        _
    $region68: #{inverted_residual.1} parent=5 // pred_fallthru
      _
  $region6: #{inverted_residual.1} parent=0 // loop_footer
    %s16 = sadd.s32 1, %s12
  $region7: #{inverted_residual.1} parent=0 // loop_footer_branch
    %11 = sbr.rel target = $region3
  $region8: #{inverted_residual.1} parent=0 // loop_exit
    _

</llo_original>
